<compile_context>
chip_gen: v5e
topology: v5e:2x2
jax: 0.10.0
libtpu: 0.0.40
codegen_flags: <defaults>
</compile_context>

<pallas_src>
import functools

import jax
import jax.numpy as jnp
from jax.experimental import pallas as pl
from jax.experimental.pallas import tpu as pltpu

_LANES = 128


def _channel_attention_kernel(x_ref, w1t_ref, w2t_ref, o_ref,
                              sum_ref, max_ref, *, inv_hw, n_chunks, deferred):
    # x_ref  : (TB, C, THW)  one stream x one batch-tile x one spatial tile
    # w1t_ref: (C, Cr)       pre-transposed first 1x1 conv weight (f32)
    # w2t_ref: (Cr, C)       pre-transposed second 1x1 conv weight (f32)
    # o_ref  : (TB, C)       sigmoid(mlp(avg) + mlp(max)), written on last step
    # sum_ref/max_ref: running accumulators over the HW grid axis
    #   deferred=True : (TB, C, 128) lane-wide partial accumulators
    #   deferred=False: (TB, C) (single full-extent step, direct reduce)
    k = pl.program_id(2)

    @pl.when(k == 0)
    def _():
        sum_ref[...] = jnp.zeros_like(sum_ref)
        max_ref[...] = jnp.full_like(max_ref, -jnp.inf)

    if deferred:
        # Hot loop: lane-aligned 128-wide chunks -> pure VPU vadd/vmax, no
        # cross-lane reduce / relayout per step.  One scratch read + one
        # scratch write per grid step (keeps VMEM store traffic minimal).
        acc_s = sum_ref[...]
        acc_m = max_ref[...]
        for j in range(n_chunks):  # static, unrolled; starts are literal 128-multiples
            chunk = x_ref[:, :, pl.ds(j * _LANES, _LANES)].astype(jnp.float32)
            acc_s = acc_s + chunk
            acc_m = jnp.maximum(acc_m, chunk)
        sum_ref[...] = acc_s
        max_ref[...] = acc_m
    else:
        # Non-lane-aligned spatial extent (e.g. HW = 7*7): single step, direct
        # reduce.  Layout-inefficient but rare and tiny.
        x = x_ref[...].astype(jnp.float32)
        sum_ref[...] = sum_ref[...] + jnp.sum(x, axis=-1)
        max_ref[...] = jnp.maximum(max_ref[...], jnp.max(x, axis=-1))

    @pl.when(k == pl.num_programs(2) - 1)
    def _():
        if deferred:
            # The only cross-lane reduce + relayout, once per (stream, batch) tile.
            avg = jnp.sum(sum_ref[...], axis=-1) * inv_hw      # (TB, C)
            mx = jnp.max(max_ref[...], axis=-1)                # (TB, C)
        else:
            avg = sum_ref[...] * inv_hw
            mx = max_ref[...]
        # Stack avg/max so the shared MLP runs as ONE (2*TB, C) matmul pair.
        v = jnp.concatenate([avg, mx], axis=0)                 # (2*TB, C)
        h = jnp.maximum(
            jnp.dot(v, w1t_ref[...], preferred_element_type=jnp.float32), 0.0)
        y = jnp.dot(h, w2t_ref[...], preferred_element_type=jnp.float32)
        tb = avg.shape[0]
        gate = jax.nn.sigmoid(y[:tb] + y[tb:])                 # (TB, C)
        o_ref[...] = gate.astype(o_ref.dtype)


def _physical_vmem_bytes():
    """Per-TensorCore physical VMEM (64 MiB on v7x, 128 MiB on v5e/v6e)."""
    default = 64 * 1024 * 1024  # conservative
    try:
        info = pltpu.get_tpu_info()
        v = int(getattr(info, "vmem_capacity_bytes", 0))
        return v if v > 0 else default
    except Exception:
        return default


def _pick_batch_tile(b):
    """Largest power-of-two batch tile dividing B (fuller sublanes, bigger DMAs)."""
    for tb in (16, 8, 4, 2):
        if b % tb == 0:
            return tb
    return 1


def _pick_spatial_tile(hw, max_elems):
    """Largest spatial tile (full extent or 128-multiple divisor) within budget."""
    if hw <= max_elems:
        return hw                       # single reduction step
    best = 0
    t = _LANES
    cap = min(hw, max_elems)
    while t <= cap:
        if hw % t == 0:
            best = t
        t += _LANES
    if best:
        return best
    # No aligned divisor fits the budget (pathological HW): full extent is the
    # only always-legal fallback.  Silently layout-inefficient for HW not a
    # multiple of 128.
    return hw


def _channel_attention_stacked(x, w1t, w2t):
    """Fused channel-attention over S stacked streams.

    x  : (S, B, C, H, W)
    w1t: (S, C, Cr)   pre-transposed, f32
    w2t: (S, Cr, C)   pre-transposed, f32
    returns (S, B, C) = sigmoid(mlp(avgpool) + mlp(maxpool)) per stream.
    """
    S, B, C, H, W = x.shape
    HW = H * W
    Cr = w1t.shape[-1]
    itemsize = jnp.dtype(x.dtype).itemsize

    TB = _pick_batch_tile(B)

    # Per-generation VMEM budget: scoped limit ~3/4 of physical VMEM
    # (~48 MiB v7x, ~96 MiB v5e/v6e); double-buffered x tile gets ~1/3 of it.
    vmem_phys = _physical_vmem_bytes()
    vmem_limit = int(min(vmem_phys * 3 // 4, 96 * 1024 * 1024))
    x_tile_budget = vmem_limit // 3

    # Shrink TB if even a 128-lane tile would not fit the budget (huge C).
    while TB > 1 and x_tile_budget // (2 * TB * C * itemsize) < _LANES:
        TB //= 2

    max_thw = max(_LANES, x_tile_budget // (2 * TB * C * itemsize))
    # Bound the unrolled chunk loop; >8 KiB-lane tiles give diminishing returns.
    max_thw = min(max_thw, 64 * _LANES)
    THW = _pick_spatial_tile(HW, max_thw)

    nb = B // TB
    nk = HW // THW
    deferred = (THW % _LANES == 0)
    n_chunks = THW // _LANES if deferred else 0

    # One-time layout plumbing (free, never per grid step).
    x_tiled = x.reshape(S, nb, TB, C, HW)

    kernel = functools.partial(_channel_attention_kernel,
                               inv_hw=1.0 / HW, n_chunks=n_chunks,
                               deferred=deferred)

    if deferred:
        scratch = [pltpu.VMEM((TB, C, _LANES), jnp.float32),   # running sum
                   pltpu.VMEM((TB, C, _LANES), jnp.float32)]   # running max
    else:
        scratch = [pltpu.VMEM((TB, C), jnp.float32),
                   pltpu.VMEM((TB, C), jnp.float32)]

    out = pl.pallas_call(
        kernel,
        out_shape=jax.ShapeDtypeStruct((S, nb, TB, C), x.dtype),
        grid_spec=pltpu.PrefetchScalarGridSpec(
            num_scalar_prefetch=0,
            grid=(S, nb, nk),                                  # reduction axis last
            in_specs=[
                # leading size-1 dims squeezed -> kernel sees (TB, C, THW)
                pl.BlockSpec((None, None, TB, C, THW),
                             lambda s, b, k: (s, b, 0, 0, k)),
                pl.BlockSpec((None, C, Cr), lambda s, b, k: (s, 0, 0)),
                pl.BlockSpec((None, Cr, C), lambda s, b, k: (s, 0, 0)),
            ],
            out_specs=pl.BlockSpec((None, None, TB, C),
                                   lambda s, b, k: (s, b, 0, 0)),
            scratch_shapes=scratch,
        ),
        compiler_params=pltpu.CompilerParams(
            dimension_semantics=("parallel", "parallel", "arbitrary"),
            vmem_limit_bytes=vmem_limit,
        ),
    )(x_tiled, w1t, w2t)

    return out.reshape(S, B, C)


def channel_attention(x, w1, w2):
    """Single-stream channel-attention gate on an NCHW feature map.

    x : (B, C, H, W);  w1: (C//r, C);  w2: (C, C//r)   (both bias-free)
    returns (B, C, 1, 1).
    """
    B, C, H, W = x.shape
    w1t = jnp.asarray(w1, jnp.float32).T[None]     # (1, C, Cr)
    w2t = jnp.asarray(w2, jnp.float32).T[None]     # (1, Cr, C)
    out = _channel_attention_stacked(x[None], w1t, w2t)   # (1, B, C)
    return out[0].reshape(B, C, 1, 1)


def multi_input_forward(magnetogram, euv, mag_w1, mag_w2, euv_w1, euv_w2):
    """Mirror MultiInputDenseNet.forward: per-stream head, returns a tuple.

    The two streams are fused into ONE pallas_call when shapes/dtypes match
    (DenseNet-121 emits identically-shaped (B, 1024, 7, 7) maps for both):
    halves fixed launch overhead and doubles the parallel grid axis.
    """
    same = (magnetogram.shape == euv.shape
            and magnetogram.dtype == euv.dtype
            and mag_w1.shape == euv_w1.shape
            and mag_w2.shape == euv_w2.shape)
    if same:
        x = jnp.stack([magnetogram, euv], axis=0)                      # (2, B, C, H, W)
        w1t = jnp.stack([jnp.asarray(mag_w1, jnp.float32).T,
                         jnp.asarray(euv_w1, jnp.float32).T], axis=0)  # (2, C, Cr)
        w2t = jnp.stack([jnp.asarray(mag_w2, jnp.float32).T,
                         jnp.asarray(euv_w2, jnp.float32).T], axis=0)  # (2, Cr, C)
        out = _channel_attention_stacked(x, w1t, w2t)                  # (2, B, C)
        B, C = out.shape[1], out.shape[2]
        return (out[0].reshape(B, C, 1, 1), out[1].reshape(B, C, 1, 1))
    return (channel_attention(magnetogram, mag_w1, mag_w2),
            channel_attention(euv, euv_w1, euv_w2))


def reference(x, w1, w2):
    # Pure-JAX reference of the head's forward for validation.
    xf = x.astype(jnp.float32)
    avg = jnp.mean(xf, axis=(2, 3))                       # (B, C)
    mx = jnp.max(xf, axis=(2, 3))                         # (B, C)

    def fc(v):
        h = jnp.maximum(v @ w1.T, 0.0)
        return h @ w2.T

    return jax.nn.sigmoid(fc(avg) + fc(mx))[:, :, None, None]


if __name__ == "__main__":
    # Small shapes: two feature streams (magnetogram-like, EUV-like); C must be
    # divisible by the reduction ratio and is kept lane-aligned (multiple of 128).
    B, C, H, W = 4, 128, 32, 32
    reduction = 16
    Cr = C // reduction

    key = jax.random.PRNGKey(0)
    kxm, kxe, k1m, k2m, k1e, k2e = jax.random.split(key, 6)

    mag = jax.random.normal(kxm, (B, C, H, W), dtype=jnp.float32)
    euv = jax.random.normal(kxe, (B, C, H, W), dtype=jnp.float32)
    mag_w1 = jax.random.normal(k1m, (Cr, C), dtype=jnp.float32) * (1.0 / jnp.sqrt(C))
    mag_w2 = jax.random.normal(k2m, (C, Cr), dtype=jnp.float32) * (1.0 / jnp.sqrt(Cr))
    euv_w1 = jax.random.normal(k1e, (Cr, C), dtype=jnp.float32) * (1.0 / jnp.sqrt(C))
    euv_w2 = jax.random.normal(k2e, (C, Cr), dtype=jnp.float32) * (1.0 / jnp.sqrt(Cr))

    out_mag, out_euv = multi_input_forward(mag, euv, mag_w1, mag_w2, euv_w1, euv_w2)
    out_mag = jax.block_until_ready(out_mag)
    out_euv = jax.block_until_ready(out_euv)

    ref_mag = reference(mag, mag_w1, mag_w2)
    ref_euv = reference(euv, euv_w1, euv_w2)

    assert out_mag.shape == (B, C, 1, 1) and out_euv.shape == (B, C, 1, 1)
    assert jnp.allclose(out_mag, ref_mag, atol=1e-5, rtol=1e-5)
    assert jnp.allclose(out_euv, ref_euv, atol=1e-5, rtol=1e-5)

    print("KERNEL_OK")
</pallas_src>

<mosaic_0001>
module attributes {stable_mosaic.version = 11 : i64} {
  func.func @_channel_attention_kernel(%arg0: i32, %arg1: i32, %arg2: i32, %arg3: memref<1x1x4x128x1024xf32, #tpu.memory_space<vmem>>, %arg4: memref<1x128x8xf32, #tpu.memory_space<vmem>>, %arg5: memref<1x8x128xf32, #tpu.memory_space<vmem>>, %arg6: memref<1x1x4x128xf32, #tpu.memory_space<vmem>>, %arg7: memref<4x128x128xf32, #tpu.memory_space<vmem>>, %arg8: memref<4x128x128xf32, #tpu.memory_space<vmem>>) attributes {dimension_semantics = [#tpu.dimension_semantics<parallel>, #tpu.dimension_semantics<parallel>, #tpu.dimension_semantics<arbitrary>], iteration_bounds = array<i64: 2, 1, 1>, scalar_prefetch = 0 : i64, scratch_operands = 2 : i64, tpu.core_type = #tpu.core_type<tc>, window_params = [{transform_indices = @transform_0, window_bounds = array<i64: 1, 1, 4, 128, 1024>}, {transform_indices = @transform_1, window_bounds = array<i64: 1, 128, 8>}, {transform_indices = @transform_2, window_bounds = array<i64: 1, 8, 128>}, {transform_indices = @transform_3, window_bounds = array<i64: 1, 1, 4, 128>}]} {
    %c0_i32 = arith.constant 0 : i32
    %0 = arith.cmpi eq, %arg2, %c0_i32 : i32
    %1 = arith.extui %0 : i1 to i32
    %c0_i32_0 = arith.constant 0 : i32
    %2 = arith.cmpi ne, %1, %c0_i32_0 : i32
    scf.if %2 {
      %cst = arith.constant 0.000000e+00 : f32
      %42 = vector.broadcast %cst : f32 to vector<4x128x128xf32>
      %c0_47 = arith.constant 0 : index
      %c0_48 = arith.constant 0 : index
      %c0_49 = arith.constant 0 : index
      %43 = vector.load %arg7[%c0_47, %c0_48, %c0_49] : memref<4x128x128xf32, #tpu.memory_space<vmem>>, vector<4x128x128xf32>
      tpu.vector_store %arg7[%c0_47, %c0_48, %c0_49], %42 {strides = array<i32>} : memref<4x128x128xf32, #tpu.memory_space<vmem>>, vector<4x128x128xf32>,
      %cst_50 = arith.constant 0xFF800000 : f32
      %44 = vector.broadcast %cst_50 : f32 to vector<4x128x128xf32>
      %c0_51 = arith.constant 0 : index
      %c0_52 = arith.constant 0 : index
      %c0_53 = arith.constant 0 : index
      %45 = vector.load %arg8[%c0_51, %c0_52, %c0_53] : memref<4x128x128xf32, #tpu.memory_space<vmem>>, vector<4x128x128xf32>
      tpu.vector_store %arg8[%c0_51, %c0_52, %c0_53], %44 {strides = array<i32>} : memref<4x128x128xf32, #tpu.memory_space<vmem>>, vector<4x128x128xf32>,
    } else {
    }
    %c0 = arith.constant 0 : index
    %c0_1 = arith.constant 0 : index
    %c0_2 = arith.constant 0 : index
    %3 = vector.load %arg7[%c0, %c0_1, %c0_2] : memref<4x128x128xf32, #tpu.memory_space<vmem>>, vector<4x128x128xf32>
    %c0_3 = arith.constant 0 : index
    %c0_4 = arith.constant 0 : index
    %c0_5 = arith.constant 0 : index
    %4 = vector.load %arg8[%c0_3, %c0_4, %c0_5] : memref<4x128x128xf32, #tpu.memory_space<vmem>>, vector<4x128x128xf32>
    %c0_6 = arith.constant 0 : index
    %c0_7 = arith.constant 0 : index
    %c0_8 = arith.constant 0 : index
    %c0_9 = arith.constant 0 : index
    %c0_10 = arith.constant 0 : index
    %5 = vector.load %arg3[%c0_6, %c0_7, %c0_8, %c0_9, %c0_10] : memref<1x1x4x128x1024xf32, #tpu.memory_space<vmem>>, vector<1x1x4x128x128xf32>
    %6 = vector.shape_cast %5 : vector<1x1x4x128x128xf32> to vector<4x128x128xf32>
    %7 = arith.addf %3, %6 : vector<4x128x128xf32>
    %8 = arith.maximumf %4, %6 : vector<4x128x128xf32>
    %c0_11 = arith.constant 0 : index
    %c0_12 = arith.constant 0 : index
    %c0_13 = arith.constant 0 : index
    %c0_14 = arith.constant 0 : index
    %c128 = arith.constant 128 : index
    %9 = vector.load %arg3[%c0_11, %c0_12, %c0_13, %c0_14, %c128] : memref<1x1x4x128x1024xf32, #tpu.memory_space<vmem>>, vector<1x1x4x128x128xf32>
    %10 = vector.shape_cast %9 : vector<1x1x4x128x128xf32> to vector<4x128x128xf32>
    %11 = arith.addf %7, %10 : vector<4x128x128xf32>
    %12 = arith.maximumf %8, %10 : vector<4x128x128xf32>
    %c0_15 = arith.constant 0 : index
    %c0_16 = arith.constant 0 : index
    %c0_17 = arith.constant 0 : index
    %c0_18 = arith.constant 0 : index
    %c256 = arith.constant 256 : index
    %13 = vector.load %arg3[%c0_15, %c0_16, %c0_17, %c0_18, %c256] : memref<1x1x4x128x1024xf32, #tpu.memory_space<vmem>>, vector<1x1x4x128x128xf32>
    %14 = vector.shape_cast %13 : vector<1x1x4x128x128xf32> to vector<4x128x128xf32>
    %15 = arith.addf %11, %14 : vector<4x128x128xf32>
    %16 = arith.maximumf %12, %14 : vector<4x128x128xf32>
    %c0_19 = arith.constant 0 : index
    %c0_20 = arith.constant 0 : index
    %c0_21 = arith.constant 0 : index
    %c0_22 = arith.constant 0 : index
    %c384 = arith.constant 384 : index
    %17 = vector.load %arg3[%c0_19, %c0_20, %c0_21, %c0_22, %c384] : memref<1x1x4x128x1024xf32, #tpu.memory_space<vmem>>, vector<1x1x4x128x128xf32>
    %18 = vector.shape_cast %17 : vector<1x1x4x128x128xf32> to vector<4x128x128xf32>
    %19 = arith.addf %15, %18 : vector<4x128x128xf32>
    %20 = arith.maximumf %16, %18 : vector<4x128x128xf32>
    %c0_23 = arith.constant 0 : index
    %c0_24 = arith.constant 0 : index
    %c0_25 = arith.constant 0 : index
    %c0_26 = arith.constant 0 : index
    %c512 = arith.constant 512 : index
    %21 = vector.load %arg3[%c0_23, %c0_24, %c0_25, %c0_26, %c512] : memref<1x1x4x128x1024xf32, #tpu.memory_space<vmem>>, vector<1x1x4x128x128xf32>
    %22 = vector.shape_cast %21 : vector<1x1x4x128x128xf32> to vector<4x128x128xf32>
    %23 = arith.addf %19, %22 : vector<4x128x128xf32>
    %24 = arith.maximumf %20, %22 : vector<4x128x128xf32>
    %c0_27 = arith.constant 0 : index
    %c0_28 = arith.constant 0 : index
    %c0_29 = arith.constant 0 : index
    %c0_30 = arith.constant 0 : index
    %c640 = arith.constant 640 : index
    %25 = vector.load %arg3[%c0_27, %c0_28, %c0_29, %c0_30, %c640] : memref<1x1x4x128x1024xf32, #tpu.memory_space<vmem>>, vector<1x1x4x128x128xf32>
    %26 = vector.shape_cast %25 : vector<1x1x4x128x128xf32> to vector<4x128x128xf32>
    %27 = arith.addf %23, %26 : vector<4x128x128xf32>
    %28 = arith.maximumf %24, %26 : vector<4x128x128xf32>
    %c0_31 = arith.constant 0 : index
    %c0_32 = arith.constant 0 : index
    %c0_33 = arith.constant 0 : index
    %c0_34 = arith.constant 0 : index
    %c768 = arith.constant 768 : index
    %29 = vector.load %arg3[%c0_31, %c0_32, %c0_33, %c0_34, %c768] : memref<1x1x4x128x1024xf32, #tpu.memory_space<vmem>>, vector<1x1x4x128x128xf32>
    %30 = vector.shape_cast %29 : vector<1x1x4x128x128xf32> to vector<4x128x128xf32>
    %31 = arith.addf %27, %30 : vector<4x128x128xf32>
    %32 = arith.maximumf %28, %30 : vector<4x128x128xf32>
    %c0_35 = arith.constant 0 : index
    %c0_36 = arith.constant 0 : index
    %c0_37 = arith.constant 0 : index
    %c0_38 = arith.constant 0 : index
    %c896 = arith.constant 896 : index
    %33 = vector.load %arg3[%c0_35, %c0_36, %c0_37, %c0_38, %c896] : memref<1x1x4x128x1024xf32, #tpu.memory_space<vmem>>, vector<1x1x4x128x128xf32>
    %34 = vector.shape_cast %33 : vector<1x1x4x128x128xf32> to vector<4x128x128xf32>
    %35 = arith.addf %31, %34 : vector<4x128x128xf32>
    %36 = arith.maximumf %32, %34 : vector<4x128x128xf32>
    %c0_39 = arith.constant 0 : index
    %c0_40 = arith.constant 0 : index
    %c0_41 = arith.constant 0 : index
    %37 = vector.load %arg7[%c0_39, %c0_40, %c0_41] : memref<4x128x128xf32, #tpu.memory_space<vmem>>, vector<4x128x128xf32>
    tpu.vector_store %arg7[%c0_39, %c0_40, %c0_41], %35 {strides = array<i32>} : memref<4x128x128xf32, #tpu.memory_space<vmem>>, vector<4x128x128xf32>,
    %c0_42 = arith.constant 0 : index
    %c0_43 = arith.constant 0 : index
    %c0_44 = arith.constant 0 : index
    %38 = vector.load %arg8[%c0_42, %c0_43, %c0_44] : memref<4x128x128xf32, #tpu.memory_space<vmem>>, vector<4x128x128xf32>
    tpu.vector_store %arg8[%c0_42, %c0_43, %c0_44], %36 {strides = array<i32>} : memref<4x128x128xf32, #tpu.memory_space<vmem>>, vector<4x128x128xf32>,
    %c0_i32_45 = arith.constant 0 : i32
    %39 = arith.cmpi eq, %arg2, %c0_i32_45 : i32
    %40 = arith.extui %39 : i1 to i32
    %c0_i32_46 = arith.constant 0 : i32
    %41 = arith.cmpi ne, %40, %c0_i32_46 : i32
    scf.if %41 {
      %c0_47 = arith.constant 0 : index
      %c0_48 = arith.constant 0 : index
      %c0_49 = arith.constant 0 : index
      %42 = vector.load %arg7[%c0_47, %c0_48, %c0_49] : memref<4x128x128xf32, #tpu.memory_space<vmem>>, vector<4x128x128xf32>
      %cst = arith.constant dense<0.000000e+00> : vector<4x128xf32>
      %43 = vector.multi_reduction <add>, %42, %cst [2] : vector<4x128x128xf32> to vector<4x128xf32>
      %cst_50 = arith.constant 9.765625E-4 : f32
      %44 = vector.broadcast %cst_50 : f32 to vector<4x128xf32>
      %45 = arith.mulf %43, %44 : vector<4x128xf32>
      %c0_51 = arith.constant 0 : index
      %c0_52 = arith.constant 0 : index
      %c0_53 = arith.constant 0 : index
      %46 = vector.load %arg8[%c0_51, %c0_52, %c0_53] : memref<4x128x128xf32, #tpu.memory_space<vmem>>, vector<4x128x128xf32>
      %cst_54 = arith.constant dense<0xFF800000> : vector<4x128xf32>
      %47 = vector.multi_reduction <maximumf>, %46, %cst_54 [2] : vector<4x128x128xf32> to vector<4x128xf32>
      %48 = tpu.concatenate %45, %47 in 0 : vector<4x128xf32>, vector<4x128xf32> -> vector<8x128xf32>
      %c0_55 = arith.constant 0 : index
      %c0_56 = arith.constant 0 : index
      %c0_57 = arith.constant 0 : index
      %49 = vector.load %arg4[%c0_55, %c0_56, %c0_57] : memref<1x128x8xf32, #tpu.memory_space<vmem>>, vector<1x128x8xf32>
      %50 = vector.shape_cast %49 : vector<1x128x8xf32> to vector<128x8xf32>
      %cst_58 = arith.constant dense<0.000000e+00> : vector<8x8xf32>
      %51 = tpu.matmul %48, %50, %cst_58 {dimension_numbers = #tpu.dot_dimension_numbers<[1], [0], [0], [1], [0, 0, 1, 1], [], []>} : vector<8x128xf32>, vector<128x8xf32>, vector<8x8xf32> -> vector<8x8xf32>
      %cst_59 = arith.constant 0.000000e+00 : f32
      %52 = vector.broadcast %cst_59 : f32 to vector<8x8xf32>
      %53 = arith.maximumf %51, %52 : vector<8x8xf32>
      %c0_60 = arith.constant 0 : index
      %c0_61 = arith.constant 0 : index
      %c0_62 = arith.constant 0 : index
      %54 = vector.load %arg5[%c0_60, %c0_61, %c0_62] : memref<1x8x128xf32, #tpu.memory_space<vmem>>, vector<1x8x128xf32>
      %55 = vector.shape_cast %54 : vector<1x8x128xf32> to vector<8x128xf32>
      %cst_63 = arith.constant dense<0.000000e+00> : vector<8x128xf32>
      %56 = tpu.matmul %53, %55, %cst_63 {dimension_numbers = #tpu.dot_dimension_numbers<[1], [0], [0], [1], [0, 0, 1, 1], [], []>} : vector<8x8xf32>, vector<8x128xf32>, vector<8x128xf32> -> vector<8x128xf32>
      %57 = vector.extract_strided_slice %56 {offsets = [0, 0], sizes = [4, 128], strides = [1, 1]} : vector<8x128xf32> to vector<4x128xf32>
      %58 = vector.extract_strided_slice %56 {offsets = [4, 0], sizes = [4, 128], strides = [1, 1]} : vector<8x128xf32> to vector<4x128xf32>
      %59 = arith.addf %57, %58 : vector<4x128xf32>
      %60 = arith.negf %59 : vector<4x128xf32>
      %61 = math.exp %60 : vector<4x128xf32>
      %cst_64 = arith.constant 1.000000e+00 : f32
      %62 = vector.broadcast %cst_64 : f32 to vector<4x128xf32>
      %63 = arith.addf %62, %61 : vector<4x128xf32>
      %64 = arith.divf %62, %63 : vector<4x128xf32>
      %c0_65 = arith.constant 0 : index
      %c0_66 = arith.constant 0 : index
      %c0_67 = arith.constant 0 : index
      %c0_68 = arith.constant 0 : index
      %65 = vector.load %arg6[%c0_65, %c0_66, %c0_67, %c0_68] : memref<1x1x4x128xf32, #tpu.memory_space<vmem>>, vector<1x1x4x128xf32>
      %66 = vector.shape_cast %65 : vector<1x1x4x128xf32> to vector<4x128xf32>
      %67 = vector.shape_cast %64 : vector<4x128xf32> to vector<1x1x4x128xf32>
      tpu.vector_store %arg6[%c0_65, %c0_66, %c0_67, %c0_68], %67 {strides = array<i32>} : memref<1x1x4x128xf32, #tpu.memory_space<vmem>>, vector<1x1x4x128xf32>,
    } else {
    }
    return
  }
  func.func @transform_0(%arg0: i32, %arg1: i32, %arg2: i32) -> (i32, i32, i32, i32, i32) {
    %c0_i32 = arith.constant 0 : i32
    %c0_i32_0 = arith.constant 0 : i32
    %c0_i32_1 = arith.constant 0 : i32
    return %arg0, %arg1, %c0_i32, %c0_i32_0, %arg2 : i32, i32, i32, i32, i32
  }
  func.func @transform_1(%arg0: i32, %arg1: i32, %arg2: i32) -> (i32, i32, i32) {
    %c0_i32 = arith.constant 0 : i32
    %c0_i32_0 = arith.constant 0 : i32
    %c0_i32_1 = arith.constant 0 : i32
    return %arg0, %c0_i32, %c0_i32_0 : i32, i32, i32
  }
  func.func @transform_2(%arg0: i32, %arg1: i32, %arg2: i32) -> (i32, i32, i32) {
    %c0_i32 = arith.constant 0 : i32
    %c0_i32_0 = arith.constant 0 : i32
    %c0_i32_1 = arith.constant 0 : i32
    return %arg0, %c0_i32, %c0_i32_0 : i32, i32, i32
  }
  func.func @transform_3(%arg0: i32, %arg1: i32, %arg2: i32) -> (i32, i32, i32, i32) {
    %c0_i32 = arith.constant 0 : i32
    %c0_i32_0 = arith.constant 0 : i32
    %c0_i32_1 = arith.constant 0 : i32
    return %arg0, %arg1, %c0_i32, %c0_i32_0 : i32, i32, i32, i32
  }
}

</mosaic_0001>

<llo_original>
// kernel: tpu_custom_call.1
$region0: #{tpu_custom_call.1}
  #allocation0 [shape = 'u32[]', space=smem, size = 0x4, offset = 0x4, fixed_abs, tag = 'smem constant byte address 0x4 - core index']
  #allocation1 [shape = 'u32[72,128]{1,0:T(1,128)}', space=vmem, size = 0x9000, scoped, tag = 'internal scratch']
  #allocation2 [shape = 'f32[4,128,128]{2,1,0:T(8,128)}', space=vmem, size = 0x40000, scoped, tag = 'scratch operand']
  #allocation3 [shape = 'f32[4,128,128]{2,1,0:T(8,128)}', space=vmem, size = 0x40000, scoped, tag = 'scratch operand']
  %s0 = inlined_call_operand.hbm [shape: f32[2,1,4,128,1024], index: 0, kind: input, shape index: {}]
  %s1 = inlined_call_operand.vmem [shape: f32[2,128,8], index: 1, kind: input, shape index: {}]
  %s2 = inlined_call_operand.hbm [shape: f32[2,8,128], index: 2, kind: input, shape index: {}]
  %s3 = inlined_call_operand.hbm [shape: f32[2,1,4,128], index: 3, kind: output, shape index: {}]
  %s4 = sld [smem:[#allocation0]]
  $region61: #{tpu_custom_call.1} parent=0
    _
  %s6 = ssub.s32 1, %s4
  %s7 = scalar_select 0, %s6, %s4
  $region1: #{tpu_custom_call.1} parent=0
    #allocation4 [shape = 'u8[4194304]{0}', space=vmem, size = 0x400000, scoped, tag = 'input window, operand 0']
    #allocation5 [shape = 's32[2]{0}', space=sflag, size = 0x8, scoped, tag = 'scoped memory for tpu_custom_call.1']
    #allocation6 [shape = 's32[2]{0}', space=sflag, size = 0x8, scoped, tag = 'scoped memory for tpu_custom_call.1']
    #allocation7 [shape = 'u8[8192]{0}', space=vmem, size = 0x2000, scoped, tag = 'input window, operand 2']
    #allocation8 [shape = 's32[2]{0}', space=sflag, size = 0x8, scoped, tag = 'scoped memory for tpu_custom_call.1']
    #allocation9 [shape = 'u8[4096]{0}', space=vmem, size = 0x1000, scoped, tag = 'output window, operand 0']
    %8 = vsyncpa [#allocation5], 0
    %s9 = scalar_lea.sflag [#allocation5], 1
    %10 = vsyncpa %s9, 0
    %11 = vsyncpa [#allocation8], 0
    %s12 = scalar_lea.sflag [#allocation8], 1
    %13 = vsyncpa %s12, 0
    %14 = vsyncpa [#allocation6], 0
    %s15 = scalar_lea.sflag [#allocation6], 1
    %16 = vsyncpa %s15, 0
    loop: start=0, step=1, limit=4
    $region2: #{tpu_custom_call.1} parent=1 // loop_pre_header
      _
    $region3: #{tpu_custom_call.1} parent=1 // loop_header
      %s18 = sphi 0, %s22
      %p19 = scmp.ge.s32.totalorder %s18, 4
      %s25 = sphi 0, %s44
      %s26 = sphi 0, %s40
      %s27 = sphi 0, %s36
      %s28 = sphi 0, %s25
      %s29 = sphi 0, %s26
      %s30 = sphi 0, %s27
      %s31 = sphi 0, %s28
      %s32 = sphi 0, %s29
      %s33 = sphi 0, %s30
      %s51 = sphi 0, %s53
      %s54 = sphi 0, %s51
      %s55 = sphi 0, %s54
      %s71 = sphi 0, %s55
      %s77 = sphi 0, %s79
      %s80 = sphi 0, %s77
      %s81 = sphi 0, %s80
      %s97 = sphi 0, %s81
      %s103 = sphi 0, %s105
      %s106 = sphi 0, %s103
      %s107 = sphi 0, %s106
      %s123 = sphi 0, %s107
      %s131 = sphi 0, %s133
      %s134 = sphi 0, %s131
      %s135 = sphi 0, %s134
      %s151 = sphi 0, %s135
    $region4: #{tpu_custom_call.1} parent=1 // loop_header_branch
      %21 = sbr.rel (%p19) target = $region8
    $region5: #{tpu_custom_call.1} parent=1 // loop_body
      %s23 = ssub.s32 %s18, 1
      %s24 = ssub.s32 %s18, 2
      %s34 = sadd.s32 1, %s27
      %p35 = scmp.ge.s32.totalorder %s34, 1
      %s36 = scalar_select %p35, 0, %s34
      %s37 = sadd.s32 1, %s26
      %s38 = scalar_select %p35, %s37, %s26
      %p39 = scmp.ge.s32.totalorder %s38, 1
      %s40 = scalar_select %p39, 0, %s38
      %s41 = sadd.s32 1, %s25
      %s42 = scalar_select %p39, %s41, %s25
      %p43 = scmp.ge.s32.totalorder %s42, 2
      %s44 = scalar_select %p43, 0, %s42
      %s45 = ssub.s32 %s25, %s44
      %s46 = ssub.s32 %s26, %s40
      %s47 = sor.u32 %s45, %s46
      %s48 = ssub.s32 %s27, %s36
      %s49 = sor.u32 %s47, %s48
      %p50 = scmp.eq.s32.totalorder %s49, 0
      %s52 = sadd.s32 %s51, 1
      %s53 = scalar_select %p50, %s51, %s52
      %p56 = pneg %p50
      %p57 = scmp.eq.s32.totalorder %s18, 1
      %p58 = por %p56, %p57
      %p59 = scmp.ne.s32.totalorder %s51, %s54
      %p60 = scmp.eq.s32.totalorder %s18, 0
      %p61 = por %p59, %p60
      %p62 = scmp.ne.s32.totalorder %s51, %s54
      %p63 = scmp.eq.s32.totalorder %s23, 1
      %p64 = por %p62, %p63
      %p65 = scmp.ne.s32.totalorder %s54, %s55
      %p66 = scmp.eq.s32.totalorder %s23, 0
      %p67 = por %p65, %p66
      %p68 = scmp.ne.s32.totalorder %s54, %s55
      %p69 = scmp.eq.s32.totalorder %s24, 1
      %p70 = por %p68, %p69
      %p72 = scmp.ne.s32.totalorder %s55, %s71
      %p73 = scmp.eq.s32.totalorder %s24, 0
      %p74 = por %p72, %p73
      %s75 = ssub.s32 %s25, %s44
      %p76 = scmp.eq.s32.totalorder %s75, 0
      %s78 = sadd.s32 %s77, 1
      %s79 = scalar_select %p76, %s77, %s78
      %p82 = pneg %p76
      %p83 = scmp.eq.s32.totalorder %s18, 1
      %p84 = por %p82, %p83
      %p85 = scmp.ne.s32.totalorder %s77, %s80
      %p86 = scmp.eq.s32.totalorder %s18, 0
      %p87 = por %p85, %p86
      %p88 = scmp.ne.s32.totalorder %s77, %s80
      %p89 = scmp.eq.s32.totalorder %s23, 1
      %p90 = por %p88, %p89
      %p91 = scmp.ne.s32.totalorder %s80, %s81
      %p92 = scmp.eq.s32.totalorder %s23, 0
      %p93 = por %p91, %p92
      %p94 = scmp.ne.s32.totalorder %s80, %s81
      %p95 = scmp.eq.s32.totalorder %s24, 1
      %p96 = por %p94, %p95
      %p98 = scmp.ne.s32.totalorder %s81, %s97
      %p99 = scmp.eq.s32.totalorder %s24, 0
      %p100 = por %p98, %p99
      %s101 = ssub.s32 %s25, %s44
      %p102 = scmp.eq.s32.totalorder %s101, 0
      %s104 = sadd.s32 %s103, 1
      %s105 = scalar_select %p102, %s103, %s104
      %p108 = pneg %p102
      %p109 = scmp.eq.s32.totalorder %s18, 1
      %p110 = por %p108, %p109
      %p111 = scmp.ne.s32.totalorder %s103, %s106
      %p112 = scmp.eq.s32.totalorder %s18, 0
      %p113 = por %p111, %p112
      %p114 = scmp.ne.s32.totalorder %s103, %s106
      %p115 = scmp.eq.s32.totalorder %s23, 1
      %p116 = por %p114, %p115
      %p117 = scmp.ne.s32.totalorder %s106, %s107
      %p118 = scmp.eq.s32.totalorder %s23, 0
      %p119 = por %p117, %p118
      %p120 = scmp.ne.s32.totalorder %s106, %s107
      %p121 = scmp.eq.s32.totalorder %s24, 1
      %p122 = por %p120, %p121
      %p124 = scmp.ne.s32.totalorder %s107, %s123
      %p125 = scmp.eq.s32.totalorder %s24, 0
      %p126 = por %p124, %p125
      %s127 = ssub.s32 %s25, %s44
      %s128 = ssub.s32 %s26, %s40
      %s129 = sor.u32 %s127, %s128
      %p130 = scmp.eq.s32.totalorder %s129, 0
      %s132 = sadd.s32 %s131, 1
      %s133 = scalar_select %p130, %s131, %s132
      %p136 = pneg %p130
      %p137 = scmp.eq.s32.totalorder %s18, 1
      %p138 = por %p136, %p137
      %p139 = scmp.ne.s32.totalorder %s131, %s134
      %p140 = scmp.eq.s32.totalorder %s18, 0
      %p141 = por %p139, %p140
      %p142 = scmp.ne.s32.totalorder %s131, %s134
      %p143 = scmp.eq.s32.totalorder %s23, 1
      %p144 = por %p142, %p143
      %p145 = scmp.ne.s32.totalorder %s134, %s135
      %p146 = scmp.eq.s32.totalorder %s23, 0
      %p147 = por %p145, %p146
      %p148 = scmp.ne.s32.totalorder %s134, %s135
      %p149 = scmp.eq.s32.totalorder %s24, 1
      %p150 = por %p148, %p149
      %p152 = scmp.ne.s32.totalorder %s135, %s151
      %p153 = scmp.eq.s32.totalorder %s24, 0
      %p154 = por %p152, %p153
      %p155 = scmp.le.s32.totalorder 1, %s18
      %p156 = scmp.lt.s32.totalorder %s18, 3
      %p157 = pnand %p155, %p156
      %p158 = pneg %p157
      // Predicated region
      $region9: #{tpu_custom_call.1} parent=5 // pred_check
        _
      $region10: #{tpu_custom_call.1} parent=5 // pred_check_branch
        %160 = sbr.rel (%p157) target = $region12
      $region11: #{tpu_custom_call.1} parent=5 // pred_region
        %s161 = ssub.s32 %s18, 1
      $region12: #{tpu_custom_call.1} parent=5 // pred_fallthru
        _
      %p162 = scmp.lt.s32.totalorder %s18, 2
      // Predicated region
      $region13: #{tpu_custom_call.1} parent=5 // pred_check
        %p163 = pneg %p162
      $region14: #{tpu_custom_call.1} parent=5 // pred_check_branch
        %165 = sbr.rel (%p163) target = $region16
      $region15: #{tpu_custom_call.1} parent=5 // pred_region
        // Predicated region
        $region17: #{tpu_custom_call.1} parent=15 // pred_check
          %p166 = pneg %p61
        $region18: #{tpu_custom_call.1} parent=15 // pred_check_branch
          %168 = sbr.rel (%p166) target = $region20
        $region19: #{tpu_custom_call.1} parent=15 // pred_region
          %s169 = sand.u32 %s51, 1
          %s170 = scalar_lea.sflag [#allocation5], %s169
          %s171 = sand.u32 %s51, 1
          %s172 = smul.addr %s171, 4096
          %s173 = scalar_lea.vmem [#allocation4], %s172
          %s174 = smul.u32 8, %s27
          %176 = vsyncadd %s170, 0
          %s177 = smul.addr %s26, 512
          %s178 = sadd.s32 %s174, %s177
          %s179 = smul.addr %s25, 512
          %s180 = sadd.s32 %s178, %s179
          %s181 = smul.addr %s180, 8
          %s182 = scalar_lea.hbm %s0, %s181
          %s183 = sshll.u32 %s182, 4
          %s184 = int_to_ptr.hbm [resolvable:$true] %s183
          %s185 = sshll.u32 %s173, 4
          %s186 = int_to_ptr.vmem [resolvable:$true] %s185
          %191 = dma.hbm_to_vmem [thread:$0]  %s184, 65536, %s186, %s170, 1024, 1024, 64
        $region20: #{tpu_custom_call.1} parent=15 // pred_fallthru
          _
        // Predicated region
        $region21: #{tpu_custom_call.1} parent=15 // pred_check
          %p192 = pneg %p87
        $region22: #{tpu_custom_call.1} parent=15 // pred_check_branch
          %194 = sbr.rel (%p192) target = $region24
        $region23: #{tpu_custom_call.1} parent=15 // pred_region
          %p195 = scmp.lt.s32.totalorder %s25, 1
          %s196 = scalar_select %p195, %s25, 1
          %s197 = smul.addr %s196, 16
          %s198 = smul.addr %s197, 8
          %s199 = scalar_lea.vmem %s1, %s198
        $region24: #{tpu_custom_call.1} parent=15 // pred_fallthru
          _
        // Predicated region
        $region25: #{tpu_custom_call.1} parent=15 // pred_check
          %p200 = pneg %p113
        $region26: #{tpu_custom_call.1} parent=15 // pred_check_branch
          %202 = sbr.rel (%p200) target = $region28
        $region27: #{tpu_custom_call.1} parent=15 // pred_region
          %s203 = sand.u32 %s103, 1
          %s204 = scalar_lea.sflag [#allocation8], %s203
          %s205 = sand.u32 %s103, 1
          %s206 = smul.addr %s205, 8
          %s207 = scalar_lea.vmem [#allocation7], %s206
          %209 = vsyncadd %s204, 0
          %s210 = smul.addr %s25, 8
          %s211 = scalar_lea.hbm %s2, %s210
          %s213 = sshll.u32 %s211, 4
          %s214 = int_to_ptr.hbm [resolvable:$true] %s213
          %s215 = sshll.u32 %s207, 4
          %s216 = int_to_ptr.vmem [resolvable:$true] %s215
          %218 = dma.hbm_to_vmem [thread:$0]  %s214, 128, %s216, %s204
        $region28: #{tpu_custom_call.1} parent=15 // pred_fallthru
          _
      $region16: #{tpu_custom_call.1} parent=5 // pred_fallthru
        _
      %p219 = scmp.le.s32.totalorder 1, %s18
      %p220 = scmp.lt.s32.totalorder %s18, 3
      %p221 = pnand %p219, %p220
      %p222 = pneg %p221
      // Predicated region
      $region29: #{tpu_custom_call.1} parent=5 // pred_check
        _
      $region30: #{tpu_custom_call.1} parent=5 // pred_check_branch
        %224 = sbr.rel (%p221) target = $region32
      $region31: #{tpu_custom_call.1} parent=5 // pred_region
        %s225 = ssub.s32 %s18, 1
        %s226 = sand.u32 %s54, 1
        %s227 = scalar_lea.sflag [#allocation5], %s226
        %s228 = sand.u32 %s54, 1
        %s229 = smul.addr %s228, 4096
        %s230 = scalar_lea.vmem [#allocation4], %s229
        // Predicated region
        $region33: #{tpu_custom_call.1} parent=31 // pred_check
          %p231 = pneg %p67
        $region34: #{tpu_custom_call.1} parent=31 // pred_check_branch
          %233 = sbr.rel (%p231) target = $region36
        $region35: #{tpu_custom_call.1} parent=31 // pred_region
          %235 = dma.done %s227, 65536
        $region36: #{tpu_custom_call.1} parent=31 // pred_fallthru
          _
        %s236 = sand.u32 %s106, 1
        %s237 = scalar_lea.sflag [#allocation8], %s236
        %s238 = sand.u32 %s106, 1
        %s239 = smul.addr %s238, 8
        %s240 = scalar_lea.vmem [#allocation7], %s239
        // Predicated region
        $region37: #{tpu_custom_call.1} parent=31 // pred_check
          %p241 = pneg %p119
        $region38: #{tpu_custom_call.1} parent=31 // pred_check_branch
          %243 = sbr.rel (%p241) target = $region40
        $region39: #{tpu_custom_call.1} parent=31 // pred_region
          %245 = dma.done %s237, 128
        $region40: #{tpu_custom_call.1} parent=31 // pred_fallthru
          _
        %s246 = sand.u32 %s54, 1
        %s247 = scalar_lea.sflag [#allocation5], %s246
        %s248 = sand.u32 %s54, 1
        %s249 = smul.addr %s248, 4096
        %s250 = scalar_lea.vmem [#allocation4], %s249
        %p251 = pneg %p67
        %p252 = pneg %p64
        %p253 = scmp.lt.s32.totalorder %s28, 1
        %s254 = scalar_select %p253, %s28, 1
        %s255 = smul.addr %s254, 16
        %s256 = smul.addr %s255, 8
        %s257 = scalar_lea.vmem %s1, %s256
        %p258 = pneg %p93
        %p259 = pneg %p90
        %s260 = sand.u32 %s106, 1
        %s261 = scalar_lea.sflag [#allocation8], %s260
        %s262 = sand.u32 %s106, 1
        %s263 = smul.addr %s262, 8
        %s264 = scalar_lea.vmem [#allocation7], %s263
        %p265 = pneg %p119
        %p266 = pneg %p116
        %p267 = pneg %p147
        %p268 = pneg %p144
        %s269 = sand.u32 %s134, 1
        %s270 = scalar_lea.sflag [#allocation6], %s269
        %s271 = sand.u32 %s134, 1
        %s272 = smul.addr %s271, 4
        %s273 = scalar_lea.vmem [#allocation9], %s272
        %s274 = smul.u32 8, %s30
        %p275 = scmp.lt.s32.totalorder %s28, 1
        %s276 = scalar_select %p275, %s28, 1
        %s277 = smul.addr %s276, 16
        %s278 = smul.addr %s277, 8
        %s279 = scalar_lea.vmem %s1, %s278
        %p280 = scmp.eq.s32.totalorder %s30, 0
        // Predicated region
        $region41: #{tpu_custom_call.1} parent=31 // pred_check
          %p281 = pneg %p280
        $region42: #{tpu_custom_call.1} parent=31 // pred_check_branch
          %283 = sbr.rel (%p281) target = $region44
        $region43: #{tpu_custom_call.1} parent=31 // pred_region
          %284 = vst [vmem:[#allocation2] sm:$0xff] 0.0
          %285 = vst [vmem:[#allocation2 + $0x8] sm:$0xff] 0.0
          %286 = vst [vmem:[#allocation2 + $0x10] sm:$0xff] 0.0
          %287 = vst [vmem:[#allocation2 + $0x18] sm:$0xff] 0.0
          %288 = vst [vmem:[#allocation2 + $0x20] sm:$0xff] 0.0
          %289 = vst [vmem:[#allocation2 + $0x28] sm:$0xff] 0.0
          %290 = vst [vmem:[#allocation2 + $0x30] sm:$0xff] 0.0
          %291 = vst [vmem:[#allocation2 + $0x38] sm:$0xff] 0.0
          %292 = vst [vmem:[#allocation2 + $0x40] sm:$0xff] 0.0
          %293 = vst [vmem:[#allocation2 + $0x48] sm:$0xff] 0.0
          %294 = vst [vmem:[#allocation2 + $0x50] sm:$0xff] 0.0
          %295 = vst [vmem:[#allocation2 + $0x58] sm:$0xff] 0.0
          %296 = vst [vmem:[#allocation2 + $0x60] sm:$0xff] 0.0
          %297 = vst [vmem:[#allocation2 + $0x68] sm:$0xff] 0.0
          %298 = vst [vmem:[#allocation2 + $0x70] sm:$0xff] 0.0
          %299 = vst [vmem:[#allocation2 + $0x78] sm:$0xff] 0.0
          %300 = vst [vmem:[#allocation2 + $0x80] sm:$0xff] 0.0
          %301 = vst [vmem:[#allocation2 + $0x88] sm:$0xff] 0.0
          %302 = vst [vmem:[#allocation2 + $0x90] sm:$0xff] 0.0
          %303 = vst [vmem:[#allocation2 + $0x98] sm:$0xff] 0.0
          %304 = vst [vmem:[#allocation2 + $0xa0] sm:$0xff] 0.0
          %305 = vst [vmem:[#allocation2 + $0xa8] sm:$0xff] 0.0
          %306 = vst [vmem:[#allocation2 + $0xb0] sm:$0xff] 0.0
          %307 = vst [vmem:[#allocation2 + $0xb8] sm:$0xff] 0.0
          %308 = vst [vmem:[#allocation2 + $0xc0] sm:$0xff] 0.0
          %309 = vst [vmem:[#allocation2 + $0xc8] sm:$0xff] 0.0
          %310 = vst [vmem:[#allocation2 + $0xd0] sm:$0xff] 0.0
          %311 = vst [vmem:[#allocation2 + $0xd8] sm:$0xff] 0.0
          %312 = vst [vmem:[#allocation2 + $0xe0] sm:$0xff] 0.0
          %313 = vst [vmem:[#allocation2 + $0xe8] sm:$0xff] 0.0
          %314 = vst [vmem:[#allocation2 + $0xf0] sm:$0xff] 0.0
          %315 = vst [vmem:[#allocation2 + $0xf8] sm:$0xff] 0.0
          %316 = vst [vmem:[#allocation2 + $0x100] sm:$0xff] 0.0
          %317 = vst [vmem:[#allocation2 + $0x108] sm:$0xff] 0.0
          %318 = vst [vmem:[#allocation2 + $0x110] sm:$0xff] 0.0
          %319 = vst [vmem:[#allocation2 + $0x118] sm:$0xff] 0.0
          %320 = vst [vmem:[#allocation2 + $0x120] sm:$0xff] 0.0
          %321 = vst [vmem:[#allocation2 + $0x128] sm:$0xff] 0.0
          %322 = vst [vmem:[#allocation2 + $0x130] sm:$0xff] 0.0
          %323 = vst [vmem:[#allocation2 + $0x138] sm:$0xff] 0.0
          %324 = vst [vmem:[#allocation2 + $0x140] sm:$0xff] 0.0
          %325 = vst [vmem:[#allocation2 + $0x148] sm:$0xff] 0.0
          %326 = vst [vmem:[#allocation2 + $0x150] sm:$0xff] 0.0
          %327 = vst [vmem:[#allocation2 + $0x158] sm:$0xff] 0.0
          %328 = vst [vmem:[#allocation2 + $0x160] sm:$0xff] 0.0
          %329 = vst [vmem:[#allocation2 + $0x168] sm:$0xff] 0.0
          %330 = vst [vmem:[#allocation2 + $0x170] sm:$0xff] 0.0
          %331 = vst [vmem:[#allocation2 + $0x178] sm:$0xff] 0.0
          %332 = vst [vmem:[#allocation2 + $0x180] sm:$0xff] 0.0
          %333 = vst [vmem:[#allocation2 + $0x188] sm:$0xff] 0.0
          %334 = vst [vmem:[#allocation2 + $0x190] sm:$0xff] 0.0
          %335 = vst [vmem:[#allocation2 + $0x198] sm:$0xff] 0.0
          %336 = vst [vmem:[#allocation2 + $0x1a0] sm:$0xff] 0.0
          %337 = vst [vmem:[#allocation2 + $0x1a8] sm:$0xff] 0.0
          %338 = vst [vmem:[#allocation2 + $0x1b0] sm:$0xff] 0.0
          %339 = vst [vmem:[#allocation2 + $0x1b8] sm:$0xff] 0.0
          %340 = vst [vmem:[#allocation2 + $0x1c0] sm:$0xff] 0.0
          %341 = vst [vmem:[#allocation2 + $0x1c8] sm:$0xff] 0.0
          %342 = vst [vmem:[#allocation2 + $0x1d0] sm:$0xff] 0.0
          %343 = vst [vmem:[#allocation2 + $0x1d8] sm:$0xff] 0.0
          %344 = vst [vmem:[#allocation2 + $0x1e0] sm:$0xff] 0.0
          %345 = vst [vmem:[#allocation2 + $0x1e8] sm:$0xff] 0.0
          %346 = vst [vmem:[#allocation2 + $0x1f0] sm:$0xff] 0.0
          %347 = vst [vmem:[#allocation2 + $0x1f8] sm:$0xff] 0.0
          %348 = vst [vmem:[#allocation3] sm:$0xff] -inf
          %349 = vst [vmem:[#allocation3 + $0x8] sm:$0xff] -inf
          %350 = vst [vmem:[#allocation3 + $0x10] sm:$0xff] -inf
          %351 = vst [vmem:[#allocation3 + $0x18] sm:$0xff] -inf
          %352 = vst [vmem:[#allocation3 + $0x20] sm:$0xff] -inf
          %353 = vst [vmem:[#allocation3 + $0x28] sm:$0xff] -inf
          %354 = vst [vmem:[#allocation3 + $0x30] sm:$0xff] -inf
          %355 = vst [vmem:[#allocation3 + $0x38] sm:$0xff] -inf
          %356 = vst [vmem:[#allocation3 + $0x40] sm:$0xff] -inf
          %357 = vst [vmem:[#allocation3 + $0x48] sm:$0xff] -inf
          %358 = vst [vmem:[#allocation3 + $0x50] sm:$0xff] -inf
          %359 = vst [vmem:[#allocation3 + $0x58] sm:$0xff] -inf
          %360 = vst [vmem:[#allocation3 + $0x60] sm:$0xff] -inf
          %361 = vst [vmem:[#allocation3 + $0x68] sm:$0xff] -inf
          %362 = vst [vmem:[#allocation3 + $0x70] sm:$0xff] -inf
          %363 = vst [vmem:[#allocation3 + $0x78] sm:$0xff] -inf
          %364 = vst [vmem:[#allocation3 + $0x80] sm:$0xff] -inf
          %365 = vst [vmem:[#allocation3 + $0x88] sm:$0xff] -inf
          %366 = vst [vmem:[#allocation3 + $0x90] sm:$0xff] -inf
          %367 = vst [vmem:[#allocation3 + $0x98] sm:$0xff] -inf
          %368 = vst [vmem:[#allocation3 + $0xa0] sm:$0xff] -inf
          %369 = vst [vmem:[#allocation3 + $0xa8] sm:$0xff] -inf
          %370 = vst [vmem:[#allocation3 + $0xb0] sm:$0xff] -inf
          %371 = vst [vmem:[#allocation3 + $0xb8] sm:$0xff] -inf
          %372 = vst [vmem:[#allocation3 + $0xc0] sm:$0xff] -inf
          %373 = vst [vmem:[#allocation3 + $0xc8] sm:$0xff] -inf
          %374 = vst [vmem:[#allocation3 + $0xd0] sm:$0xff] -inf
          %375 = vst [vmem:[#allocation3 + $0xd8] sm:$0xff] -inf
          %376 = vst [vmem:[#allocation3 + $0xe0] sm:$0xff] -inf
          %377 = vst [vmem:[#allocation3 + $0xe8] sm:$0xff] -inf
          %378 = vst [vmem:[#allocation3 + $0xf0] sm:$0xff] -inf
          %379 = vst [vmem:[#allocation3 + $0xf8] sm:$0xff] -inf
          %380 = vst [vmem:[#allocation3 + $0x100] sm:$0xff] -inf
          %381 = vst [vmem:[#allocation3 + $0x108] sm:$0xff] -inf
          %382 = vst [vmem:[#allocation3 + $0x110] sm:$0xff] -inf
          %383 = vst [vmem:[#allocation3 + $0x118] sm:$0xff] -inf
          %384 = vst [vmem:[#allocation3 + $0x120] sm:$0xff] -inf
          %385 = vst [vmem:[#allocation3 + $0x128] sm:$0xff] -inf
          %386 = vst [vmem:[#allocation3 + $0x130] sm:$0xff] -inf
          %387 = vst [vmem:[#allocation3 + $0x138] sm:$0xff] -inf
          %388 = vst [vmem:[#allocation3 + $0x140] sm:$0xff] -inf
          %389 = vst [vmem:[#allocation3 + $0x148] sm:$0xff] -inf
          %390 = vst [vmem:[#allocation3 + $0x150] sm:$0xff] -inf
          %391 = vst [vmem:[#allocation3 + $0x158] sm:$0xff] -inf
          %392 = vst [vmem:[#allocation3 + $0x160] sm:$0xff] -inf
          %393 = vst [vmem:[#allocation3 + $0x168] sm:$0xff] -inf
          %394 = vst [vmem:[#allocation3 + $0x170] sm:$0xff] -inf
          %395 = vst [vmem:[#allocation3 + $0x178] sm:$0xff] -inf
          %396 = vst [vmem:[#allocation3 + $0x180] sm:$0xff] -inf
          %397 = vst [vmem:[#allocation3 + $0x188] sm:$0xff] -inf
          %398 = vst [vmem:[#allocation3 + $0x190] sm:$0xff] -inf
          %399 = vst [vmem:[#allocation3 + $0x198] sm:$0xff] -inf
          %400 = vst [vmem:[#allocation3 + $0x1a0] sm:$0xff] -inf
          %401 = vst [vmem:[#allocation3 + $0x1a8] sm:$0xff] -inf
          %402 = vst [vmem:[#allocation3 + $0x1b0] sm:$0xff] -inf
          %403 = vst [vmem:[#allocation3 + $0x1b8] sm:$0xff] -inf
          %404 = vst [vmem:[#allocation3 + $0x1c0] sm:$0xff] -inf
          %405 = vst [vmem:[#allocation3 + $0x1c8] sm:$0xff] -inf
          %406 = vst [vmem:[#allocation3 + $0x1d0] sm:$0xff] -inf
          %407 = vst [vmem:[#allocation3 + $0x1d8] sm:$0xff] -inf
          %408 = vst [vmem:[#allocation3 + $0x1e0] sm:$0xff] -inf
          %409 = vst [vmem:[#allocation3 + $0x1e8] sm:$0xff] -inf
          %410 = vst [vmem:[#allocation3 + $0x1f0] sm:$0xff] -inf
          %411 = vst [vmem:[#allocation3 + $0x1f8] sm:$0xff] -inf
        $region44: #{tpu_custom_call.1} parent=31 // pred_fallthru
          _
        %v412 = vld [vmem:[#allocation2] sm:$0xff]
        %v413 = vld [vmem:[#allocation2 + $0x8] sm:$0xff]
        %v414 = vld [vmem:[#allocation2 + $0x10] sm:$0xff]
        %v415 = vld [vmem:[#allocation2 + $0x18] sm:$0xff]
        %v416 = vld [vmem:[#allocation2 + $0x20] sm:$0xff]
        %v417 = vld [vmem:[#allocation2 + $0x28] sm:$0xff]
        %v418 = vld [vmem:[#allocation2 + $0x30] sm:$0xff]
        %v419 = vld [vmem:[#allocation2 + $0x38] sm:$0xff]
        %v420 = vld [vmem:[#allocation2 + $0x40] sm:$0xff]
        %v421 = vld [vmem:[#allocation2 + $0x48] sm:$0xff]
        %v422 = vld [vmem:[#allocation2 + $0x50] sm:$0xff]
        %v423 = vld [vmem:[#allocation2 + $0x58] sm:$0xff]
        %v424 = vld [vmem:[#allocation2 + $0x60] sm:$0xff]
        %v425 = vld [vmem:[#allocation2 + $0x68] sm:$0xff]
        %v426 = vld [vmem:[#allocation2 + $0x70] sm:$0xff]
        %v427 = vld [vmem:[#allocation2 + $0x78] sm:$0xff]
        %v428 = vld [vmem:[#allocation2 + $0x80] sm:$0xff]
        %v429 = vld [vmem:[#allocation2 + $0x88] sm:$0xff]
        %v430 = vld [vmem:[#allocation2 + $0x90] sm:$0xff]
        %v431 = vld [vmem:[#allocation2 + $0x98] sm:$0xff]
        %v432 = vld [vmem:[#allocation2 + $0xa0] sm:$0xff]
        %v433 = vld [vmem:[#allocation2 + $0xa8] sm:$0xff]
        %v434 = vld [vmem:[#allocation2 + $0xb0] sm:$0xff]
        %v435 = vld [vmem:[#allocation2 + $0xb8] sm:$0xff]
        %v436 = vld [vmem:[#allocation2 + $0xc0] sm:$0xff]
        %v437 = vld [vmem:[#allocation2 + $0xc8] sm:$0xff]
        %v438 = vld [vmem:[#allocation2 + $0xd0] sm:$0xff]
        %v439 = vld [vmem:[#allocation2 + $0xd8] sm:$0xff]
        %v440 = vld [vmem:[#allocation2 + $0xe0] sm:$0xff]
        %v441 = vld [vmem:[#allocation2 + $0xe8] sm:$0xff]
        %v442 = vld [vmem:[#allocation2 + $0xf0] sm:$0xff]
        %v443 = vld [vmem:[#allocation2 + $0xf8] sm:$0xff]
        %v444 = vld [vmem:[#allocation2 + $0x100] sm:$0xff]
        %v445 = vld [vmem:[#allocation2 + $0x108] sm:$0xff]
        %v446 = vld [vmem:[#allocation2 + $0x110] sm:$0xff]
        %v447 = vld [vmem:[#allocation2 + $0x118] sm:$0xff]
        %v448 = vld [vmem:[#allocation2 + $0x120] sm:$0xff]
        %v449 = vld [vmem:[#allocation2 + $0x128] sm:$0xff]
        %v450 = vld [vmem:[#allocation2 + $0x130] sm:$0xff]
        %v451 = vld [vmem:[#allocation2 + $0x138] sm:$0xff]
        %v452 = vld [vmem:[#allocation2 + $0x140] sm:$0xff]
        %v453 = vld [vmem:[#allocation2 + $0x148] sm:$0xff]
        %v454 = vld [vmem:[#allocation2 + $0x150] sm:$0xff]
        %v455 = vld [vmem:[#allocation2 + $0x158] sm:$0xff]
        %v456 = vld [vmem:[#allocation2 + $0x160] sm:$0xff]
        %v457 = vld [vmem:[#allocation2 + $0x168] sm:$0xff]
        %v458 = vld [vmem:[#allocation2 + $0x170] sm:$0xff]
        %v459 = vld [vmem:[#allocation2 + $0x178] sm:$0xff]
        %v460 = vld [vmem:[#allocation2 + $0x180] sm:$0xff]
        %v461 = vld [vmem:[#allocation2 + $0x188] sm:$0xff]
        %v462 = vld [vmem:[#allocation2 + $0x190] sm:$0xff]
        %v463 = vld [vmem:[#allocation2 + $0x198] sm:$0xff]
        %v464 = vld [vmem:[#allocation2 + $0x1a0] sm:$0xff]
        %v465 = vld [vmem:[#allocation2 + $0x1a8] sm:$0xff]
        %v466 = vld [vmem:[#allocation2 + $0x1b0] sm:$0xff]
        %v467 = vld [vmem:[#allocation2 + $0x1b8] sm:$0xff]
        %v468 = vld [vmem:[#allocation2 + $0x1c0] sm:$0xff]
        %v469 = vld [vmem:[#allocation2 + $0x1c8] sm:$0xff]
        %v470 = vld [vmem:[#allocation2 + $0x1d0] sm:$0xff]
        %v471 = vld [vmem:[#allocation2 + $0x1d8] sm:$0xff]
        %v472 = vld [vmem:[#allocation2 + $0x1e0] sm:$0xff]
        %v473 = vld [vmem:[#allocation2 + $0x1e8] sm:$0xff]
        %v474 = vld [vmem:[#allocation2 + $0x1f0] sm:$0xff]
        %v475 = vld [vmem:[#allocation2 + $0x1f8] sm:$0xff]
        %v476 = vld [vmem:[#allocation3] sm:$0xff]
        %v477 = vld [vmem:[#allocation3 + $0x8] sm:$0xff]
        %v478 = vld [vmem:[#allocation3 + $0x10] sm:$0xff]
        %v479 = vld [vmem:[#allocation3 + $0x18] sm:$0xff]
        %v480 = vld [vmem:[#allocation3 + $0x20] sm:$0xff]
        %v481 = vld [vmem:[#allocation3 + $0x28] sm:$0xff]
        %v482 = vld [vmem:[#allocation3 + $0x30] sm:$0xff]
        %v483 = vld [vmem:[#allocation3 + $0x38] sm:$0xff]
        %v484 = vld [vmem:[#allocation3 + $0x40] sm:$0xff]
        %v485 = vld [vmem:[#allocation3 + $0x48] sm:$0xff]
        %v486 = vld [vmem:[#allocation3 + $0x50] sm:$0xff]
        %v487 = vld [vmem:[#allocation3 + $0x58] sm:$0xff]
        %v488 = vld [vmem:[#allocation3 + $0x60] sm:$0xff]
        %v489 = vld [vmem:[#allocation3 + $0x68] sm:$0xff]
        %v490 = vld [vmem:[#allocation3 + $0x70] sm:$0xff]
        %v491 = vld [vmem:[#allocation3 + $0x78] sm:$0xff]
        %v492 = vld [vmem:[#allocation3 + $0x80] sm:$0xff]
        %v493 = vld [vmem:[#allocation3 + $0x88] sm:$0xff]
        %v494 = vld [vmem:[#allocation3 + $0x90] sm:$0xff]
        %v495 = vld [vmem:[#allocation3 + $0x98] sm:$0xff]
        %v496 = vld [vmem:[#allocation3 + $0xa0] sm:$0xff]
        %v497 = vld [vmem:[#allocation3 + $0xa8] sm:$0xff]
        %v498 = vld [vmem:[#allocation3 + $0xb0] sm:$0xff]
        %v499 = vld [vmem:[#allocation3 + $0xb8] sm:$0xff]
        %v500 = vld [vmem:[#allocation3 + $0xc0] sm:$0xff]
        %v501 = vld [vmem:[#allocation3 + $0xc8] sm:$0xff]
        %v502 = vld [vmem:[#allocation3 + $0xd0] sm:$0xff]
        %v503 = vld [vmem:[#allocation3 + $0xd8] sm:$0xff]
        %v504 = vld [vmem:[#allocation3 + $0xe0] sm:$0xff]
        %v505 = vld [vmem:[#allocation3 + $0xe8] sm:$0xff]
        %v506 = vld [vmem:[#allocation3 + $0xf0] sm:$0xff]
        %v507 = vld [vmem:[#allocation3 + $0xf8] sm:$0xff]
        %v508 = vld [vmem:[#allocation3 + $0x100] sm:$0xff]
        %v509 = vld [vmem:[#allocation3 + $0x108] sm:$0xff]
        %v510 = vld [vmem:[#allocation3 + $0x110] sm:$0xff]
        %v511 = vld [vmem:[#allocation3 + $0x118] sm:$0xff]
        %v512 = vld [vmem:[#allocation3 + $0x120] sm:$0xff]
        %v513 = vld [vmem:[#allocation3 + $0x128] sm:$0xff]
        %v514 = vld [vmem:[#allocation3 + $0x130] sm:$0xff]
        %v515 = vld [vmem:[#allocation3 + $0x138] sm:$0xff]
        %v516 = vld [vmem:[#allocation3 + $0x140] sm:$0xff]
        %v517 = vld [vmem:[#allocation3 + $0x148] sm:$0xff]
        %v518 = vld [vmem:[#allocation3 + $0x150] sm:$0xff]
        %v519 = vld [vmem:[#allocation3 + $0x158] sm:$0xff]
        %v520 = vld [vmem:[#allocation3 + $0x160] sm:$0xff]
        %v521 = vld [vmem:[#allocation3 + $0x168] sm:$0xff]
        %v522 = vld [vmem:[#allocation3 + $0x170] sm:$0xff]
        %v523 = vld [vmem:[#allocation3 + $0x178] sm:$0xff]
        %v524 = vld [vmem:[#allocation3 + $0x180] sm:$0xff]
        %v525 = vld [vmem:[#allocation3 + $0x188] sm:$0xff]
        %v526 = vld [vmem:[#allocation3 + $0x190] sm:$0xff]
        %v527 = vld [vmem:[#allocation3 + $0x198] sm:$0xff]
        %v528 = vld [vmem:[#allocation3 + $0x1a0] sm:$0xff]
        %v529 = vld [vmem:[#allocation3 + $0x1a8] sm:$0xff]
        %v530 = vld [vmem:[#allocation3 + $0x1b0] sm:$0xff]
        %v531 = vld [vmem:[#allocation3 + $0x1b8] sm:$0xff]
        %v532 = vld [vmem:[#allocation3 + $0x1c0] sm:$0xff]
        %v533 = vld [vmem:[#allocation3 + $0x1c8] sm:$0xff]
        %v534 = vld [vmem:[#allocation3 + $0x1d0] sm:$0xff]
        %v535 = vld [vmem:[#allocation3 + $0x1d8] sm:$0xff]
        %v536 = vld [vmem:[#allocation3 + $0x1e0] sm:$0xff]
        %v537 = vld [vmem:[#allocation3 + $0x1e8] sm:$0xff]
        %v538 = vld [vmem:[#allocation3 + $0x1f0] sm:$0xff]
        %v539 = vld [vmem:[#allocation3 + $0x1f8] sm:$0xff]
        %v540 = vld [vmem:[%s230] sm:$0xff]
        %v541 = vld [vmem:[%s230 + $0x40] sm:$0xff]
        %v542 = vld [vmem:[%s230 + $0x80] sm:$0xff]
        %v543 = vld [vmem:[%s230 + $0xc0] sm:$0xff]
        %v544 = vld [vmem:[%s230 + $0x100] sm:$0xff]
        %v545 = vld [vmem:[%s230 + $0x140] sm:$0xff]
        %v546 = vld [vmem:[%s230 + $0x180] sm:$0xff]
        %v547 = vld [vmem:[%s230 + $0x1c0] sm:$0xff]
        %v548 = vld [vmem:[%s230 + $0x200] sm:$0xff]
        %v549 = vld [vmem:[%s230 + $0x240] sm:$0xff]
        %v550 = vld [vmem:[%s230 + $0x280] sm:$0xff]
        %v551 = vld [vmem:[%s230 + $0x2c0] sm:$0xff]
        %v552 = vld [vmem:[%s230 + $0x300] sm:$0xff]
        %v553 = vld [vmem:[%s230 + $0x340] sm:$0xff]
        %v554 = vld [vmem:[%s230 + $0x380] sm:$0xff]
        %v555 = vld [vmem:[%s230 + $0x3c0] sm:$0xff]
        %v556 = vld [vmem:[%s230 + $0x400] sm:$0xff]
        %v557 = vld [vmem:[%s230 + $0x440] sm:$0xff]
        %v558 = vld [vmem:[%s230 + $0x480] sm:$0xff]
        %v559 = vld [vmem:[%s230 + $0x4c0] sm:$0xff]
        %v560 = vld [vmem:[%s230 + $0x500] sm:$0xff]
        %v561 = vld [vmem:[%s230 + $0x540] sm:$0xff]
        %v562 = vld [vmem:[%s230 + $0x580] sm:$0xff]
        %v563 = vld [vmem:[%s230 + $0x5c0] sm:$0xff]
        %v564 = vld [vmem:[%s230 + $0x600] sm:$0xff]
        %v565 = vld [vmem:[%s230 + $0x640] sm:$0xff]
        %v566 = vld [vmem:[%s230 + $0x680] sm:$0xff]
        %v567 = vld [vmem:[%s230 + $0x6c0] sm:$0xff]
        %v568 = vld [vmem:[%s230 + $0x700] sm:$0xff]
        %v569 = vld [vmem:[%s230 + $0x740] sm:$0xff]
        %v570 = vld [vmem:[%s230 + $0x780] sm:$0xff]
        %v571 = vld [vmem:[%s230 + $0x7c0] sm:$0xff]
        %v572 = vld [vmem:[%s230 + $0x800] sm:$0xff]
        %v573 = vld [vmem:[%s230 + $0x840] sm:$0xff]
        %v574 = vld [vmem:[%s230 + $0x880] sm:$0xff]
        %v575 = vld [vmem:[%s230 + $0x8c0] sm:$0xff]
        %v576 = vld [vmem:[%s230 + $0x900] sm:$0xff]
        %v577 = vld [vmem:[%s230 + $0x940] sm:$0xff]
        %v578 = vld [vmem:[%s230 + $0x980] sm:$0xff]
        %v579 = vld [vmem:[%s230 + $0x9c0] sm:$0xff]
        %v580 = vld [vmem:[%s230 + $0xa00] sm:$0xff]
        %v581 = vld [vmem:[%s230 + $0xa40] sm:$0xff]
        %v582 = vld [vmem:[%s230 + $0xa80] sm:$0xff]
        %v583 = vld [vmem:[%s230 + $0xac0] sm:$0xff]
        %v584 = vld [vmem:[%s230 + $0xb00] sm:$0xff]
        %v585 = vld [vmem:[%s230 + $0xb40] sm:$0xff]
        %v586 = vld [vmem:[%s230 + $0xb80] sm:$0xff]
        %v587 = vld [vmem:[%s230 + $0xbc0] sm:$0xff]
        %v588 = vld [vmem:[%s230 + $0xc00] sm:$0xff]
        %v589 = vld [vmem:[%s230 + $0xc40] sm:$0xff]
        %v590 = vld [vmem:[%s230 + $0xc80] sm:$0xff]
        %v591 = vld [vmem:[%s230 + $0xcc0] sm:$0xff]
        %v592 = vld [vmem:[%s230 + $0xd00] sm:$0xff]
        %v593 = vld [vmem:[%s230 + $0xd40] sm:$0xff]
        %v594 = vld [vmem:[%s230 + $0xd80] sm:$0xff]
        %v595 = vld [vmem:[%s230 + $0xdc0] sm:$0xff]
        %v596 = vld [vmem:[%s230 + $0xe00] sm:$0xff]
        %v597 = vld [vmem:[%s230 + $0xe40] sm:$0xff]
        %v598 = vld [vmem:[%s230 + $0xe80] sm:$0xff]
        %v599 = vld [vmem:[%s230 + $0xec0] sm:$0xff]
        %v600 = vld [vmem:[%s230 + $0xf00] sm:$0xff]
        %v601 = vld [vmem:[%s230 + $0xf40] sm:$0xff]
        %v602 = vld [vmem:[%s230 + $0xf80] sm:$0xff]
        %v603 = vld [vmem:[%s230 + $0xfc0] sm:$0xff]
        %v604 = vadd.f32 %v412, %v540
        %v605 = vadd.f32 %v413, %v541
        %v606 = vadd.f32 %v414, %v542
        %v607 = vadd.f32 %v415, %v543
        %v608 = vadd.f32 %v416, %v544
        %v609 = vadd.f32 %v417, %v545
        %v610 = vadd.f32 %v418, %v546
        %v611 = vadd.f32 %v419, %v547
        %v612 = vadd.f32 %v420, %v548
        %v613 = vadd.f32 %v421, %v549
        %v614 = vadd.f32 %v422, %v550
        %v615 = vadd.f32 %v423, %v551
        %v616 = vadd.f32 %v424, %v552
        %v617 = vadd.f32 %v425, %v553
        %v618 = vadd.f32 %v426, %v554
        %v619 = vadd.f32 %v427, %v555
        %v620 = vadd.f32 %v428, %v556
        %v621 = vadd.f32 %v429, %v557
        %v622 = vadd.f32 %v430, %v558
        %v623 = vadd.f32 %v431, %v559
        %v624 = vadd.f32 %v432, %v560
        %v625 = vadd.f32 %v433, %v561
        %v626 = vadd.f32 %v434, %v562
        %v627 = vadd.f32 %v435, %v563
        %v628 = vadd.f32 %v436, %v564
        %v629 = vadd.f32 %v437, %v565
        %v630 = vadd.f32 %v438, %v566
        %v631 = vadd.f32 %v439, %v567
        %v632 = vadd.f32 %v440, %v568
        %v633 = vadd.f32 %v441, %v569
        %v634 = vadd.f32 %v442, %v570
        %v635 = vadd.f32 %v443, %v571
        %v636 = vadd.f32 %v444, %v572
        %v637 = vadd.f32 %v445, %v573
        %v638 = vadd.f32 %v446, %v574
        %v639 = vadd.f32 %v447, %v575
        %v640 = vadd.f32 %v448, %v576
        %v641 = vadd.f32 %v449, %v577
        %v642 = vadd.f32 %v450, %v578
        %v643 = vadd.f32 %v451, %v579
        %v644 = vadd.f32 %v452, %v580
        %v645 = vadd.f32 %v453, %v581
        %v646 = vadd.f32 %v454, %v582
        %v647 = vadd.f32 %v455, %v583
        %v648 = vadd.f32 %v456, %v584
        %v649 = vadd.f32 %v457, %v585
        %v650 = vadd.f32 %v458, %v586
        %v651 = vadd.f32 %v459, %v587
        %v652 = vadd.f32 %v460, %v588
        %v653 = vadd.f32 %v461, %v589
        %v654 = vadd.f32 %v462, %v590
        %v655 = vadd.f32 %v463, %v591
        %v656 = vadd.f32 %v464, %v592
        %v657 = vadd.f32 %v465, %v593
        %v658 = vadd.f32 %v466, %v594
        %v659 = vadd.f32 %v467, %v595
        %v660 = vadd.f32 %v468, %v596
        %v661 = vadd.f32 %v469, %v597
        %v662 = vadd.f32 %v470, %v598
        %v663 = vadd.f32 %v471, %v599
        %v664 = vadd.f32 %v472, %v600
        %v665 = vadd.f32 %v473, %v601
        %v666 = vadd.f32 %v474, %v602
        %v667 = vadd.f32 %v475, %v603
        %v668 = vmax.f32 %v476, %v540
        %v669 = vmax.f32 %v477, %v541
        %v670 = vmax.f32 %v478, %v542
        %v671 = vmax.f32 %v479, %v543
        %v672 = vmax.f32 %v480, %v544
        %v673 = vmax.f32 %v481, %v545
        %v674 = vmax.f32 %v482, %v546
        %v675 = vmax.f32 %v483, %v547
        %v676 = vmax.f32 %v484, %v548
        %v677 = vmax.f32 %v485, %v549
        %v678 = vmax.f32 %v486, %v550
        %v679 = vmax.f32 %v487, %v551
        %v680 = vmax.f32 %v488, %v552
        %v681 = vmax.f32 %v489, %v553
        %v682 = vmax.f32 %v490, %v554
        %v683 = vmax.f32 %v491, %v555
        %v684 = vmax.f32 %v492, %v556
        %v685 = vmax.f32 %v493, %v557
        %v686 = vmax.f32 %v494, %v558
        %v687 = vmax.f32 %v495, %v559
        %v688 = vmax.f32 %v496, %v560
        %v689 = vmax.f32 %v497, %v561
        %v690 = vmax.f32 %v498, %v562
        %v691 = vmax.f32 %v499, %v563
        %v692 = vmax.f32 %v500, %v564
        %v693 = vmax.f32 %v501, %v565
        %v694 = vmax.f32 %v502, %v566
        %v695 = vmax.f32 %v503, %v567
        %v696 = vmax.f32 %v504, %v568
        %v697 = vmax.f32 %v505, %v569
        %v698 = vmax.f32 %v506, %v570
        %v699 = vmax.f32 %v507, %v571
        %v700 = vmax.f32 %v508, %v572
        %v701 = vmax.f32 %v509, %v573
        %v702 = vmax.f32 %v510, %v574
        %v703 = vmax.f32 %v511, %v575
        %v704 = vmax.f32 %v512, %v576
        %v705 = vmax.f32 %v513, %v577
        %v706 = vmax.f32 %v514, %v578
        %v707 = vmax.f32 %v515, %v579
        %v708 = vmax.f32 %v516, %v580
        %v709 = vmax.f32 %v517, %v581
        %v710 = vmax.f32 %v518, %v582
        %v711 = vmax.f32 %v519, %v583
        %v712 = vmax.f32 %v520, %v584
        %v713 = vmax.f32 %v521, %v585
        %v714 = vmax.f32 %v522, %v586
        %v715 = vmax.f32 %v523, %v587
        %v716 = vmax.f32 %v524, %v588
        %v717 = vmax.f32 %v525, %v589
        %v718 = vmax.f32 %v526, %v590
        %v719 = vmax.f32 %v527, %v591
        %v720 = vmax.f32 %v528, %v592
        %v721 = vmax.f32 %v529, %v593
        %v722 = vmax.f32 %v530, %v594
        %v723 = vmax.f32 %v531, %v595
        %v724 = vmax.f32 %v532, %v596
        %v725 = vmax.f32 %v533, %v597
        %v726 = vmax.f32 %v534, %v598
        %v727 = vmax.f32 %v535, %v599
        %v728 = vmax.f32 %v536, %v600
        %v729 = vmax.f32 %v537, %v601
        %v730 = vmax.f32 %v538, %v602
        %v731 = vmax.f32 %v539, %v603
        %v732 = vld [vmem:[%s230 + $0x8] sm:$0xff]
        %v733 = vld [vmem:[%s230 + $0x48] sm:$0xff]
        %v734 = vld [vmem:[%s230 + $0x88] sm:$0xff]
        %v735 = vld [vmem:[%s230 + $0xc8] sm:$0xff]
        %v736 = vld [vmem:[%s230 + $0x108] sm:$0xff]
        %v737 = vld [vmem:[%s230 + $0x148] sm:$0xff]
        %v738 = vld [vmem:[%s230 + $0x188] sm:$0xff]
        %v739 = vld [vmem:[%s230 + $0x1c8] sm:$0xff]
        %v740 = vld [vmem:[%s230 + $0x208] sm:$0xff]
        %v741 = vld [vmem:[%s230 + $0x248] sm:$0xff]
        %v742 = vld [vmem:[%s230 + $0x288] sm:$0xff]
        %v743 = vld [vmem:[%s230 + $0x2c8] sm:$0xff]
        %v744 = vld [vmem:[%s230 + $0x308] sm:$0xff]
        %v745 = vld [vmem:[%s230 + $0x348] sm:$0xff]
        %v746 = vld [vmem:[%s230 + $0x388] sm:$0xff]
        %v747 = vld [vmem:[%s230 + $0x3c8] sm:$0xff]
        %v748 = vld [vmem:[%s230 + $0x408] sm:$0xff]
        %v749 = vld [vmem:[%s230 + $0x448] sm:$0xff]
        %v750 = vld [vmem:[%s230 + $0x488] sm:$0xff]
        %v751 = vld [vmem:[%s230 + $0x4c8] sm:$0xff]
        %v752 = vld [vmem:[%s230 + $0x508] sm:$0xff]
        %v753 = vld [vmem:[%s230 + $0x548] sm:$0xff]
        %v754 = vld [vmem:[%s230 + $0x588] sm:$0xff]
        %v755 = vld [vmem:[%s230 + $0x5c8] sm:$0xff]
        %v756 = vld [vmem:[%s230 + $0x608] sm:$0xff]
        %v757 = vld [vmem:[%s230 + $0x648] sm:$0xff]
        %v758 = vld [vmem:[%s230 + $0x688] sm:$0xff]
        %v759 = vld [vmem:[%s230 + $0x6c8] sm:$0xff]
        %v760 = vld [vmem:[%s230 + $0x708] sm:$0xff]
        %v761 = vld [vmem:[%s230 + $0x748] sm:$0xff]
        %v762 = vld [vmem:[%s230 + $0x788] sm:$0xff]
        %v763 = vld [vmem:[%s230 + $0x7c8] sm:$0xff]
        %v764 = vld [vmem:[%s230 + $0x808] sm:$0xff]
        %v765 = vld [vmem:[%s230 + $0x848] sm:$0xff]
        %v766 = vld [vmem:[%s230 + $0x888] sm:$0xff]
        %v767 = vld [vmem:[%s230 + $0x8c8] sm:$0xff]
        %v768 = vld [vmem:[%s230 + $0x908] sm:$0xff]
        %v769 = vld [vmem:[%s230 + $0x948] sm:$0xff]
        %v770 = vld [vmem:[%s230 + $0x988] sm:$0xff]
        %v771 = vld [vmem:[%s230 + $0x9c8] sm:$0xff]
        %v772 = vld [vmem:[%s230 + $0xa08] sm:$0xff]
        %v773 = vld [vmem:[%s230 + $0xa48] sm:$0xff]
        %v774 = vld [vmem:[%s230 + $0xa88] sm:$0xff]
        %v775 = vld [vmem:[%s230 + $0xac8] sm:$0xff]
        %v776 = vld [vmem:[%s230 + $0xb08] sm:$0xff]
        %v777 = vld [vmem:[%s230 + $0xb48] sm:$0xff]
        %v778 = vld [vmem:[%s230 + $0xb88] sm:$0xff]
        %v779 = vld [vmem:[%s230 + $0xbc8] sm:$0xff]
        %v780 = vld [vmem:[%s230 + $0xc08] sm:$0xff]
        %v781 = vld [vmem:[%s230 + $0xc48] sm:$0xff]
        %v782 = vld [vmem:[%s230 + $0xc88] sm:$0xff]
        %v783 = vld [vmem:[%s230 + $0xcc8] sm:$0xff]
        %v784 = vld [vmem:[%s230 + $0xd08] sm:$0xff]
        %v785 = vld [vmem:[%s230 + $0xd48] sm:$0xff]
        %v786 = vld [vmem:[%s230 + $0xd88] sm:$0xff]
        %v787 = vld [vmem:[%s230 + $0xdc8] sm:$0xff]
        %v788 = vld [vmem:[%s230 + $0xe08] sm:$0xff]
        %v789 = vld [vmem:[%s230 + $0xe48] sm:$0xff]
        %v790 = vld [vmem:[%s230 + $0xe88] sm:$0xff]
        %v791 = vld [vmem:[%s230 + $0xec8] sm:$0xff]
        %v792 = vld [vmem:[%s230 + $0xf08] sm:$0xff]
        %v793 = vld [vmem:[%s230 + $0xf48] sm:$0xff]
        %v794 = vld [vmem:[%s230 + $0xf88] sm:$0xff]
        %v795 = vld [vmem:[%s230 + $0xfc8] sm:$0xff]
        %v796 = vadd.f32 %v604, %v732
        %v797 = vadd.f32 %v605, %v733
        %v798 = vadd.f32 %v606, %v734
        %v799 = vadd.f32 %v607, %v735
        %v800 = vadd.f32 %v608, %v736
        %v801 = vadd.f32 %v609, %v737
        %v802 = vadd.f32 %v610, %v738
        %v803 = vadd.f32 %v611, %v739
        %v804 = vadd.f32 %v612, %v740
        %v805 = vadd.f32 %v613, %v741
        %v806 = vadd.f32 %v614, %v742
        %v807 = vadd.f32 %v615, %v743
        %v808 = vadd.f32 %v616, %v744
        %v809 = vadd.f32 %v617, %v745
        %v810 = vadd.f32 %v618, %v746
        %v811 = vadd.f32 %v619, %v747
        %v812 = vadd.f32 %v620, %v748
        %v813 = vadd.f32 %v621, %v749
        %v814 = vadd.f32 %v622, %v750
        %v815 = vadd.f32 %v623, %v751
        %v816 = vadd.f32 %v624, %v752
        %v817 = vadd.f32 %v625, %v753
        %v818 = vadd.f32 %v626, %v754
        %v819 = vadd.f32 %v627, %v755
        %v820 = vadd.f32 %v628, %v756
        %v821 = vadd.f32 %v629, %v757
        %v822 = vadd.f32 %v630, %v758
        %v823 = vadd.f32 %v631, %v759
        %v824 = vadd.f32 %v632, %v760
        %v825 = vadd.f32 %v633, %v761
        %v826 = vadd.f32 %v634, %v762
        %v827 = vadd.f32 %v635, %v763
        %v828 = vadd.f32 %v636, %v764
        %v829 = vadd.f32 %v637, %v765
        %v830 = vadd.f32 %v638, %v766
        %v831 = vadd.f32 %v639, %v767
        %v832 = vadd.f32 %v640, %v768
        %v833 = vadd.f32 %v641, %v769
        %v834 = vadd.f32 %v642, %v770
        %v835 = vadd.f32 %v643, %v771
        %v836 = vadd.f32 %v644, %v772
        %v837 = vadd.f32 %v645, %v773
        %v838 = vadd.f32 %v646, %v774
        %v839 = vadd.f32 %v647, %v775
        %v840 = vadd.f32 %v648, %v776
        %v841 = vadd.f32 %v649, %v777
        %v842 = vadd.f32 %v650, %v778
        %v843 = vadd.f32 %v651, %v779
        %v844 = vadd.f32 %v652, %v780
        %v845 = vadd.f32 %v653, %v781
        %v846 = vadd.f32 %v654, %v782
        %v847 = vadd.f32 %v655, %v783
        %v848 = vadd.f32 %v656, %v784
        %v849 = vadd.f32 %v657, %v785
        %v850 = vadd.f32 %v658, %v786
        %v851 = vadd.f32 %v659, %v787
        %v852 = vadd.f32 %v660, %v788
        %v853 = vadd.f32 %v661, %v789
        %v854 = vadd.f32 %v662, %v790
        %v855 = vadd.f32 %v663, %v791
        %v856 = vadd.f32 %v664, %v792
        %v857 = vadd.f32 %v665, %v793
        %v858 = vadd.f32 %v666, %v794
        %v859 = vadd.f32 %v667, %v795
        %v860 = vmax.f32 %v668, %v732
        %v861 = vmax.f32 %v669, %v733
        %v862 = vmax.f32 %v670, %v734
        %v863 = vmax.f32 %v671, %v735
        %v864 = vmax.f32 %v672, %v736
        %v865 = vmax.f32 %v673, %v737
        %v866 = vmax.f32 %v674, %v738
        %v867 = vmax.f32 %v675, %v739
        %v868 = vmax.f32 %v676, %v740
        %v869 = vmax.f32 %v677, %v741
        %v870 = vmax.f32 %v678, %v742
        %v871 = vmax.f32 %v679, %v743
        %v872 = vmax.f32 %v680, %v744
        %v873 = vmax.f32 %v681, %v745
        %v874 = vmax.f32 %v682, %v746
        %v875 = vmax.f32 %v683, %v747
        %v876 = vmax.f32 %v684, %v748
        %v877 = vmax.f32 %v685, %v749
        %v878 = vmax.f32 %v686, %v750
        %v879 = vmax.f32 %v687, %v751
        %v880 = vmax.f32 %v688, %v752
        %v881 = vmax.f32 %v689, %v753
        %v882 = vmax.f32 %v690, %v754
        %v883 = vmax.f32 %v691, %v755
        %v884 = vmax.f32 %v692, %v756
        %v885 = vmax.f32 %v693, %v757
        %v886 = vmax.f32 %v694, %v758
        %v887 = vmax.f32 %v695, %v759
        %v888 = vmax.f32 %v696, %v760
        %v889 = vmax.f32 %v697, %v761
        %v890 = vmax.f32 %v698, %v762
        %v891 = vmax.f32 %v699, %v763
        %v892 = vmax.f32 %v700, %v764
        %v893 = vmax.f32 %v701, %v765
        %v894 = vmax.f32 %v702, %v766
        %v895 = vmax.f32 %v703, %v767
        %v896 = vmax.f32 %v704, %v768
        %v897 = vmax.f32 %v705, %v769
        %v898 = vmax.f32 %v706, %v770
        %v899 = vmax.f32 %v707, %v771
        %v900 = vmax.f32 %v708, %v772
        %v901 = vmax.f32 %v709, %v773
        %v902 = vmax.f32 %v710, %v774
        %v903 = vmax.f32 %v711, %v775
        %v904 = vmax.f32 %v712, %v776
        %v905 = vmax.f32 %v713, %v777
        %v906 = vmax.f32 %v714, %v778
        %v907 = vmax.f32 %v715, %v779
        %v908 = vmax.f32 %v716, %v780
        %v909 = vmax.f32 %v717, %v781
        %v910 = vmax.f32 %v718, %v782
        %v911 = vmax.f32 %v719, %v783
        %v912 = vmax.f32 %v720, %v784
        %v913 = vmax.f32 %v721, %v785
        %v914 = vmax.f32 %v722, %v786
        %v915 = vmax.f32 %v723, %v787
        %v916 = vmax.f32 %v724, %v788
        %v917 = vmax.f32 %v725, %v789
        %v918 = vmax.f32 %v726, %v790
        %v919 = vmax.f32 %v727, %v791
        %v920 = vmax.f32 %v728, %v792
        %v921 = vmax.f32 %v729, %v793
        %v922 = vmax.f32 %v730, %v794
        %v923 = vmax.f32 %v731, %v795
        %v924 = vld [vmem:[%s230 + $0x10] sm:$0xff]
        %v925 = vld [vmem:[%s230 + $0x50] sm:$0xff]
        %v926 = vld [vmem:[%s230 + $0x90] sm:$0xff]
        %v927 = vld [vmem:[%s230 + $0xd0] sm:$0xff]
        %v928 = vld [vmem:[%s230 + $0x110] sm:$0xff]
        %v929 = vld [vmem:[%s230 + $0x150] sm:$0xff]
        %v930 = vld [vmem:[%s230 + $0x190] sm:$0xff]
        %v931 = vld [vmem:[%s230 + $0x1d0] sm:$0xff]
        %v932 = vld [vmem:[%s230 + $0x210] sm:$0xff]
        %v933 = vld [vmem:[%s230 + $0x250] sm:$0xff]
        %v934 = vld [vmem:[%s230 + $0x290] sm:$0xff]
        %v935 = vld [vmem:[%s230 + $0x2d0] sm:$0xff]
        %v936 = vld [vmem:[%s230 + $0x310] sm:$0xff]
        %v937 = vld [vmem:[%s230 + $0x350] sm:$0xff]
        %v938 = vld [vmem:[%s230 + $0x390] sm:$0xff]
        %v939 = vld [vmem:[%s230 + $0x3d0] sm:$0xff]
        %v940 = vld [vmem:[%s230 + $0x410] sm:$0xff]
        %v941 = vld [vmem:[%s230 + $0x450] sm:$0xff]
        %v942 = vld [vmem:[%s230 + $0x490] sm:$0xff]
        %v943 = vld [vmem:[%s230 + $0x4d0] sm:$0xff]
        %v944 = vld [vmem:[%s230 + $0x510] sm:$0xff]
        %v945 = vld [vmem:[%s230 + $0x550] sm:$0xff]
        %v946 = vld [vmem:[%s230 + $0x590] sm:$0xff]
        %v947 = vld [vmem:[%s230 + $0x5d0] sm:$0xff]
        %v948 = vld [vmem:[%s230 + $0x610] sm:$0xff]
        %v949 = vld [vmem:[%s230 + $0x650] sm:$0xff]
        %v950 = vld [vmem:[%s230 + $0x690] sm:$0xff]
        %v951 = vld [vmem:[%s230 + $0x6d0] sm:$0xff]
        %v952 = vld [vmem:[%s230 + $0x710] sm:$0xff]
        %v953 = vld [vmem:[%s230 + $0x750] sm:$0xff]
        %v954 = vld [vmem:[%s230 + $0x790] sm:$0xff]
        %v955 = vld [vmem:[%s230 + $0x7d0] sm:$0xff]
        %v956 = vld [vmem:[%s230 + $0x810] sm:$0xff]
        %v957 = vld [vmem:[%s230 + $0x850] sm:$0xff]
        %v958 = vld [vmem:[%s230 + $0x890] sm:$0xff]
        %v959 = vld [vmem:[%s230 + $0x8d0] sm:$0xff]
        %v960 = vld [vmem:[%s230 + $0x910] sm:$0xff]
        %v961 = vld [vmem:[%s230 + $0x950] sm:$0xff]
        %v962 = vld [vmem:[%s230 + $0x990] sm:$0xff]
        %v963 = vld [vmem:[%s230 + $0x9d0] sm:$0xff]
        %v964 = vld [vmem:[%s230 + $0xa10] sm:$0xff]
        %v965 = vld [vmem:[%s230 + $0xa50] sm:$0xff]
        %v966 = vld [vmem:[%s230 + $0xa90] sm:$0xff]
        %v967 = vld [vmem:[%s230 + $0xad0] sm:$0xff]
        %v968 = vld [vmem:[%s230 + $0xb10] sm:$0xff]
        %v969 = vld [vmem:[%s230 + $0xb50] sm:$0xff]
        %v970 = vld [vmem:[%s230 + $0xb90] sm:$0xff]
        %v971 = vld [vmem:[%s230 + $0xbd0] sm:$0xff]
        %v972 = vld [vmem:[%s230 + $0xc10] sm:$0xff]
        %v973 = vld [vmem:[%s230 + $0xc50] sm:$0xff]
        %v974 = vld [vmem:[%s230 + $0xc90] sm:$0xff]
        %v975 = vld [vmem:[%s230 + $0xcd0] sm:$0xff]
        %v976 = vld [vmem:[%s230 + $0xd10] sm:$0xff]
        %v977 = vld [vmem:[%s230 + $0xd50] sm:$0xff]
        %v978 = vld [vmem:[%s230 + $0xd90] sm:$0xff]
        %v979 = vld [vmem:[%s230 + $0xdd0] sm:$0xff]
        %v980 = vld [vmem:[%s230 + $0xe10] sm:$0xff]
        %v981 = vld [vmem:[%s230 + $0xe50] sm:$0xff]
        %v982 = vld [vmem:[%s230 + $0xe90] sm:$0xff]
        %v983 = vld [vmem:[%s230 + $0xed0] sm:$0xff]
        %v984 = vld [vmem:[%s230 + $0xf10] sm:$0xff]
        %v985 = vld [vmem:[%s230 + $0xf50] sm:$0xff]
        %v986 = vld [vmem:[%s230 + $0xf90] sm:$0xff]
        %v987 = vld [vmem:[%s230 + $0xfd0] sm:$0xff]
        %v988 = vadd.f32 %v796, %v924
        %v989 = vadd.f32 %v797, %v925
        %v990 = vadd.f32 %v798, %v926
        %v991 = vadd.f32 %v799, %v927
        %v992 = vadd.f32 %v800, %v928
        %v993 = vadd.f32 %v801, %v929
        %v994 = vadd.f32 %v802, %v930
        %v995 = vadd.f32 %v803, %v931
        %v996 = vadd.f32 %v804, %v932
        %v997 = vadd.f32 %v805, %v933
        %v998 = vadd.f32 %v806, %v934
        %v999 = vadd.f32 %v807, %v935
        %v1000 = vadd.f32 %v808, %v936
        %v1001 = vadd.f32 %v809, %v937
        %v1002 = vadd.f32 %v810, %v938
        %v1003 = vadd.f32 %v811, %v939
        %v1004 = vadd.f32 %v812, %v940
        %v1005 = vadd.f32 %v813, %v941
        %v1006 = vadd.f32 %v814, %v942
        %v1007 = vadd.f32 %v815, %v943
        %v1008 = vadd.f32 %v816, %v944
        %v1009 = vadd.f32 %v817, %v945
        %v1010 = vadd.f32 %v818, %v946
        %v1011 = vadd.f32 %v819, %v947
        %v1012 = vadd.f32 %v820, %v948
        %v1013 = vadd.f32 %v821, %v949
        %v1014 = vadd.f32 %v822, %v950
        %v1015 = vadd.f32 %v823, %v951
        %v1016 = vadd.f32 %v824, %v952
        %v1017 = vadd.f32 %v825, %v953
        %v1018 = vadd.f32 %v826, %v954
        %v1019 = vadd.f32 %v827, %v955
        %v1020 = vadd.f32 %v828, %v956
        %v1021 = vadd.f32 %v829, %v957
        %v1022 = vadd.f32 %v830, %v958
        %v1023 = vadd.f32 %v831, %v959
        %v1024 = vadd.f32 %v832, %v960
        %v1025 = vadd.f32 %v833, %v961
        %v1026 = vadd.f32 %v834, %v962
        %v1027 = vadd.f32 %v835, %v963
        %v1028 = vadd.f32 %v836, %v964
        %v1029 = vadd.f32 %v837, %v965
        %v1030 = vadd.f32 %v838, %v966
        %v1031 = vadd.f32 %v839, %v967
        %v1032 = vadd.f32 %v840, %v968
        %v1033 = vadd.f32 %v841, %v969
        %v1034 = vadd.f32 %v842, %v970
        %v1035 = vadd.f32 %v843, %v971
        %v1036 = vadd.f32 %v844, %v972
        %v1037 = vadd.f32 %v845, %v973
        %v1038 = vadd.f32 %v846, %v974
        %v1039 = vadd.f32 %v847, %v975
        %v1040 = vadd.f32 %v848, %v976
        %v1041 = vadd.f32 %v849, %v977
        %v1042 = vadd.f32 %v850, %v978
        %v1043 = vadd.f32 %v851, %v979
        %v1044 = vadd.f32 %v852, %v980
        %v1045 = vadd.f32 %v853, %v981
        %v1046 = vadd.f32 %v854, %v982
        %v1047 = vadd.f32 %v855, %v983
        %v1048 = vadd.f32 %v856, %v984
        %v1049 = vadd.f32 %v857, %v985
        %v1050 = vadd.f32 %v858, %v986
        %v1051 = vadd.f32 %v859, %v987
        %v1052 = vmax.f32 %v860, %v924
        %v1053 = vmax.f32 %v861, %v925
        %v1054 = vmax.f32 %v862, %v926
        %v1055 = vmax.f32 %v863, %v927
        %v1056 = vmax.f32 %v864, %v928
        %v1057 = vmax.f32 %v865, %v929
        %v1058 = vmax.f32 %v866, %v930
        %v1059 = vmax.f32 %v867, %v931
        %v1060 = vmax.f32 %v868, %v932
        %v1061 = vmax.f32 %v869, %v933
        %v1062 = vmax.f32 %v870, %v934
        %v1063 = vmax.f32 %v871, %v935
        %v1064 = vmax.f32 %v872, %v936
        %v1065 = vmax.f32 %v873, %v937
        %v1066 = vmax.f32 %v874, %v938
        %v1067 = vmax.f32 %v875, %v939
        %v1068 = vmax.f32 %v876, %v940
        %v1069 = vmax.f32 %v877, %v941
        %v1070 = vmax.f32 %v878, %v942
        %v1071 = vmax.f32 %v879, %v943
        %v1072 = vmax.f32 %v880, %v944
        %v1073 = vmax.f32 %v881, %v945
        %v1074 = vmax.f32 %v882, %v946
        %v1075 = vmax.f32 %v883, %v947
        %v1076 = vmax.f32 %v884, %v948
        %v1077 = vmax.f32 %v885, %v949
        %v1078 = vmax.f32 %v886, %v950
        %v1079 = vmax.f32 %v887, %v951
        %v1080 = vmax.f32 %v888, %v952
        %v1081 = vmax.f32 %v889, %v953
        %v1082 = vmax.f32 %v890, %v954
        %v1083 = vmax.f32 %v891, %v955
        %v1084 = vmax.f32 %v892, %v956
        %v1085 = vmax.f32 %v893, %v957
        %v1086 = vmax.f32 %v894, %v958
        %v1087 = vmax.f32 %v895, %v959
        %v1088 = vmax.f32 %v896, %v960
        %v1089 = vmax.f32 %v897, %v961
        %v1090 = vmax.f32 %v898, %v962
        %v1091 = vmax.f32 %v899, %v963
        %v1092 = vmax.f32 %v900, %v964
        %v1093 = vmax.f32 %v901, %v965
        %v1094 = vmax.f32 %v902, %v966
        %v1095 = vmax.f32 %v903, %v967
        %v1096 = vmax.f32 %v904, %v968
        %v1097 = vmax.f32 %v905, %v969
        %v1098 = vmax.f32 %v906, %v970
        %v1099 = vmax.f32 %v907, %v971
        %v1100 = vmax.f32 %v908, %v972
        %v1101 = vmax.f32 %v909, %v973
        %v1102 = vmax.f32 %v910, %v974
        %v1103 = vmax.f32 %v911, %v975
        %v1104 = vmax.f32 %v912, %v976
        %v1105 = vmax.f32 %v913, %v977
        %v1106 = vmax.f32 %v914, %v978
        %v1107 = vmax.f32 %v915, %v979
        %v1108 = vmax.f32 %v916, %v980
        %v1109 = vmax.f32 %v917, %v981
        %v1110 = vmax.f32 %v918, %v982
        %v1111 = vmax.f32 %v919, %v983
        %v1112 = vmax.f32 %v920, %v984
        %v1113 = vmax.f32 %v921, %v985
        %v1114 = vmax.f32 %v922, %v986
        %v1115 = vmax.f32 %v923, %v987
        %v1116 = vld [vmem:[%s230 + $0x18] sm:$0xff]
        %v1117 = vld [vmem:[%s230 + $0x58] sm:$0xff]
        %v1118 = vld [vmem:[%s230 + $0x98] sm:$0xff]
        %v1119 = vld [vmem:[%s230 + $0xd8] sm:$0xff]
        %v1120 = vld [vmem:[%s230 + $0x118] sm:$0xff]
        %v1121 = vld [vmem:[%s230 + $0x158] sm:$0xff]
        %v1122 = vld [vmem:[%s230 + $0x198] sm:$0xff]
        %v1123 = vld [vmem:[%s230 + $0x1d8] sm:$0xff]
        %v1124 = vld [vmem:[%s230 + $0x218] sm:$0xff]
        %v1125 = vld [vmem:[%s230 + $0x258] sm:$0xff]
        %v1126 = vld [vmem:[%s230 + $0x298] sm:$0xff]
        %v1127 = vld [vmem:[%s230 + $0x2d8] sm:$0xff]
        %v1128 = vld [vmem:[%s230 + $0x318] sm:$0xff]
        %v1129 = vld [vmem:[%s230 + $0x358] sm:$0xff]
        %v1130 = vld [vmem:[%s230 + $0x398] sm:$0xff]
        %v1131 = vld [vmem:[%s230 + $0x3d8] sm:$0xff]
        %v1132 = vld [vmem:[%s230 + $0x418] sm:$0xff]
        %v1133 = vld [vmem:[%s230 + $0x458] sm:$0xff]
        %v1134 = vld [vmem:[%s230 + $0x498] sm:$0xff]
        %v1135 = vld [vmem:[%s230 + $0x4d8] sm:$0xff]
        %v1136 = vld [vmem:[%s230 + $0x518] sm:$0xff]
        %v1137 = vld [vmem:[%s230 + $0x558] sm:$0xff]
        %v1138 = vld [vmem:[%s230 + $0x598] sm:$0xff]
        %v1139 = vld [vmem:[%s230 + $0x5d8] sm:$0xff]
        %v1140 = vld [vmem:[%s230 + $0x618] sm:$0xff]
        %v1141 = vld [vmem:[%s230 + $0x658] sm:$0xff]
        %v1142 = vld [vmem:[%s230 + $0x698] sm:$0xff]
        %v1143 = vld [vmem:[%s230 + $0x6d8] sm:$0xff]
        %v1144 = vld [vmem:[%s230 + $0x718] sm:$0xff]
        %v1145 = vld [vmem:[%s230 + $0x758] sm:$0xff]
        %v1146 = vld [vmem:[%s230 + $0x798] sm:$0xff]
        %v1147 = vld [vmem:[%s230 + $0x7d8] sm:$0xff]
        %v1148 = vld [vmem:[%s230 + $0x818] sm:$0xff]
        %v1149 = vld [vmem:[%s230 + $0x858] sm:$0xff]
        %v1150 = vld [vmem:[%s230 + $0x898] sm:$0xff]
        %v1151 = vld [vmem:[%s230 + $0x8d8] sm:$0xff]
        %v1152 = vld [vmem:[%s230 + $0x918] sm:$0xff]
        %v1153 = vld [vmem:[%s230 + $0x958] sm:$0xff]
        %v1154 = vld [vmem:[%s230 + $0x998] sm:$0xff]
        %v1155 = vld [vmem:[%s230 + $0x9d8] sm:$0xff]
        %v1156 = vld [vmem:[%s230 + $0xa18] sm:$0xff]
        %v1157 = vld [vmem:[%s230 + $0xa58] sm:$0xff]
        %v1158 = vld [vmem:[%s230 + $0xa98] sm:$0xff]
        %v1159 = vld [vmem:[%s230 + $0xad8] sm:$0xff]
        %v1160 = vld [vmem:[%s230 + $0xb18] sm:$0xff]
        %v1161 = vld [vmem:[%s230 + $0xb58] sm:$0xff]
        %v1162 = vld [vmem:[%s230 + $0xb98] sm:$0xff]
        %v1163 = vld [vmem:[%s230 + $0xbd8] sm:$0xff]
        %v1164 = vld [vmem:[%s230 + $0xc18] sm:$0xff]
        %v1165 = vld [vmem:[%s230 + $0xc58] sm:$0xff]
        %v1166 = vld [vmem:[%s230 + $0xc98] sm:$0xff]
        %v1167 = vld [vmem:[%s230 + $0xcd8] sm:$0xff]
        %v1168 = vld [vmem:[%s230 + $0xd18] sm:$0xff]
        %v1169 = vld [vmem:[%s230 + $0xd58] sm:$0xff]
        %v1170 = vld [vmem:[%s230 + $0xd98] sm:$0xff]
        %v1171 = vld [vmem:[%s230 + $0xdd8] sm:$0xff]
        %v1172 = vld [vmem:[%s230 + $0xe18] sm:$0xff]
        %v1173 = vld [vmem:[%s230 + $0xe58] sm:$0xff]
        %v1174 = vld [vmem:[%s230 + $0xe98] sm:$0xff]
        %v1175 = vld [vmem:[%s230 + $0xed8] sm:$0xff]
        %v1176 = vld [vmem:[%s230 + $0xf18] sm:$0xff]
        %v1177 = vld [vmem:[%s230 + $0xf58] sm:$0xff]
        %v1178 = vld [vmem:[%s230 + $0xf98] sm:$0xff]
        %v1179 = vld [vmem:[%s230 + $0xfd8] sm:$0xff]
        %v1180 = vadd.f32 %v988, %v1116
        %v1181 = vadd.f32 %v989, %v1117
        %v1182 = vadd.f32 %v990, %v1118
        %v1183 = vadd.f32 %v991, %v1119
        %v1184 = vadd.f32 %v992, %v1120
        %v1185 = vadd.f32 %v993, %v1121
        %v1186 = vadd.f32 %v994, %v1122
        %v1187 = vadd.f32 %v995, %v1123
        %v1188 = vadd.f32 %v996, %v1124
        %v1189 = vadd.f32 %v997, %v1125
        %v1190 = vadd.f32 %v998, %v1126
        %v1191 = vadd.f32 %v999, %v1127
        %v1192 = vadd.f32 %v1000, %v1128
        %v1193 = vadd.f32 %v1001, %v1129
        %v1194 = vadd.f32 %v1002, %v1130
        %v1195 = vadd.f32 %v1003, %v1131
        %v1196 = vadd.f32 %v1004, %v1132
        %v1197 = vadd.f32 %v1005, %v1133
        %v1198 = vadd.f32 %v1006, %v1134
        %v1199 = vadd.f32 %v1007, %v1135
        %v1200 = vadd.f32 %v1008, %v1136
        %v1201 = vadd.f32 %v1009, %v1137
        %v1202 = vadd.f32 %v1010, %v1138
        %v1203 = vadd.f32 %v1011, %v1139
        %v1204 = vadd.f32 %v1012, %v1140
        %v1205 = vadd.f32 %v1013, %v1141
        %v1206 = vadd.f32 %v1014, %v1142
        %v1207 = vadd.f32 %v1015, %v1143
        %v1208 = vadd.f32 %v1016, %v1144
        %v1209 = vadd.f32 %v1017, %v1145
        %v1210 = vadd.f32 %v1018, %v1146
        %v1211 = vadd.f32 %v1019, %v1147
        %v1212 = vadd.f32 %v1020, %v1148
        %v1213 = vadd.f32 %v1021, %v1149
        %v1214 = vadd.f32 %v1022, %v1150
        %v1215 = vadd.f32 %v1023, %v1151
        %v1216 = vadd.f32 %v1024, %v1152
        %v1217 = vadd.f32 %v1025, %v1153
        %v1218 = vadd.f32 %v1026, %v1154
        %v1219 = vadd.f32 %v1027, %v1155
        %v1220 = vadd.f32 %v1028, %v1156
        %v1221 = vadd.f32 %v1029, %v1157
        %v1222 = vadd.f32 %v1030, %v1158
        %v1223 = vadd.f32 %v1031, %v1159
        %v1224 = vadd.f32 %v1032, %v1160
        %v1225 = vadd.f32 %v1033, %v1161
        %v1226 = vadd.f32 %v1034, %v1162
        %v1227 = vadd.f32 %v1035, %v1163
        %v1228 = vadd.f32 %v1036, %v1164
        %v1229 = vadd.f32 %v1037, %v1165
        %v1230 = vadd.f32 %v1038, %v1166
        %v1231 = vadd.f32 %v1039, %v1167
        %v1232 = vadd.f32 %v1040, %v1168
        %v1233 = vadd.f32 %v1041, %v1169
        %v1234 = vadd.f32 %v1042, %v1170
        %v1235 = vadd.f32 %v1043, %v1171
        %v1236 = vadd.f32 %v1044, %v1172
        %v1237 = vadd.f32 %v1045, %v1173
        %v1238 = vadd.f32 %v1046, %v1174
        %v1239 = vadd.f32 %v1047, %v1175
        %v1240 = vadd.f32 %v1048, %v1176
        %v1241 = vadd.f32 %v1049, %v1177
        %v1242 = vadd.f32 %v1050, %v1178
        %v1243 = vadd.f32 %v1051, %v1179
        %v1244 = vmax.f32 %v1052, %v1116
        %v1245 = vmax.f32 %v1053, %v1117
        %v1246 = vmax.f32 %v1054, %v1118
        %v1247 = vmax.f32 %v1055, %v1119
        %v1248 = vmax.f32 %v1056, %v1120
        %v1249 = vmax.f32 %v1057, %v1121
        %v1250 = vmax.f32 %v1058, %v1122
        %v1251 = vmax.f32 %v1059, %v1123
        %v1252 = vmax.f32 %v1060, %v1124
        %v1253 = vmax.f32 %v1061, %v1125
        %v1254 = vmax.f32 %v1062, %v1126
        %v1255 = vmax.f32 %v1063, %v1127
        %v1256 = vmax.f32 %v1064, %v1128
        %v1257 = vmax.f32 %v1065, %v1129
        %v1258 = vmax.f32 %v1066, %v1130
        %v1259 = vmax.f32 %v1067, %v1131
        %v1260 = vmax.f32 %v1068, %v1132
        %v1261 = vmax.f32 %v1069, %v1133
        %v1262 = vmax.f32 %v1070, %v1134
        %v1263 = vmax.f32 %v1071, %v1135
        %v1264 = vmax.f32 %v1072, %v1136
        %v1265 = vmax.f32 %v1073, %v1137
        %v1266 = vmax.f32 %v1074, %v1138
        %v1267 = vmax.f32 %v1075, %v1139
        %v1268 = vmax.f32 %v1076, %v1140
        %v1269 = vmax.f32 %v1077, %v1141
        %v1270 = vmax.f32 %v1078, %v1142
        %v1271 = vmax.f32 %v1079, %v1143
        %v1272 = vmax.f32 %v1080, %v1144
        %v1273 = vmax.f32 %v1081, %v1145
        %v1274 = vmax.f32 %v1082, %v1146
        %v1275 = vmax.f32 %v1083, %v1147
        %v1276 = vmax.f32 %v1084, %v1148
        %v1277 = vmax.f32 %v1085, %v1149
        %v1278 = vmax.f32 %v1086, %v1150
        %v1279 = vmax.f32 %v1087, %v1151
        %v1280 = vmax.f32 %v1088, %v1152
        %v1281 = vmax.f32 %v1089, %v1153
        %v1282 = vmax.f32 %v1090, %v1154
        %v1283 = vmax.f32 %v1091, %v1155
        %v1284 = vmax.f32 %v1092, %v1156
        %v1285 = vmax.f32 %v1093, %v1157
        %v1286 = vmax.f32 %v1094, %v1158
        %v1287 = vmax.f32 %v1095, %v1159
        %v1288 = vmax.f32 %v1096, %v1160
        %v1289 = vmax.f32 %v1097, %v1161
        %v1290 = vmax.f32 %v1098, %v1162
        %v1291 = vmax.f32 %v1099, %v1163
        %v1292 = vmax.f32 %v1100, %v1164
        %v1293 = vmax.f32 %v1101, %v1165
        %v1294 = vmax.f32 %v1102, %v1166
        %v1295 = vmax.f32 %v1103, %v1167
        %v1296 = vmax.f32 %v1104, %v1168
        %v1297 = vmax.f32 %v1105, %v1169
        %v1298 = vmax.f32 %v1106, %v1170
        %v1299 = vmax.f32 %v1107, %v1171
        %v1300 = vmax.f32 %v1108, %v1172
        %v1301 = vmax.f32 %v1109, %v1173
        %v1302 = vmax.f32 %v1110, %v1174
        %v1303 = vmax.f32 %v1111, %v1175
        %v1304 = vmax.f32 %v1112, %v1176
        %v1305 = vmax.f32 %v1113, %v1177
        %v1306 = vmax.f32 %v1114, %v1178
        %v1307 = vmax.f32 %v1115, %v1179
        %v1308 = vld [vmem:[%s230 + $0x20] sm:$0xff]
        %v1309 = vld [vmem:[%s230 + $0x60] sm:$0xff]
        %v1310 = vld [vmem:[%s230 + $0xa0] sm:$0xff]
        %v1311 = vld [vmem:[%s230 + $0xe0] sm:$0xff]
        %v1312 = vld [vmem:[%s230 + $0x120] sm:$0xff]
        %v1313 = vld [vmem:[%s230 + $0x160] sm:$0xff]
        %v1314 = vld [vmem:[%s230 + $0x1a0] sm:$0xff]
        %v1315 = vld [vmem:[%s230 + $0x1e0] sm:$0xff]
        %v1316 = vld [vmem:[%s230 + $0x220] sm:$0xff]
        %v1317 = vld [vmem:[%s230 + $0x260] sm:$0xff]
        %v1318 = vld [vmem:[%s230 + $0x2a0] sm:$0xff]
        %v1319 = vld [vmem:[%s230 + $0x2e0] sm:$0xff]
        %v1320 = vld [vmem:[%s230 + $0x320] sm:$0xff]
        %v1321 = vld [vmem:[%s230 + $0x360] sm:$0xff]
        %v1322 = vld [vmem:[%s230 + $0x3a0] sm:$0xff]
        %v1323 = vld [vmem:[%s230 + $0x3e0] sm:$0xff]
        %v1324 = vld [vmem:[%s230 + $0x420] sm:$0xff]
        %v1325 = vld [vmem:[%s230 + $0x460] sm:$0xff]
        %v1326 = vld [vmem:[%s230 + $0x4a0] sm:$0xff]
        %v1327 = vld [vmem:[%s230 + $0x4e0] sm:$0xff]
        %v1328 = vld [vmem:[%s230 + $0x520] sm:$0xff]
        %v1329 = vld [vmem:[%s230 + $0x560] sm:$0xff]
        %v1330 = vld [vmem:[%s230 + $0x5a0] sm:$0xff]
        %v1331 = vld [vmem:[%s230 + $0x5e0] sm:$0xff]
        %v1332 = vld [vmem:[%s230 + $0x620] sm:$0xff]
        %v1333 = vld [vmem:[%s230 + $0x660] sm:$0xff]
        %v1334 = vld [vmem:[%s230 + $0x6a0] sm:$0xff]
        %v1335 = vld [vmem:[%s230 + $0x6e0] sm:$0xff]
        %v1336 = vld [vmem:[%s230 + $0x720] sm:$0xff]
        %v1337 = vld [vmem:[%s230 + $0x760] sm:$0xff]
        %v1338 = vld [vmem:[%s230 + $0x7a0] sm:$0xff]
        %v1339 = vld [vmem:[%s230 + $0x7e0] sm:$0xff]
        %v1340 = vld [vmem:[%s230 + $0x820] sm:$0xff]
        %v1341 = vld [vmem:[%s230 + $0x860] sm:$0xff]
        %v1342 = vld [vmem:[%s230 + $0x8a0] sm:$0xff]
        %v1343 = vld [vmem:[%s230 + $0x8e0] sm:$0xff]
        %v1344 = vld [vmem:[%s230 + $0x920] sm:$0xff]
        %v1345 = vld [vmem:[%s230 + $0x960] sm:$0xff]
        %v1346 = vld [vmem:[%s230 + $0x9a0] sm:$0xff]
        %v1347 = vld [vmem:[%s230 + $0x9e0] sm:$0xff]
        %v1348 = vld [vmem:[%s230 + $0xa20] sm:$0xff]
        %v1349 = vld [vmem:[%s230 + $0xa60] sm:$0xff]
        %v1350 = vld [vmem:[%s230 + $0xaa0] sm:$0xff]
        %v1351 = vld [vmem:[%s230 + $0xae0] sm:$0xff]
        %v1352 = vld [vmem:[%s230 + $0xb20] sm:$0xff]
        %v1353 = vld [vmem:[%s230 + $0xb60] sm:$0xff]
        %v1354 = vld [vmem:[%s230 + $0xba0] sm:$0xff]
        %v1355 = vld [vmem:[%s230 + $0xbe0] sm:$0xff]
        %v1356 = vld [vmem:[%s230 + $0xc20] sm:$0xff]
        %v1357 = vld [vmem:[%s230 + $0xc60] sm:$0xff]
        %v1358 = vld [vmem:[%s230 + $0xca0] sm:$0xff]
        %v1359 = vld [vmem:[%s230 + $0xce0] sm:$0xff]
        %v1360 = vld [vmem:[%s230 + $0xd20] sm:$0xff]
        %v1361 = vld [vmem:[%s230 + $0xd60] sm:$0xff]
        %v1362 = vld [vmem:[%s230 + $0xda0] sm:$0xff]
        %v1363 = vld [vmem:[%s230 + $0xde0] sm:$0xff]
        %v1364 = vld [vmem:[%s230 + $0xe20] sm:$0xff]
        %v1365 = vld [vmem:[%s230 + $0xe60] sm:$0xff]
        %v1366 = vld [vmem:[%s230 + $0xea0] sm:$0xff]
        %v1367 = vld [vmem:[%s230 + $0xee0] sm:$0xff]
        %v1368 = vld [vmem:[%s230 + $0xf20] sm:$0xff]
        %v1369 = vld [vmem:[%s230 + $0xf60] sm:$0xff]
        %v1370 = vld [vmem:[%s230 + $0xfa0] sm:$0xff]
        %v1371 = vld [vmem:[%s230 + $0xfe0] sm:$0xff]
        %v1372 = vadd.f32 %v1180, %v1308
        %v1373 = vadd.f32 %v1181, %v1309
        %v1374 = vadd.f32 %v1182, %v1310
        %v1375 = vadd.f32 %v1183, %v1311
        %v1376 = vadd.f32 %v1184, %v1312
        %v1377 = vadd.f32 %v1185, %v1313
        %v1378 = vadd.f32 %v1186, %v1314
        %v1379 = vadd.f32 %v1187, %v1315
        %v1380 = vadd.f32 %v1188, %v1316
        %v1381 = vadd.f32 %v1189, %v1317
        %v1382 = vadd.f32 %v1190, %v1318
        %v1383 = vadd.f32 %v1191, %v1319
        %v1384 = vadd.f32 %v1192, %v1320
        %v1385 = vadd.f32 %v1193, %v1321
        %v1386 = vadd.f32 %v1194, %v1322
        %v1387 = vadd.f32 %v1195, %v1323
        %v1388 = vadd.f32 %v1196, %v1324
        %v1389 = vadd.f32 %v1197, %v1325
        %v1390 = vadd.f32 %v1198, %v1326
        %v1391 = vadd.f32 %v1199, %v1327
        %v1392 = vadd.f32 %v1200, %v1328
        %v1393 = vadd.f32 %v1201, %v1329
        %v1394 = vadd.f32 %v1202, %v1330
        %v1395 = vadd.f32 %v1203, %v1331
        %v1396 = vadd.f32 %v1204, %v1332
        %v1397 = vadd.f32 %v1205, %v1333
        %v1398 = vadd.f32 %v1206, %v1334
        %v1399 = vadd.f32 %v1207, %v1335
        %v1400 = vadd.f32 %v1208, %v1336
        %v1401 = vadd.f32 %v1209, %v1337
        %v1402 = vadd.f32 %v1210, %v1338
        %v1403 = vadd.f32 %v1211, %v1339
        %v1404 = vadd.f32 %v1212, %v1340
        %v1405 = vadd.f32 %v1213, %v1341
        %v1406 = vadd.f32 %v1214, %v1342
        %v1407 = vadd.f32 %v1215, %v1343
        %v1408 = vadd.f32 %v1216, %v1344
        %v1409 = vadd.f32 %v1217, %v1345
        %v1410 = vadd.f32 %v1218, %v1346
        %v1411 = vadd.f32 %v1219, %v1347
        %v1412 = vadd.f32 %v1220, %v1348
        %v1413 = vadd.f32 %v1221, %v1349
        %v1414 = vadd.f32 %v1222, %v1350
        %v1415 = vadd.f32 %v1223, %v1351
        %v1416 = vadd.f32 %v1224, %v1352
        %v1417 = vadd.f32 %v1225, %v1353
        %v1418 = vadd.f32 %v1226, %v1354
        %v1419 = vadd.f32 %v1227, %v1355
        %v1420 = vadd.f32 %v1228, %v1356
        %v1421 = vadd.f32 %v1229, %v1357
        %v1422 = vadd.f32 %v1230, %v1358
        %v1423 = vadd.f32 %v1231, %v1359
        %v1424 = vadd.f32 %v1232, %v1360
        %v1425 = vadd.f32 %v1233, %v1361
        %v1426 = vadd.f32 %v1234, %v1362
        %v1427 = vadd.f32 %v1235, %v1363
        %v1428 = vadd.f32 %v1236, %v1364
        %v1429 = vadd.f32 %v1237, %v1365
        %v1430 = vadd.f32 %v1238, %v1366
        %v1431 = vadd.f32 %v1239, %v1367
        %v1432 = vadd.f32 %v1240, %v1368
        %v1433 = vadd.f32 %v1241, %v1369
        %v1434 = vadd.f32 %v1242, %v1370
        %v1435 = vadd.f32 %v1243, %v1371
        %v1436 = vmax.f32 %v1244, %v1308
        %v1437 = vmax.f32 %v1245, %v1309
        %v1438 = vmax.f32 %v1246, %v1310
        %v1439 = vmax.f32 %v1247, %v1311
        %v1440 = vmax.f32 %v1248, %v1312
        %v1441 = vmax.f32 %v1249, %v1313
        %v1442 = vmax.f32 %v1250, %v1314
        %v1443 = vmax.f32 %v1251, %v1315
        %v1444 = vmax.f32 %v1252, %v1316
        %v1445 = vmax.f32 %v1253, %v1317
        %v1446 = vmax.f32 %v1254, %v1318
        %v1447 = vmax.f32 %v1255, %v1319
        %v1448 = vmax.f32 %v1256, %v1320
        %v1449 = vmax.f32 %v1257, %v1321
        %v1450 = vmax.f32 %v1258, %v1322
        %v1451 = vmax.f32 %v1259, %v1323
        %v1452 = vmax.f32 %v1260, %v1324
        %v1453 = vmax.f32 %v1261, %v1325
        %v1454 = vmax.f32 %v1262, %v1326
        %v1455 = vmax.f32 %v1263, %v1327
        %v1456 = vmax.f32 %v1264, %v1328
        %v1457 = vmax.f32 %v1265, %v1329
        %v1458 = vmax.f32 %v1266, %v1330
        %v1459 = vmax.f32 %v1267, %v1331
        %v1460 = vmax.f32 %v1268, %v1332
        %v1461 = vmax.f32 %v1269, %v1333
        %v1462 = vmax.f32 %v1270, %v1334
        %v1463 = vmax.f32 %v1271, %v1335
        %v1464 = vmax.f32 %v1272, %v1336
        %v1465 = vmax.f32 %v1273, %v1337
        %v1466 = vmax.f32 %v1274, %v1338
        %v1467 = vmax.f32 %v1275, %v1339
        %v1468 = vmax.f32 %v1276, %v1340
        %v1469 = vmax.f32 %v1277, %v1341
        %v1470 = vmax.f32 %v1278, %v1342
        %v1471 = vmax.f32 %v1279, %v1343
        %v1472 = vmax.f32 %v1280, %v1344
        %v1473 = vmax.f32 %v1281, %v1345
        %v1474 = vmax.f32 %v1282, %v1346
        %v1475 = vmax.f32 %v1283, %v1347
        %v1476 = vmax.f32 %v1284, %v1348
        %v1477 = vmax.f32 %v1285, %v1349
        %v1478 = vmax.f32 %v1286, %v1350
        %v1479 = vmax.f32 %v1287, %v1351
        %v1480 = vmax.f32 %v1288, %v1352
        %v1481 = vmax.f32 %v1289, %v1353
        %v1482 = vmax.f32 %v1290, %v1354
        %v1483 = vmax.f32 %v1291, %v1355
        %v1484 = vmax.f32 %v1292, %v1356
        %v1485 = vmax.f32 %v1293, %v1357
        %v1486 = vmax.f32 %v1294, %v1358
        %v1487 = vmax.f32 %v1295, %v1359
        %v1488 = vmax.f32 %v1296, %v1360
        %v1489 = vmax.f32 %v1297, %v1361
        %v1490 = vmax.f32 %v1298, %v1362
        %v1491 = vmax.f32 %v1299, %v1363
        %v1492 = vmax.f32 %v1300, %v1364
        %v1493 = vmax.f32 %v1301, %v1365
        %v1494 = vmax.f32 %v1302, %v1366
        %v1495 = vmax.f32 %v1303, %v1367
        %v1496 = vmax.f32 %v1304, %v1368
        %v1497 = vmax.f32 %v1305, %v1369
        %v1498 = vmax.f32 %v1306, %v1370
        %v1499 = vmax.f32 %v1307, %v1371
        %v1500 = vld [vmem:[%s230 + $0x28] sm:$0xff]
        %v1501 = vld [vmem:[%s230 + $0x68] sm:$0xff]
        %v1502 = vld [vmem:[%s230 + $0xa8] sm:$0xff]
        %v1503 = vld [vmem:[%s230 + $0xe8] sm:$0xff]
        %v1504 = vld [vmem:[%s230 + $0x128] sm:$0xff]
        %v1505 = vld [vmem:[%s230 + $0x168] sm:$0xff]
        %v1506 = vld [vmem:[%s230 + $0x1a8] sm:$0xff]
        %v1507 = vld [vmem:[%s230 + $0x1e8] sm:$0xff]
        %v1508 = vld [vmem:[%s230 + $0x228] sm:$0xff]
        %v1509 = vld [vmem:[%s230 + $0x268] sm:$0xff]
        %v1510 = vld [vmem:[%s230 + $0x2a8] sm:$0xff]
        %v1511 = vld [vmem:[%s230 + $0x2e8] sm:$0xff]
        %v1512 = vld [vmem:[%s230 + $0x328] sm:$0xff]
        %v1513 = vld [vmem:[%s230 + $0x368] sm:$0xff]
        %v1514 = vld [vmem:[%s230 + $0x3a8] sm:$0xff]
        %v1515 = vld [vmem:[%s230 + $0x3e8] sm:$0xff]
        %v1516 = vld [vmem:[%s230 + $0x428] sm:$0xff]
        %v1517 = vld [vmem:[%s230 + $0x468] sm:$0xff]
        %v1518 = vld [vmem:[%s230 + $0x4a8] sm:$0xff]
        %v1519 = vld [vmem:[%s230 + $0x4e8] sm:$0xff]
        %v1520 = vld [vmem:[%s230 + $0x528] sm:$0xff]
        %v1521 = vld [vmem:[%s230 + $0x568] sm:$0xff]
        %v1522 = vld [vmem:[%s230 + $0x5a8] sm:$0xff]
        %v1523 = vld [vmem:[%s230 + $0x5e8] sm:$0xff]
        %v1524 = vld [vmem:[%s230 + $0x628] sm:$0xff]
        %v1525 = vld [vmem:[%s230 + $0x668] sm:$0xff]
        %v1526 = vld [vmem:[%s230 + $0x6a8] sm:$0xff]
        %v1527 = vld [vmem:[%s230 + $0x6e8] sm:$0xff]
        %v1528 = vld [vmem:[%s230 + $0x728] sm:$0xff]
        %v1529 = vld [vmem:[%s230 + $0x768] sm:$0xff]
        %v1530 = vld [vmem:[%s230 + $0x7a8] sm:$0xff]
        %v1531 = vld [vmem:[%s230 + $0x7e8] sm:$0xff]
        %v1532 = vld [vmem:[%s230 + $0x828] sm:$0xff]
        %v1533 = vld [vmem:[%s230 + $0x868] sm:$0xff]
        %v1534 = vld [vmem:[%s230 + $0x8a8] sm:$0xff]
        %v1535 = vld [vmem:[%s230 + $0x8e8] sm:$0xff]
        %v1536 = vld [vmem:[%s230 + $0x928] sm:$0xff]
        %v1537 = vld [vmem:[%s230 + $0x968] sm:$0xff]
        %v1538 = vld [vmem:[%s230 + $0x9a8] sm:$0xff]
        %v1539 = vld [vmem:[%s230 + $0x9e8] sm:$0xff]
        %v1540 = vld [vmem:[%s230 + $0xa28] sm:$0xff]
        %v1541 = vld [vmem:[%s230 + $0xa68] sm:$0xff]
        %v1542 = vld [vmem:[%s230 + $0xaa8] sm:$0xff]
        %v1543 = vld [vmem:[%s230 + $0xae8] sm:$0xff]
        %v1544 = vld [vmem:[%s230 + $0xb28] sm:$0xff]
        %v1545 = vld [vmem:[%s230 + $0xb68] sm:$0xff]
        %v1546 = vld [vmem:[%s230 + $0xba8] sm:$0xff]
        %v1547 = vld [vmem:[%s230 + $0xbe8] sm:$0xff]
        %v1548 = vld [vmem:[%s230 + $0xc28] sm:$0xff]
        %v1549 = vld [vmem:[%s230 + $0xc68] sm:$0xff]
        %v1550 = vld [vmem:[%s230 + $0xca8] sm:$0xff]
        %v1551 = vld [vmem:[%s230 + $0xce8] sm:$0xff]
        %v1552 = vld [vmem:[%s230 + $0xd28] sm:$0xff]
        %v1553 = vld [vmem:[%s230 + $0xd68] sm:$0xff]
        %v1554 = vld [vmem:[%s230 + $0xda8] sm:$0xff]
        %v1555 = vld [vmem:[%s230 + $0xde8] sm:$0xff]
        %v1556 = vld [vmem:[%s230 + $0xe28] sm:$0xff]
        %v1557 = vld [vmem:[%s230 + $0xe68] sm:$0xff]
        %v1558 = vld [vmem:[%s230 + $0xea8] sm:$0xff]
        %v1559 = vld [vmem:[%s230 + $0xee8] sm:$0xff]
        %v1560 = vld [vmem:[%s230 + $0xf28] sm:$0xff]
        %v1561 = vld [vmem:[%s230 + $0xf68] sm:$0xff]
        %v1562 = vld [vmem:[%s230 + $0xfa8] sm:$0xff]
        %v1563 = vld [vmem:[%s230 + $0xfe8] sm:$0xff]
        %v1564 = vadd.f32 %v1372, %v1500
        %v1565 = vadd.f32 %v1373, %v1501
        %v1566 = vadd.f32 %v1374, %v1502
        %v1567 = vadd.f32 %v1375, %v1503
        %v1568 = vadd.f32 %v1376, %v1504
        %v1569 = vadd.f32 %v1377, %v1505
        %v1570 = vadd.f32 %v1378, %v1506
        %v1571 = vadd.f32 %v1379, %v1507
        %v1572 = vadd.f32 %v1380, %v1508
        %v1573 = vadd.f32 %v1381, %v1509
        %v1574 = vadd.f32 %v1382, %v1510
        %v1575 = vadd.f32 %v1383, %v1511
        %v1576 = vadd.f32 %v1384, %v1512
        %v1577 = vadd.f32 %v1385, %v1513
        %v1578 = vadd.f32 %v1386, %v1514
        %v1579 = vadd.f32 %v1387, %v1515
        %v1580 = vadd.f32 %v1388, %v1516
        %v1581 = vadd.f32 %v1389, %v1517
        %v1582 = vadd.f32 %v1390, %v1518
        %v1583 = vadd.f32 %v1391, %v1519
        %v1584 = vadd.f32 %v1392, %v1520
        %v1585 = vadd.f32 %v1393, %v1521
        %v1586 = vadd.f32 %v1394, %v1522
        %v1587 = vadd.f32 %v1395, %v1523
        %v1588 = vadd.f32 %v1396, %v1524
        %v1589 = vadd.f32 %v1397, %v1525
        %v1590 = vadd.f32 %v1398, %v1526
        %v1591 = vadd.f32 %v1399, %v1527
        %v1592 = vadd.f32 %v1400, %v1528
        %v1593 = vadd.f32 %v1401, %v1529
        %v1594 = vadd.f32 %v1402, %v1530
        %v1595 = vadd.f32 %v1403, %v1531
        %v1596 = vadd.f32 %v1404, %v1532
        %v1597 = vadd.f32 %v1405, %v1533
        %v1598 = vadd.f32 %v1406, %v1534
        %v1599 = vadd.f32 %v1407, %v1535
        %v1600 = vadd.f32 %v1408, %v1536
        %v1601 = vadd.f32 %v1409, %v1537
        %v1602 = vadd.f32 %v1410, %v1538
        %v1603 = vadd.f32 %v1411, %v1539
        %v1604 = vadd.f32 %v1412, %v1540
        %v1605 = vadd.f32 %v1413, %v1541
        %v1606 = vadd.f32 %v1414, %v1542
        %v1607 = vadd.f32 %v1415, %v1543
        %v1608 = vadd.f32 %v1416, %v1544
        %v1609 = vadd.f32 %v1417, %v1545
        %v1610 = vadd.f32 %v1418, %v1546
        %v1611 = vadd.f32 %v1419, %v1547
        %v1612 = vadd.f32 %v1420, %v1548
        %v1613 = vadd.f32 %v1421, %v1549
        %v1614 = vadd.f32 %v1422, %v1550
        %v1615 = vadd.f32 %v1423, %v1551
        %v1616 = vadd.f32 %v1424, %v1552
        %v1617 = vadd.f32 %v1425, %v1553
        %v1618 = vadd.f32 %v1426, %v1554
        %v1619 = vadd.f32 %v1427, %v1555
        %v1620 = vadd.f32 %v1428, %v1556
        %v1621 = vadd.f32 %v1429, %v1557
        %v1622 = vadd.f32 %v1430, %v1558
        %v1623 = vadd.f32 %v1431, %v1559
        %v1624 = vadd.f32 %v1432, %v1560
        %v1625 = vadd.f32 %v1433, %v1561
        %v1626 = vadd.f32 %v1434, %v1562
        %v1627 = vadd.f32 %v1435, %v1563
        %v1628 = vmax.f32 %v1436, %v1500
        %v1629 = vmax.f32 %v1437, %v1501
        %v1630 = vmax.f32 %v1438, %v1502
        %v1631 = vmax.f32 %v1439, %v1503
        %v1632 = vmax.f32 %v1440, %v1504
        %v1633 = vmax.f32 %v1441, %v1505
        %v1634 = vmax.f32 %v1442, %v1506
        %v1635 = vmax.f32 %v1443, %v1507
        %v1636 = vmax.f32 %v1444, %v1508
        %v1637 = vmax.f32 %v1445, %v1509
        %v1638 = vmax.f32 %v1446, %v1510
        %v1639 = vmax.f32 %v1447, %v1511
        %v1640 = vmax.f32 %v1448, %v1512
        %v1641 = vmax.f32 %v1449, %v1513
        %v1642 = vmax.f32 %v1450, %v1514
        %v1643 = vmax.f32 %v1451, %v1515
        %v1644 = vmax.f32 %v1452, %v1516
        %v1645 = vmax.f32 %v1453, %v1517
        %v1646 = vmax.f32 %v1454, %v1518
        %v1647 = vmax.f32 %v1455, %v1519
        %v1648 = vmax.f32 %v1456, %v1520
        %v1649 = vmax.f32 %v1457, %v1521
        %v1650 = vmax.f32 %v1458, %v1522
        %v1651 = vmax.f32 %v1459, %v1523
        %v1652 = vmax.f32 %v1460, %v1524
        %v1653 = vmax.f32 %v1461, %v1525
        %v1654 = vmax.f32 %v1462, %v1526
        %v1655 = vmax.f32 %v1463, %v1527
        %v1656 = vmax.f32 %v1464, %v1528
        %v1657 = vmax.f32 %v1465, %v1529
        %v1658 = vmax.f32 %v1466, %v1530
        %v1659 = vmax.f32 %v1467, %v1531
        %v1660 = vmax.f32 %v1468, %v1532
        %v1661 = vmax.f32 %v1469, %v1533
        %v1662 = vmax.f32 %v1470, %v1534
        %v1663 = vmax.f32 %v1471, %v1535
        %v1664 = vmax.f32 %v1472, %v1536
        %v1665 = vmax.f32 %v1473, %v1537
        %v1666 = vmax.f32 %v1474, %v1538
        %v1667 = vmax.f32 %v1475, %v1539
        %v1668 = vmax.f32 %v1476, %v1540
        %v1669 = vmax.f32 %v1477, %v1541
        %v1670 = vmax.f32 %v1478, %v1542
        %v1671 = vmax.f32 %v1479, %v1543
        %v1672 = vmax.f32 %v1480, %v1544
        %v1673 = vmax.f32 %v1481, %v1545
        %v1674 = vmax.f32 %v1482, %v1546
        %v1675 = vmax.f32 %v1483, %v1547
        %v1676 = vmax.f32 %v1484, %v1548
        %v1677 = vmax.f32 %v1485, %v1549
        %v1678 = vmax.f32 %v1486, %v1550
        %v1679 = vmax.f32 %v1487, %v1551
        %v1680 = vmax.f32 %v1488, %v1552
        %v1681 = vmax.f32 %v1489, %v1553
        %v1682 = vmax.f32 %v1490, %v1554
        %v1683 = vmax.f32 %v1491, %v1555
        %v1684 = vmax.f32 %v1492, %v1556
        %v1685 = vmax.f32 %v1493, %v1557
        %v1686 = vmax.f32 %v1494, %v1558
        %v1687 = vmax.f32 %v1495, %v1559
        %v1688 = vmax.f32 %v1496, %v1560
        %v1689 = vmax.f32 %v1497, %v1561
        %v1690 = vmax.f32 %v1498, %v1562
        %v1691 = vmax.f32 %v1499, %v1563
        %v1692 = vld [vmem:[%s230 + $0x30] sm:$0xff]
        %v1693 = vld [vmem:[%s230 + $0x70] sm:$0xff]
        %v1694 = vld [vmem:[%s230 + $0xb0] sm:$0xff]
        %v1695 = vld [vmem:[%s230 + $0xf0] sm:$0xff]
        %v1696 = vld [vmem:[%s230 + $0x130] sm:$0xff]
        %v1697 = vld [vmem:[%s230 + $0x170] sm:$0xff]
        %v1698 = vld [vmem:[%s230 + $0x1b0] sm:$0xff]
        %v1699 = vld [vmem:[%s230 + $0x1f0] sm:$0xff]
        %v1700 = vld [vmem:[%s230 + $0x230] sm:$0xff]
        %v1701 = vld [vmem:[%s230 + $0x270] sm:$0xff]
        %v1702 = vld [vmem:[%s230 + $0x2b0] sm:$0xff]
        %v1703 = vld [vmem:[%s230 + $0x2f0] sm:$0xff]
        %v1704 = vld [vmem:[%s230 + $0x330] sm:$0xff]
        %v1705 = vld [vmem:[%s230 + $0x370] sm:$0xff]
        %v1706 = vld [vmem:[%s230 + $0x3b0] sm:$0xff]
        %v1707 = vld [vmem:[%s230 + $0x3f0] sm:$0xff]
        %v1708 = vld [vmem:[%s230 + $0x430] sm:$0xff]
        %v1709 = vld [vmem:[%s230 + $0x470] sm:$0xff]
        %v1710 = vld [vmem:[%s230 + $0x4b0] sm:$0xff]
        %v1711 = vld [vmem:[%s230 + $0x4f0] sm:$0xff]
        %v1712 = vld [vmem:[%s230 + $0x530] sm:$0xff]
        %v1713 = vld [vmem:[%s230 + $0x570] sm:$0xff]
        %v1714 = vld [vmem:[%s230 + $0x5b0] sm:$0xff]
        %v1715 = vld [vmem:[%s230 + $0x5f0] sm:$0xff]
        %v1716 = vld [vmem:[%s230 + $0x630] sm:$0xff]
        %v1717 = vld [vmem:[%s230 + $0x670] sm:$0xff]
        %v1718 = vld [vmem:[%s230 + $0x6b0] sm:$0xff]
        %v1719 = vld [vmem:[%s230 + $0x6f0] sm:$0xff]
        %v1720 = vld [vmem:[%s230 + $0x730] sm:$0xff]
        %v1721 = vld [vmem:[%s230 + $0x770] sm:$0xff]
        %v1722 = vld [vmem:[%s230 + $0x7b0] sm:$0xff]
        %v1723 = vld [vmem:[%s230 + $0x7f0] sm:$0xff]
        %v1724 = vld [vmem:[%s230 + $0x830] sm:$0xff]
        %v1725 = vld [vmem:[%s230 + $0x870] sm:$0xff]
        %v1726 = vld [vmem:[%s230 + $0x8b0] sm:$0xff]
        %v1727 = vld [vmem:[%s230 + $0x8f0] sm:$0xff]
        %v1728 = vld [vmem:[%s230 + $0x930] sm:$0xff]
        %v1729 = vld [vmem:[%s230 + $0x970] sm:$0xff]
        %v1730 = vld [vmem:[%s230 + $0x9b0] sm:$0xff]
        %v1731 = vld [vmem:[%s230 + $0x9f0] sm:$0xff]
        %v1732 = vld [vmem:[%s230 + $0xa30] sm:$0xff]
        %v1733 = vld [vmem:[%s230 + $0xa70] sm:$0xff]
        %v1734 = vld [vmem:[%s230 + $0xab0] sm:$0xff]
        %v1735 = vld [vmem:[%s230 + $0xaf0] sm:$0xff]
        %v1736 = vld [vmem:[%s230 + $0xb30] sm:$0xff]
        %v1737 = vld [vmem:[%s230 + $0xb70] sm:$0xff]
        %v1738 = vld [vmem:[%s230 + $0xbb0] sm:$0xff]
        %v1739 = vld [vmem:[%s230 + $0xbf0] sm:$0xff]
        %v1740 = vld [vmem:[%s230 + $0xc30] sm:$0xff]
        %v1741 = vld [vmem:[%s230 + $0xc70] sm:$0xff]
        %v1742 = vld [vmem:[%s230 + $0xcb0] sm:$0xff]
        %v1743 = vld [vmem:[%s230 + $0xcf0] sm:$0xff]
        %v1744 = vld [vmem:[%s230 + $0xd30] sm:$0xff]
        %v1745 = vld [vmem:[%s230 + $0xd70] sm:$0xff]
        %v1746 = vld [vmem:[%s230 + $0xdb0] sm:$0xff]
        %v1747 = vld [vmem:[%s230 + $0xdf0] sm:$0xff]
        %v1748 = vld [vmem:[%s230 + $0xe30] sm:$0xff]
        %v1749 = vld [vmem:[%s230 + $0xe70] sm:$0xff]
        %v1750 = vld [vmem:[%s230 + $0xeb0] sm:$0xff]
        %v1751 = vld [vmem:[%s230 + $0xef0] sm:$0xff]
        %v1752 = vld [vmem:[%s230 + $0xf30] sm:$0xff]
        %v1753 = vld [vmem:[%s230 + $0xf70] sm:$0xff]
        %v1754 = vld [vmem:[%s230 + $0xfb0] sm:$0xff]
        %v1755 = vld [vmem:[%s230 + $0xff0] sm:$0xff]
        %v1756 = vadd.f32 %v1564, %v1692
        %v1757 = vadd.f32 %v1565, %v1693
        %v1758 = vadd.f32 %v1566, %v1694
        %v1759 = vadd.f32 %v1567, %v1695
        %v1760 = vadd.f32 %v1568, %v1696
        %v1761 = vadd.f32 %v1569, %v1697
        %v1762 = vadd.f32 %v1570, %v1698
        %v1763 = vadd.f32 %v1571, %v1699
        %v1764 = vadd.f32 %v1572, %v1700
        %v1765 = vadd.f32 %v1573, %v1701
        %v1766 = vadd.f32 %v1574, %v1702
        %v1767 = vadd.f32 %v1575, %v1703
        %v1768 = vadd.f32 %v1576, %v1704
        %v1769 = vadd.f32 %v1577, %v1705
        %v1770 = vadd.f32 %v1578, %v1706
        %v1771 = vadd.f32 %v1579, %v1707
        %v1772 = vadd.f32 %v1580, %v1708
        %v1773 = vadd.f32 %v1581, %v1709
        %v1774 = vadd.f32 %v1582, %v1710
        %v1775 = vadd.f32 %v1583, %v1711
        %v1776 = vadd.f32 %v1584, %v1712
        %v1777 = vadd.f32 %v1585, %v1713
        %v1778 = vadd.f32 %v1586, %v1714
        %v1779 = vadd.f32 %v1587, %v1715
        %v1780 = vadd.f32 %v1588, %v1716
        %v1781 = vadd.f32 %v1589, %v1717
        %v1782 = vadd.f32 %v1590, %v1718
        %v1783 = vadd.f32 %v1591, %v1719
        %v1784 = vadd.f32 %v1592, %v1720
        %v1785 = vadd.f32 %v1593, %v1721
        %v1786 = vadd.f32 %v1594, %v1722
        %v1787 = vadd.f32 %v1595, %v1723
        %v1788 = vadd.f32 %v1596, %v1724
        %v1789 = vadd.f32 %v1597, %v1725
        %v1790 = vadd.f32 %v1598, %v1726
        %v1791 = vadd.f32 %v1599, %v1727
        %v1792 = vadd.f32 %v1600, %v1728
        %v1793 = vadd.f32 %v1601, %v1729
        %v1794 = vadd.f32 %v1602, %v1730
        %v1795 = vadd.f32 %v1603, %v1731
        %v1796 = vadd.f32 %v1604, %v1732
        %v1797 = vadd.f32 %v1605, %v1733
        %v1798 = vadd.f32 %v1606, %v1734
        %v1799 = vadd.f32 %v1607, %v1735
        %v1800 = vadd.f32 %v1608, %v1736
        %v1801 = vadd.f32 %v1609, %v1737
        %v1802 = vadd.f32 %v1610, %v1738
        %v1803 = vadd.f32 %v1611, %v1739
        %v1804 = vadd.f32 %v1612, %v1740
        %v1805 = vadd.f32 %v1613, %v1741
        %v1806 = vadd.f32 %v1614, %v1742
        %v1807 = vadd.f32 %v1615, %v1743
        %v1808 = vadd.f32 %v1616, %v1744
        %v1809 = vadd.f32 %v1617, %v1745
        %v1810 = vadd.f32 %v1618, %v1746
        %v1811 = vadd.f32 %v1619, %v1747
        %v1812 = vadd.f32 %v1620, %v1748
        %v1813 = vadd.f32 %v1621, %v1749
        %v1814 = vadd.f32 %v1622, %v1750
        %v1815 = vadd.f32 %v1623, %v1751
        %v1816 = vadd.f32 %v1624, %v1752
        %v1817 = vadd.f32 %v1625, %v1753
        %v1818 = vadd.f32 %v1626, %v1754
        %v1819 = vadd.f32 %v1627, %v1755
        %v1820 = vmax.f32 %v1628, %v1692
        %v1821 = vmax.f32 %v1629, %v1693
        %v1822 = vmax.f32 %v1630, %v1694
        %v1823 = vmax.f32 %v1631, %v1695
        %v1824 = vmax.f32 %v1632, %v1696
        %v1825 = vmax.f32 %v1633, %v1697
        %v1826 = vmax.f32 %v1634, %v1698
        %v1827 = vmax.f32 %v1635, %v1699
        %v1828 = vmax.f32 %v1636, %v1700
        %v1829 = vmax.f32 %v1637, %v1701
        %v1830 = vmax.f32 %v1638, %v1702
        %v1831 = vmax.f32 %v1639, %v1703
        %v1832 = vmax.f32 %v1640, %v1704
        %v1833 = vmax.f32 %v1641, %v1705
        %v1834 = vmax.f32 %v1642, %v1706
        %v1835 = vmax.f32 %v1643, %v1707
        %v1836 = vmax.f32 %v1644, %v1708
        %v1837 = vmax.f32 %v1645, %v1709
        %v1838 = vmax.f32 %v1646, %v1710
        %v1839 = vmax.f32 %v1647, %v1711
        %v1840 = vmax.f32 %v1648, %v1712
        %v1841 = vmax.f32 %v1649, %v1713
        %v1842 = vmax.f32 %v1650, %v1714
        %v1843 = vmax.f32 %v1651, %v1715
        %v1844 = vmax.f32 %v1652, %v1716
        %v1845 = vmax.f32 %v1653, %v1717
        %v1846 = vmax.f32 %v1654, %v1718
        %v1847 = vmax.f32 %v1655, %v1719
        %v1848 = vmax.f32 %v1656, %v1720
        %v1849 = vmax.f32 %v1657, %v1721
        %v1850 = vmax.f32 %v1658, %v1722
        %v1851 = vmax.f32 %v1659, %v1723
        %v1852 = vmax.f32 %v1660, %v1724
        %v1853 = vmax.f32 %v1661, %v1725
        %v1854 = vmax.f32 %v1662, %v1726
        %v1855 = vmax.f32 %v1663, %v1727
        %v1856 = vmax.f32 %v1664, %v1728
        %v1857 = vmax.f32 %v1665, %v1729
        %v1858 = vmax.f32 %v1666, %v1730
        %v1859 = vmax.f32 %v1667, %v1731
        %v1860 = vmax.f32 %v1668, %v1732
        %v1861 = vmax.f32 %v1669, %v1733
        %v1862 = vmax.f32 %v1670, %v1734
        %v1863 = vmax.f32 %v1671, %v1735
        %v1864 = vmax.f32 %v1672, %v1736
        %v1865 = vmax.f32 %v1673, %v1737
        %v1866 = vmax.f32 %v1674, %v1738
        %v1867 = vmax.f32 %v1675, %v1739
        %v1868 = vmax.f32 %v1676, %v1740
        %v1869 = vmax.f32 %v1677, %v1741
        %v1870 = vmax.f32 %v1678, %v1742
        %v1871 = vmax.f32 %v1679, %v1743
        %v1872 = vmax.f32 %v1680, %v1744
        %v1873 = vmax.f32 %v1681, %v1745
        %v1874 = vmax.f32 %v1682, %v1746
        %v1875 = vmax.f32 %v1683, %v1747
        %v1876 = vmax.f32 %v1684, %v1748
        %v1877 = vmax.f32 %v1685, %v1749
        %v1878 = vmax.f32 %v1686, %v1750
        %v1879 = vmax.f32 %v1687, %v1751
        %v1880 = vmax.f32 %v1688, %v1752
        %v1881 = vmax.f32 %v1689, %v1753
        %v1882 = vmax.f32 %v1690, %v1754
        %v1883 = vmax.f32 %v1691, %v1755
        %v1884 = vld [vmem:[%s230 + $0x38] sm:$0xff]
        %v1885 = vld [vmem:[%s230 + $0x78] sm:$0xff]
        %v1886 = vld [vmem:[%s230 + $0xb8] sm:$0xff]
        %v1887 = vld [vmem:[%s230 + $0xf8] sm:$0xff]
        %v1888 = vld [vmem:[%s230 + $0x138] sm:$0xff]
        %v1889 = vld [vmem:[%s230 + $0x178] sm:$0xff]
        %v1890 = vld [vmem:[%s230 + $0x1b8] sm:$0xff]
        %v1891 = vld [vmem:[%s230 + $0x1f8] sm:$0xff]
        %v1892 = vld [vmem:[%s230 + $0x238] sm:$0xff]
        %v1893 = vld [vmem:[%s230 + $0x278] sm:$0xff]
        %v1894 = vld [vmem:[%s230 + $0x2b8] sm:$0xff]
        %v1895 = vld [vmem:[%s230 + $0x2f8] sm:$0xff]
        %v1896 = vld [vmem:[%s230 + $0x338] sm:$0xff]
        %v1897 = vld [vmem:[%s230 + $0x378] sm:$0xff]
        %v1898 = vld [vmem:[%s230 + $0x3b8] sm:$0xff]
        %v1899 = vld [vmem:[%s230 + $0x3f8] sm:$0xff]
        %v1900 = vld [vmem:[%s230 + $0x438] sm:$0xff]
        %v1901 = vld [vmem:[%s230 + $0x478] sm:$0xff]
        %v1902 = vld [vmem:[%s230 + $0x4b8] sm:$0xff]
        %v1903 = vld [vmem:[%s230 + $0x4f8] sm:$0xff]
        %v1904 = vld [vmem:[%s230 + $0x538] sm:$0xff]
        %v1905 = vld [vmem:[%s230 + $0x578] sm:$0xff]
        %v1906 = vld [vmem:[%s230 + $0x5b8] sm:$0xff]
        %v1907 = vld [vmem:[%s230 + $0x5f8] sm:$0xff]
        %v1908 = vld [vmem:[%s230 + $0x638] sm:$0xff]
        %v1909 = vld [vmem:[%s230 + $0x678] sm:$0xff]
        %v1910 = vld [vmem:[%s230 + $0x6b8] sm:$0xff]
        %v1911 = vld [vmem:[%s230 + $0x6f8] sm:$0xff]
        %v1912 = vld [vmem:[%s230 + $0x738] sm:$0xff]
        %v1913 = vld [vmem:[%s230 + $0x778] sm:$0xff]
        %v1914 = vld [vmem:[%s230 + $0x7b8] sm:$0xff]
        %v1915 = vld [vmem:[%s230 + $0x7f8] sm:$0xff]
        %v1916 = vld [vmem:[%s230 + $0x838] sm:$0xff]
        %v1917 = vld [vmem:[%s230 + $0x878] sm:$0xff]
        %v1918 = vld [vmem:[%s230 + $0x8b8] sm:$0xff]
        %v1919 = vld [vmem:[%s230 + $0x8f8] sm:$0xff]
        %v1920 = vld [vmem:[%s230 + $0x938] sm:$0xff]
        %v1921 = vld [vmem:[%s230 + $0x978] sm:$0xff]
        %v1922 = vld [vmem:[%s230 + $0x9b8] sm:$0xff]
        %v1923 = vld [vmem:[%s230 + $0x9f8] sm:$0xff]
        %v1924 = vld [vmem:[%s230 + $0xa38] sm:$0xff]
        %v1925 = vld [vmem:[%s230 + $0xa78] sm:$0xff]
        %v1926 = vld [vmem:[%s230 + $0xab8] sm:$0xff]
        %v1927 = vld [vmem:[%s230 + $0xaf8] sm:$0xff]
        %v1928 = vld [vmem:[%s230 + $0xb38] sm:$0xff]
        %v1929 = vld [vmem:[%s230 + $0xb78] sm:$0xff]
        %v1930 = vld [vmem:[%s230 + $0xbb8] sm:$0xff]
        %v1931 = vld [vmem:[%s230 + $0xbf8] sm:$0xff]
        %v1932 = vld [vmem:[%s230 + $0xc38] sm:$0xff]
        %v1933 = vld [vmem:[%s230 + $0xc78] sm:$0xff]
        %v1934 = vld [vmem:[%s230 + $0xcb8] sm:$0xff]
        %v1935 = vld [vmem:[%s230 + $0xcf8] sm:$0xff]
        %v1936 = vld [vmem:[%s230 + $0xd38] sm:$0xff]
        %v1937 = vld [vmem:[%s230 + $0xd78] sm:$0xff]
        %v1938 = vld [vmem:[%s230 + $0xdb8] sm:$0xff]
        %v1939 = vld [vmem:[%s230 + $0xdf8] sm:$0xff]
        %v1940 = vld [vmem:[%s230 + $0xe38] sm:$0xff]
        %v1941 = vld [vmem:[%s230 + $0xe78] sm:$0xff]
        %v1942 = vld [vmem:[%s230 + $0xeb8] sm:$0xff]
        %v1943 = vld [vmem:[%s230 + $0xef8] sm:$0xff]
        %v1944 = vld [vmem:[%s230 + $0xf38] sm:$0xff]
        %v1945 = vld [vmem:[%s230 + $0xf78] sm:$0xff]
        %v1946 = vld [vmem:[%s230 + $0xfb8] sm:$0xff]
        %v1947 = vld [vmem:[%s230 + $0xff8] sm:$0xff]
        %v1948 = vadd.f32 %v1756, %v1884
        %v1949 = vadd.f32 %v1757, %v1885
        %v1950 = vadd.f32 %v1758, %v1886
        %v1951 = vadd.f32 %v1759, %v1887
        %v1952 = vadd.f32 %v1760, %v1888
        %v1953 = vadd.f32 %v1761, %v1889
        %v1954 = vadd.f32 %v1762, %v1890
        %v1955 = vadd.f32 %v1763, %v1891
        %v1956 = vadd.f32 %v1764, %v1892
        %v1957 = vadd.f32 %v1765, %v1893
        %v1958 = vadd.f32 %v1766, %v1894
        %v1959 = vadd.f32 %v1767, %v1895
        %v1960 = vadd.f32 %v1768, %v1896
        %v1961 = vadd.f32 %v1769, %v1897
        %v1962 = vadd.f32 %v1770, %v1898
        %v1963 = vadd.f32 %v1771, %v1899
        %v1964 = vadd.f32 %v1772, %v1900
        %v1965 = vadd.f32 %v1773, %v1901
        %v1966 = vadd.f32 %v1774, %v1902
        %v1967 = vadd.f32 %v1775, %v1903
        %v1968 = vadd.f32 %v1776, %v1904
        %v1969 = vadd.f32 %v1777, %v1905
        %v1970 = vadd.f32 %v1778, %v1906
        %v1971 = vadd.f32 %v1779, %v1907
        %v1972 = vadd.f32 %v1780, %v1908
        %v1973 = vadd.f32 %v1781, %v1909
        %v1974 = vadd.f32 %v1782, %v1910
        %v1975 = vadd.f32 %v1783, %v1911
        %v1976 = vadd.f32 %v1784, %v1912
        %v1977 = vadd.f32 %v1785, %v1913
        %v1978 = vadd.f32 %v1786, %v1914
        %v1979 = vadd.f32 %v1787, %v1915
        %v1980 = vadd.f32 %v1788, %v1916
        %v1981 = vadd.f32 %v1789, %v1917
        %v1982 = vadd.f32 %v1790, %v1918
        %v1983 = vadd.f32 %v1791, %v1919
        %v1984 = vadd.f32 %v1792, %v1920
        %v1985 = vadd.f32 %v1793, %v1921
        %v1986 = vadd.f32 %v1794, %v1922
        %v1987 = vadd.f32 %v1795, %v1923
        %v1988 = vadd.f32 %v1796, %v1924
        %v1989 = vadd.f32 %v1797, %v1925
        %v1990 = vadd.f32 %v1798, %v1926
        %v1991 = vadd.f32 %v1799, %v1927
        %v1992 = vadd.f32 %v1800, %v1928
        %v1993 = vadd.f32 %v1801, %v1929
        %v1994 = vadd.f32 %v1802, %v1930
        %v1995 = vadd.f32 %v1803, %v1931
        %v1996 = vadd.f32 %v1804, %v1932
        %v1997 = vadd.f32 %v1805, %v1933
        %v1998 = vadd.f32 %v1806, %v1934
        %v1999 = vadd.f32 %v1807, %v1935
        %v2000 = vadd.f32 %v1808, %v1936
        %v2001 = vadd.f32 %v1809, %v1937
        %v2002 = vadd.f32 %v1810, %v1938
        %v2003 = vadd.f32 %v1811, %v1939
        %v2004 = vadd.f32 %v1812, %v1940
        %v2005 = vadd.f32 %v1813, %v1941
        %v2006 = vadd.f32 %v1814, %v1942
        %v2007 = vadd.f32 %v1815, %v1943
        %v2008 = vadd.f32 %v1816, %v1944
        %v2009 = vadd.f32 %v1817, %v1945
        %v2010 = vadd.f32 %v1818, %v1946
        %v2011 = vadd.f32 %v1819, %v1947
        %v2012 = vmax.f32 %v1820, %v1884
        %v2013 = vmax.f32 %v1821, %v1885
        %v2014 = vmax.f32 %v1822, %v1886
        %v2015 = vmax.f32 %v1823, %v1887
        %v2016 = vmax.f32 %v1824, %v1888
        %v2017 = vmax.f32 %v1825, %v1889
        %v2018 = vmax.f32 %v1826, %v1890
        %v2019 = vmax.f32 %v1827, %v1891
        %v2020 = vmax.f32 %v1828, %v1892
        %v2021 = vmax.f32 %v1829, %v1893
        %v2022 = vmax.f32 %v1830, %v1894
        %v2023 = vmax.f32 %v1831, %v1895
        %v2024 = vmax.f32 %v1832, %v1896
        %v2025 = vmax.f32 %v1833, %v1897
        %v2026 = vmax.f32 %v1834, %v1898
        %v2027 = vmax.f32 %v1835, %v1899
        %v2028 = vmax.f32 %v1836, %v1900
        %v2029 = vmax.f32 %v1837, %v1901
        %v2030 = vmax.f32 %v1838, %v1902
        %v2031 = vmax.f32 %v1839, %v1903
        %v2032 = vmax.f32 %v1840, %v1904
        %v2033 = vmax.f32 %v1841, %v1905
        %v2034 = vmax.f32 %v1842, %v1906
        %v2035 = vmax.f32 %v1843, %v1907
        %v2036 = vmax.f32 %v1844, %v1908
        %v2037 = vmax.f32 %v1845, %v1909
        %v2038 = vmax.f32 %v1846, %v1910
        %v2039 = vmax.f32 %v1847, %v1911
        %v2040 = vmax.f32 %v1848, %v1912
        %v2041 = vmax.f32 %v1849, %v1913
        %v2042 = vmax.f32 %v1850, %v1914
        %v2043 = vmax.f32 %v1851, %v1915
        %v2044 = vmax.f32 %v1852, %v1916
        %v2045 = vmax.f32 %v1853, %v1917
        %v2046 = vmax.f32 %v1854, %v1918
        %v2047 = vmax.f32 %v1855, %v1919
        %v2048 = vmax.f32 %v1856, %v1920
        %v2049 = vmax.f32 %v1857, %v1921
        %v2050 = vmax.f32 %v1858, %v1922
        %v2051 = vmax.f32 %v1859, %v1923
        %v2052 = vmax.f32 %v1860, %v1924
        %v2053 = vmax.f32 %v1861, %v1925
        %v2054 = vmax.f32 %v1862, %v1926
        %v2055 = vmax.f32 %v1863, %v1927
        %v2056 = vmax.f32 %v1864, %v1928
        %v2057 = vmax.f32 %v1865, %v1929
        %v2058 = vmax.f32 %v1866, %v1930
        %v2059 = vmax.f32 %v1867, %v1931
        %v2060 = vmax.f32 %v1868, %v1932
        %v2061 = vmax.f32 %v1869, %v1933
        %v2062 = vmax.f32 %v1870, %v1934
        %v2063 = vmax.f32 %v1871, %v1935
        %v2064 = vmax.f32 %v1872, %v1936
        %v2065 = vmax.f32 %v1873, %v1937
        %v2066 = vmax.f32 %v1874, %v1938
        %v2067 = vmax.f32 %v1875, %v1939
        %v2068 = vmax.f32 %v1876, %v1940
        %v2069 = vmax.f32 %v1877, %v1941
        %v2070 = vmax.f32 %v1878, %v1942
        %v2071 = vmax.f32 %v1879, %v1943
        %v2072 = vmax.f32 %v1880, %v1944
        %v2073 = vmax.f32 %v1881, %v1945
        %v2074 = vmax.f32 %v1882, %v1946
        %v2075 = vmax.f32 %v1883, %v1947
        %2076 = vst [vmem:[#allocation2] sm:$0xff] %v1948
        %2077 = vst [vmem:[#allocation2 + $0x8] sm:$0xff] %v1949
        %2078 = vst [vmem:[#allocation2 + $0x10] sm:$0xff] %v1950
        %2079 = vst [vmem:[#allocation2 + $0x18] sm:$0xff] %v1951
        %2080 = vst [vmem:[#allocation2 + $0x20] sm:$0xff] %v1952
        %2081 = vst [vmem:[#allocation2 + $0x28] sm:$0xff] %v1953
        %2082 = vst [vmem:[#allocation2 + $0x30] sm:$0xff] %v1954
        %2083 = vst [vmem:[#allocation2 + $0x38] sm:$0xff] %v1955
        %2084 = vst [vmem:[#allocation2 + $0x40] sm:$0xff] %v1956
        %2085 = vst [vmem:[#allocation2 + $0x48] sm:$0xff] %v1957
        %2086 = vst [vmem:[#allocation2 + $0x50] sm:$0xff] %v1958
        %2087 = vst [vmem:[#allocation2 + $0x58] sm:$0xff] %v1959
        %2088 = vst [vmem:[#allocation2 + $0x60] sm:$0xff] %v1960
        %2089 = vst [vmem:[#allocation2 + $0x68] sm:$0xff] %v1961
        %2090 = vst [vmem:[#allocation2 + $0x70] sm:$0xff] %v1962
        %2091 = vst [vmem:[#allocation2 + $0x78] sm:$0xff] %v1963
        %2092 = vst [vmem:[#allocation2 + $0x80] sm:$0xff] %v1964
        %2093 = vst [vmem:[#allocation2 + $0x88] sm:$0xff] %v1965
        %2094 = vst [vmem:[#allocation2 + $0x90] sm:$0xff] %v1966
        %2095 = vst [vmem:[#allocation2 + $0x98] sm:$0xff] %v1967
        %2096 = vst [vmem:[#allocation2 + $0xa0] sm:$0xff] %v1968
        %2097 = vst [vmem:[#allocation2 + $0xa8] sm:$0xff] %v1969
        %2098 = vst [vmem:[#allocation2 + $0xb0] sm:$0xff] %v1970
        %2099 = vst [vmem:[#allocation2 + $0xb8] sm:$0xff] %v1971
        %2100 = vst [vmem:[#allocation2 + $0xc0] sm:$0xff] %v1972
        %2101 = vst [vmem:[#allocation2 + $0xc8] sm:$0xff] %v1973
        %2102 = vst [vmem:[#allocation2 + $0xd0] sm:$0xff] %v1974
        %2103 = vst [vmem:[#allocation2 + $0xd8] sm:$0xff] %v1975
        %2104 = vst [vmem:[#allocation2 + $0xe0] sm:$0xff] %v1976
        %2105 = vst [vmem:[#allocation2 + $0xe8] sm:$0xff] %v1977
        %2106 = vst [vmem:[#allocation2 + $0xf0] sm:$0xff] %v1978
        %2107 = vst [vmem:[#allocation2 + $0xf8] sm:$0xff] %v1979
        %2108 = vst [vmem:[#allocation2 + $0x100] sm:$0xff] %v1980
        %2109 = vst [vmem:[#allocation2 + $0x108] sm:$0xff] %v1981
        %2110 = vst [vmem:[#allocation2 + $0x110] sm:$0xff] %v1982
        %2111 = vst [vmem:[#allocation2 + $0x118] sm:$0xff] %v1983
        %2112 = vst [vmem:[#allocation2 + $0x120] sm:$0xff] %v1984
        %2113 = vst [vmem:[#allocation2 + $0x128] sm:$0xff] %v1985
        %2114 = vst [vmem:[#allocation2 + $0x130] sm:$0xff] %v1986
        %2115 = vst [vmem:[#allocation2 + $0x138] sm:$0xff] %v1987
        %2116 = vst [vmem:[#allocation2 + $0x140] sm:$0xff] %v1988
        %2117 = vst [vmem:[#allocation2 + $0x148] sm:$0xff] %v1989
        %2118 = vst [vmem:[#allocation2 + $0x150] sm:$0xff] %v1990
        %2119 = vst [vmem:[#allocation2 + $0x158] sm:$0xff] %v1991
        %2120 = vst [vmem:[#allocation2 + $0x160] sm:$0xff] %v1992
        %2121 = vst [vmem:[#allocation2 + $0x168] sm:$0xff] %v1993
        %2122 = vst [vmem:[#allocation2 + $0x170] sm:$0xff] %v1994
        %2123 = vst [vmem:[#allocation2 + $0x178] sm:$0xff] %v1995
        %2124 = vst [vmem:[#allocation2 + $0x180] sm:$0xff] %v1996
        %2125 = vst [vmem:[#allocation2 + $0x188] sm:$0xff] %v1997
        %2126 = vst [vmem:[#allocation2 + $0x190] sm:$0xff] %v1998
        %2127 = vst [vmem:[#allocation2 + $0x198] sm:$0xff] %v1999
        %2128 = vst [vmem:[#allocation2 + $0x1a0] sm:$0xff] %v2000
        %2129 = vst [vmem:[#allocation2 + $0x1a8] sm:$0xff] %v2001
        %2130 = vst [vmem:[#allocation2 + $0x1b0] sm:$0xff] %v2002
        %2131 = vst [vmem:[#allocation2 + $0x1b8] sm:$0xff] %v2003
        %2132 = vst [vmem:[#allocation2 + $0x1c0] sm:$0xff] %v2004
        %2133 = vst [vmem:[#allocation2 + $0x1c8] sm:$0xff] %v2005
        %2134 = vst [vmem:[#allocation2 + $0x1d0] sm:$0xff] %v2006
        %2135 = vst [vmem:[#allocation2 + $0x1d8] sm:$0xff] %v2007
        %2136 = vst [vmem:[#allocation2 + $0x1e0] sm:$0xff] %v2008
        %2137 = vst [vmem:[#allocation2 + $0x1e8] sm:$0xff] %v2009
        %2138 = vst [vmem:[#allocation2 + $0x1f0] sm:$0xff] %v2010
        %2139 = vst [vmem:[#allocation2 + $0x1f8] sm:$0xff] %v2011
        %2140 = vst [vmem:[#allocation3] sm:$0xff] %v2012
        %2141 = vst [vmem:[#allocation3 + $0x8] sm:$0xff] %v2013
        %2142 = vst [vmem:[#allocation3 + $0x10] sm:$0xff] %v2014
        %2143 = vst [vmem:[#allocation3 + $0x18] sm:$0xff] %v2015
        %2144 = vst [vmem:[#allocation3 + $0x20] sm:$0xff] %v2016
        %2145 = vst [vmem:[#allocation3 + $0x28] sm:$0xff] %v2017
        %2146 = vst [vmem:[#allocation3 + $0x30] sm:$0xff] %v2018
        %2147 = vst [vmem:[#allocation3 + $0x38] sm:$0xff] %v2019
        %2148 = vst [vmem:[#allocation3 + $0x40] sm:$0xff] %v2020
        %2149 = vst [vmem:[#allocation3 + $0x48] sm:$0xff] %v2021
        %2150 = vst [vmem:[#allocation3 + $0x50] sm:$0xff] %v2022
        %2151 = vst [vmem:[#allocation3 + $0x58] sm:$0xff] %v2023
        %2152 = vst [vmem:[#allocation3 + $0x60] sm:$0xff] %v2024
        %2153 = vst [vmem:[#allocation3 + $0x68] sm:$0xff] %v2025
        %2154 = vst [vmem:[#allocation3 + $0x70] sm:$0xff] %v2026
        %2155 = vst [vmem:[#allocation3 + $0x78] sm:$0xff] %v2027
        %2156 = vst [vmem:[#allocation3 + $0x80] sm:$0xff] %v2028
        %2157 = vst [vmem:[#allocation3 + $0x88] sm:$0xff] %v2029
        %2158 = vst [vmem:[#allocation3 + $0x90] sm:$0xff] %v2030
        %2159 = vst [vmem:[#allocation3 + $0x98] sm:$0xff] %v2031
        %2160 = vst [vmem:[#allocation3 + $0xa0] sm:$0xff] %v2032
        %2161 = vst [vmem:[#allocation3 + $0xa8] sm:$0xff] %v2033
        %2162 = vst [vmem:[#allocation3 + $0xb0] sm:$0xff] %v2034
        %2163 = vst [vmem:[#allocation3 + $0xb8] sm:$0xff] %v2035
        %2164 = vst [vmem:[#allocation3 + $0xc0] sm:$0xff] %v2036
        %2165 = vst [vmem:[#allocation3 + $0xc8] sm:$0xff] %v2037
        %2166 = vst [vmem:[#allocation3 + $0xd0] sm:$0xff] %v2038
        %2167 = vst [vmem:[#allocation3 + $0xd8] sm:$0xff] %v2039
        %2168 = vst [vmem:[#allocation3 + $0xe0] sm:$0xff] %v2040
        %2169 = vst [vmem:[#allocation3 + $0xe8] sm:$0xff] %v2041
        %2170 = vst [vmem:[#allocation3 + $0xf0] sm:$0xff] %v2042
        %2171 = vst [vmem:[#allocation3 + $0xf8] sm:$0xff] %v2043
        %2172 = vst [vmem:[#allocation3 + $0x100] sm:$0xff] %v2044
        %2173 = vst [vmem:[#allocation3 + $0x108] sm:$0xff] %v2045
        %2174 = vst [vmem:[#allocation3 + $0x110] sm:$0xff] %v2046
        %2175 = vst [vmem:[#allocation3 + $0x118] sm:$0xff] %v2047
        %2176 = vst [vmem:[#allocation3 + $0x120] sm:$0xff] %v2048
        %2177 = vst [vmem:[#allocation3 + $0x128] sm:$0xff] %v2049
        %2178 = vst [vmem:[#allocation3 + $0x130] sm:$0xff] %v2050
        %2179 = vst [vmem:[#allocation3 + $0x138] sm:$0xff] %v2051
        %2180 = vst [vmem:[#allocation3 + $0x140] sm:$0xff] %v2052
        %2181 = vst [vmem:[#allocation3 + $0x148] sm:$0xff] %v2053
        %2182 = vst [vmem:[#allocation3 + $0x150] sm:$0xff] %v2054
        %2183 = vst [vmem:[#allocation3 + $0x158] sm:$0xff] %v2055
        %2184 = vst [vmem:[#allocation3 + $0x160] sm:$0xff] %v2056
        %2185 = vst [vmem:[#allocation3 + $0x168] sm:$0xff] %v2057
        %2186 = vst [vmem:[#allocation3 + $0x170] sm:$0xff] %v2058
        %2187 = vst [vmem:[#allocation3 + $0x178] sm:$0xff] %v2059
        %2188 = vst [vmem:[#allocation3 + $0x180] sm:$0xff] %v2060
        %2189 = vst [vmem:[#allocation3 + $0x188] sm:$0xff] %v2061
        %2190 = vst [vmem:[#allocation3 + $0x190] sm:$0xff] %v2062
        %2191 = vst [vmem:[#allocation3 + $0x198] sm:$0xff] %v2063
        %2192 = vst [vmem:[#allocation3 + $0x1a0] sm:$0xff] %v2064
        %2193 = vst [vmem:[#allocation3 + $0x1a8] sm:$0xff] %v2065
        %2194 = vst [vmem:[#allocation3 + $0x1b0] sm:$0xff] %v2066
        %2195 = vst [vmem:[#allocation3 + $0x1b8] sm:$0xff] %v2067
        %2196 = vst [vmem:[#allocation3 + $0x1c0] sm:$0xff] %v2068
        %2197 = vst [vmem:[#allocation3 + $0x1c8] sm:$0xff] %v2069
        %2198 = vst [vmem:[#allocation3 + $0x1d0] sm:$0xff] %v2070
        %2199 = vst [vmem:[#allocation3 + $0x1d8] sm:$0xff] %v2071
        %2200 = vst [vmem:[#allocation3 + $0x1e0] sm:$0xff] %v2072
        %2201 = vst [vmem:[#allocation3 + $0x1e8] sm:$0xff] %v2073
        %2202 = vst [vmem:[#allocation3 + $0x1f0] sm:$0xff] %v2074
        %2203 = vst [vmem:[#allocation3 + $0x1f8] sm:$0xff] %v2075
        // Predicated region
        $region45: #{tpu_custom_call.1} parent=31 // pred_check
          %p2204 = pneg %p280
        $region46: #{tpu_custom_call.1} parent=31 // pred_check_branch
          %2206 = sbr.rel (%p2204) target = $region48
        $region47: #{tpu_custom_call.1} parent=31 // pred_region
          %v2207 = vld [vmem:[#allocation2] sm:$0xff]
          %v2208 = vld [vmem:[#allocation2 + $0x8] sm:$0xff]
          %v2209 = vld [vmem:[#allocation2 + $0x10] sm:$0xff]
          %v2210 = vld [vmem:[#allocation2 + $0x18] sm:$0xff]
          %v2211 = vld [vmem:[#allocation2 + $0x20] sm:$0xff]
          %v2212 = vld [vmem:[#allocation2 + $0x28] sm:$0xff]
          %v2213 = vld [vmem:[#allocation2 + $0x30] sm:$0xff]
          %v2214 = vld [vmem:[#allocation2 + $0x38] sm:$0xff]
          %v2215 = vld [vmem:[#allocation2 + $0x40] sm:$0xff]
          %v2216 = vld [vmem:[#allocation2 + $0x48] sm:$0xff]
          %v2217 = vld [vmem:[#allocation2 + $0x50] sm:$0xff]
          %v2218 = vld [vmem:[#allocation2 + $0x58] sm:$0xff]
          %v2219 = vld [vmem:[#allocation2 + $0x60] sm:$0xff]
          %v2220 = vld [vmem:[#allocation2 + $0x68] sm:$0xff]
          %v2221 = vld [vmem:[#allocation2 + $0x70] sm:$0xff]
          %v2222 = vld [vmem:[#allocation2 + $0x78] sm:$0xff]
          %v2223 = vld [vmem:[#allocation2 + $0x80] sm:$0xff]
          %v2224 = vld [vmem:[#allocation2 + $0x88] sm:$0xff]
          %v2225 = vld [vmem:[#allocation2 + $0x90] sm:$0xff]
          %v2226 = vld [vmem:[#allocation2 + $0x98] sm:$0xff]
          %v2227 = vld [vmem:[#allocation2 + $0xa0] sm:$0xff]
          %v2228 = vld [vmem:[#allocation2 + $0xa8] sm:$0xff]
          %v2229 = vld [vmem:[#allocation2 + $0xb0] sm:$0xff]
          %v2230 = vld [vmem:[#allocation2 + $0xb8] sm:$0xff]
          %v2231 = vld [vmem:[#allocation2 + $0xc0] sm:$0xff]
          %v2232 = vld [vmem:[#allocation2 + $0xc8] sm:$0xff]
          %v2233 = vld [vmem:[#allocation2 + $0xd0] sm:$0xff]
          %v2234 = vld [vmem:[#allocation2 + $0xd8] sm:$0xff]
          %v2235 = vld [vmem:[#allocation2 + $0xe0] sm:$0xff]
          %v2236 = vld [vmem:[#allocation2 + $0xe8] sm:$0xff]
          %v2237 = vld [vmem:[#allocation2 + $0xf0] sm:$0xff]
          %v2238 = vld [vmem:[#allocation2 + $0xf8] sm:$0xff]
          %v2239 = vld [vmem:[#allocation2 + $0x100] sm:$0xff]
          %v2240 = vld [vmem:[#allocation2 + $0x108] sm:$0xff]
          %v2241 = vld [vmem:[#allocation2 + $0x110] sm:$0xff]
          %v2242 = vld [vmem:[#allocation2 + $0x118] sm:$0xff]
          %v2243 = vld [vmem:[#allocation2 + $0x120] sm:$0xff]
          %v2244 = vld [vmem:[#allocation2 + $0x128] sm:$0xff]
          %v2245 = vld [vmem:[#allocation2 + $0x130] sm:$0xff]
          %v2246 = vld [vmem:[#allocation2 + $0x138] sm:$0xff]
          %v2247 = vld [vmem:[#allocation2 + $0x140] sm:$0xff]
          %v2248 = vld [vmem:[#allocation2 + $0x148] sm:$0xff]
          %v2249 = vld [vmem:[#allocation2 + $0x150] sm:$0xff]
          %v2250 = vld [vmem:[#allocation2 + $0x158] sm:$0xff]
          %v2251 = vld [vmem:[#allocation2 + $0x160] sm:$0xff]
          %v2252 = vld [vmem:[#allocation2 + $0x168] sm:$0xff]
          %v2253 = vld [vmem:[#allocation2 + $0x170] sm:$0xff]
          %v2254 = vld [vmem:[#allocation2 + $0x178] sm:$0xff]
          %v2255 = vld [vmem:[#allocation2 + $0x180] sm:$0xff]
          %v2256 = vld [vmem:[#allocation2 + $0x188] sm:$0xff]
          %v2257 = vld [vmem:[#allocation2 + $0x190] sm:$0xff]
          %v2258 = vld [vmem:[#allocation2 + $0x198] sm:$0xff]
          %v2259 = vld [vmem:[#allocation2 + $0x1a0] sm:$0xff]
          %v2260 = vld [vmem:[#allocation2 + $0x1a8] sm:$0xff]
          %v2261 = vld [vmem:[#allocation2 + $0x1b0] sm:$0xff]
          %v2262 = vld [vmem:[#allocation2 + $0x1b8] sm:$0xff]
          %v2263 = vld [vmem:[#allocation2 + $0x1c0] sm:$0xff]
          %v2264 = vld [vmem:[#allocation2 + $0x1c8] sm:$0xff]
          %v2265 = vld [vmem:[#allocation2 + $0x1d0] sm:$0xff]
          %v2266 = vld [vmem:[#allocation2 + $0x1d8] sm:$0xff]
          %v2267 = vld [vmem:[#allocation2 + $0x1e0] sm:$0xff]
          %v2268 = vld [vmem:[#allocation2 + $0x1e8] sm:$0xff]
          %v2269 = vld [vmem:[#allocation2 + $0x1f0] sm:$0xff]
          %v2270 = vld [vmem:[#allocation2 + $0x1f8] sm:$0xff]
          %2271 = vadd.xlane.f32.xlu0 %v2207
          %v2272 = vpop.xlane.xlu0 %2271
          %2273 = vadd.xlane.f32.xlu0 %v2208
          %v2274 = vpop.xlane.xlu0 %2273
          %2275 = vadd.xlane.f32.xlu0 %v2209
          %v2276 = vpop.xlane.xlu0 %2275
          %2277 = vadd.xlane.f32.xlu0 %v2210
          %v2278 = vpop.xlane.xlu0 %2277
          %2279 = vadd.xlane.f32.xlu0 %v2211
          %v2280 = vpop.xlane.xlu0 %2279
          %2281 = vadd.xlane.f32.xlu0 %v2212
          %v2282 = vpop.xlane.xlu0 %2281
          %2283 = vadd.xlane.f32.xlu0 %v2213
          %v2284 = vpop.xlane.xlu0 %2283
          %2285 = vadd.xlane.f32.xlu0 %v2214
          %v2286 = vpop.xlane.xlu0 %2285
          %2287 = vadd.xlane.f32.xlu0 %v2215
          %v2288 = vpop.xlane.xlu0 %2287
          %2289 = vadd.xlane.f32.xlu0 %v2216
          %v2290 = vpop.xlane.xlu0 %2289
          %2291 = vadd.xlane.f32.xlu0 %v2217
          %v2292 = vpop.xlane.xlu0 %2291
          %2293 = vadd.xlane.f32.xlu0 %v2218
          %v2294 = vpop.xlane.xlu0 %2293
          %2295 = vadd.xlane.f32.xlu0 %v2219
          %v2296 = vpop.xlane.xlu0 %2295
          %2297 = vadd.xlane.f32.xlu0 %v2220
          %v2298 = vpop.xlane.xlu0 %2297
          %2299 = vadd.xlane.f32.xlu0 %v2221
          %v2300 = vpop.xlane.xlu0 %2299
          %2301 = vadd.xlane.f32.xlu0 %v2222
          %v2302 = vpop.xlane.xlu0 %2301
          %2303 = vadd.xlane.f32.xlu0 %v2223
          %v2304 = vpop.xlane.xlu0 %2303
          %2305 = vadd.xlane.f32.xlu0 %v2224
          %v2306 = vpop.xlane.xlu0 %2305
          %2307 = vadd.xlane.f32.xlu0 %v2225
          %v2308 = vpop.xlane.xlu0 %2307
          %2309 = vadd.xlane.f32.xlu0 %v2226
          %v2310 = vpop.xlane.xlu0 %2309
          %2311 = vadd.xlane.f32.xlu0 %v2227
          %v2312 = vpop.xlane.xlu0 %2311
          %2313 = vadd.xlane.f32.xlu0 %v2228
          %v2314 = vpop.xlane.xlu0 %2313
          %2315 = vadd.xlane.f32.xlu0 %v2229
          %v2316 = vpop.xlane.xlu0 %2315
          %2317 = vadd.xlane.f32.xlu0 %v2230
          %v2318 = vpop.xlane.xlu0 %2317
          %2319 = vadd.xlane.f32.xlu0 %v2231
          %v2320 = vpop.xlane.xlu0 %2319
          %2321 = vadd.xlane.f32.xlu0 %v2232
          %v2322 = vpop.xlane.xlu0 %2321
          %2323 = vadd.xlane.f32.xlu0 %v2233
          %v2324 = vpop.xlane.xlu0 %2323
          %2325 = vadd.xlane.f32.xlu0 %v2234
          %v2326 = vpop.xlane.xlu0 %2325
          %2327 = vadd.xlane.f32.xlu0 %v2235
          %v2328 = vpop.xlane.xlu0 %2327
          %2329 = vadd.xlane.f32.xlu0 %v2236
          %v2330 = vpop.xlane.xlu0 %2329
          %2331 = vadd.xlane.f32.xlu0 %v2237
          %v2332 = vpop.xlane.xlu0 %2331
          %2333 = vadd.xlane.f32.xlu0 %v2238
          %v2334 = vpop.xlane.xlu0 %2333
          %2335 = vadd.xlane.f32.xlu0 %v2239
          %v2336 = vpop.xlane.xlu0 %2335
          %2337 = vadd.xlane.f32.xlu0 %v2240
          %v2338 = vpop.xlane.xlu0 %2337
          %2339 = vadd.xlane.f32.xlu0 %v2241
          %v2340 = vpop.xlane.xlu0 %2339
          %2341 = vadd.xlane.f32.xlu0 %v2242
          %v2342 = vpop.xlane.xlu0 %2341
          %2343 = vadd.xlane.f32.xlu0 %v2243
          %v2344 = vpop.xlane.xlu0 %2343
          %2345 = vadd.xlane.f32.xlu0 %v2244
          %v2346 = vpop.xlane.xlu0 %2345
          %2347 = vadd.xlane.f32.xlu0 %v2245
          %v2348 = vpop.xlane.xlu0 %2347
          %2349 = vadd.xlane.f32.xlu0 %v2246
          %v2350 = vpop.xlane.xlu0 %2349
          %2351 = vadd.xlane.f32.xlu0 %v2247
          %v2352 = vpop.xlane.xlu0 %2351
          %2353 = vadd.xlane.f32.xlu0 %v2248
          %v2354 = vpop.xlane.xlu0 %2353
          %2355 = vadd.xlane.f32.xlu0 %v2249
          %v2356 = vpop.xlane.xlu0 %2355
          %2357 = vadd.xlane.f32.xlu0 %v2250
          %v2358 = vpop.xlane.xlu0 %2357
          %2359 = vadd.xlane.f32.xlu0 %v2251
          %v2360 = vpop.xlane.xlu0 %2359
          %2361 = vadd.xlane.f32.xlu0 %v2252
          %v2362 = vpop.xlane.xlu0 %2361
          %2363 = vadd.xlane.f32.xlu0 %v2253
          %v2364 = vpop.xlane.xlu0 %2363
          %2365 = vadd.xlane.f32.xlu0 %v2254
          %v2366 = vpop.xlane.xlu0 %2365
          %2367 = vadd.xlane.f32.xlu0 %v2255
          %v2368 = vpop.xlane.xlu0 %2367
          %2369 = vadd.xlane.f32.xlu0 %v2256
          %v2370 = vpop.xlane.xlu0 %2369
          %2371 = vadd.xlane.f32.xlu0 %v2257
          %v2372 = vpop.xlane.xlu0 %2371
          %2373 = vadd.xlane.f32.xlu0 %v2258
          %v2374 = vpop.xlane.xlu0 %2373
          %2375 = vadd.xlane.f32.xlu0 %v2259
          %v2376 = vpop.xlane.xlu0 %2375
          %2377 = vadd.xlane.f32.xlu0 %v2260
          %v2378 = vpop.xlane.xlu0 %2377
          %2379 = vadd.xlane.f32.xlu0 %v2261
          %v2380 = vpop.xlane.xlu0 %2379
          %2381 = vadd.xlane.f32.xlu0 %v2262
          %v2382 = vpop.xlane.xlu0 %2381
          %2383 = vadd.xlane.f32.xlu0 %v2263
          %v2384 = vpop.xlane.xlu0 %2383
          %2385 = vadd.xlane.f32.xlu0 %v2264
          %v2386 = vpop.xlane.xlu0 %2385
          %2387 = vadd.xlane.f32.xlu0 %v2265
          %v2388 = vpop.xlane.xlu0 %2387
          %2389 = vadd.xlane.f32.xlu0 %v2266
          %v2390 = vpop.xlane.xlu0 %2389
          %2391 = vadd.xlane.f32.xlu0 %v2267
          %v2392 = vpop.xlane.xlu0 %2391
          %2393 = vadd.xlane.f32.xlu0 %v2268
          %v2394 = vpop.xlane.xlu0 %2393
          %2395 = vadd.xlane.f32.xlu0 %v2269
          %v2396 = vpop.xlane.xlu0 %2395
          %2397 = vadd.xlane.f32.xlu0 %v2270
          %v2398 = vpop.xlane.xlu0 %2397
          %v2399 = vmul.f32 %v2272, 0.0009765625
          %v2400 = vmul.f32 %v2274, 0.0009765625
          %v2401 = vmul.f32 %v2276, 0.0009765625
          %v2402 = vmul.f32 %v2278, 0.0009765625
          %v2403 = vmul.f32 %v2280, 0.0009765625
          %v2404 = vmul.f32 %v2282, 0.0009765625
          %v2405 = vmul.f32 %v2284, 0.0009765625
          %v2406 = vmul.f32 %v2286, 0.0009765625
          %v2407 = vmul.f32 %v2288, 0.0009765625
          %v2408 = vmul.f32 %v2290, 0.0009765625
          %v2409 = vmul.f32 %v2292, 0.0009765625
          %v2410 = vmul.f32 %v2294, 0.0009765625
          %v2411 = vmul.f32 %v2296, 0.0009765625
          %v2412 = vmul.f32 %v2298, 0.0009765625
          %v2413 = vmul.f32 %v2300, 0.0009765625
          %v2414 = vmul.f32 %v2302, 0.0009765625
          %v2415 = vmul.f32 %v2304, 0.0009765625
          %v2416 = vmul.f32 %v2306, 0.0009765625
          %v2417 = vmul.f32 %v2308, 0.0009765625
          %v2418 = vmul.f32 %v2310, 0.0009765625
          %v2419 = vmul.f32 %v2312, 0.0009765625
          %v2420 = vmul.f32 %v2314, 0.0009765625
          %v2421 = vmul.f32 %v2316, 0.0009765625
          %v2422 = vmul.f32 %v2318, 0.0009765625
          %v2423 = vmul.f32 %v2320, 0.0009765625
          %v2424 = vmul.f32 %v2322, 0.0009765625
          %v2425 = vmul.f32 %v2324, 0.0009765625
          %v2426 = vmul.f32 %v2326, 0.0009765625
          %v2427 = vmul.f32 %v2328, 0.0009765625
          %v2428 = vmul.f32 %v2330, 0.0009765625
          %v2429 = vmul.f32 %v2332, 0.0009765625
          %v2430 = vmul.f32 %v2334, 0.0009765625
          %v2431 = vmul.f32 %v2336, 0.0009765625
          %v2432 = vmul.f32 %v2338, 0.0009765625
          %v2433 = vmul.f32 %v2340, 0.0009765625
          %v2434 = vmul.f32 %v2342, 0.0009765625
          %v2435 = vmul.f32 %v2344, 0.0009765625
          %v2436 = vmul.f32 %v2346, 0.0009765625
          %v2437 = vmul.f32 %v2348, 0.0009765625
          %v2438 = vmul.f32 %v2350, 0.0009765625
          %v2439 = vmul.f32 %v2352, 0.0009765625
          %v2440 = vmul.f32 %v2354, 0.0009765625
          %v2441 = vmul.f32 %v2356, 0.0009765625
          %v2442 = vmul.f32 %v2358, 0.0009765625
          %v2443 = vmul.f32 %v2360, 0.0009765625
          %v2444 = vmul.f32 %v2362, 0.0009765625
          %v2445 = vmul.f32 %v2364, 0.0009765625
          %v2446 = vmul.f32 %v2366, 0.0009765625
          %v2447 = vmul.f32 %v2368, 0.0009765625
          %v2448 = vmul.f32 %v2370, 0.0009765625
          %v2449 = vmul.f32 %v2372, 0.0009765625
          %v2450 = vmul.f32 %v2374, 0.0009765625
          %v2451 = vmul.f32 %v2376, 0.0009765625
          %v2452 = vmul.f32 %v2378, 0.0009765625
          %v2453 = vmul.f32 %v2380, 0.0009765625
          %v2454 = vmul.f32 %v2382, 0.0009765625
          %v2455 = vmul.f32 %v2384, 0.0009765625
          %v2456 = vmul.f32 %v2386, 0.0009765625
          %v2457 = vmul.f32 %v2388, 0.0009765625
          %v2458 = vmul.f32 %v2390, 0.0009765625
          %v2459 = vmul.f32 %v2392, 0.0009765625
          %v2460 = vmul.f32 %v2394, 0.0009765625
          %v2461 = vmul.f32 %v2396, 0.0009765625
          %v2462 = vmul.f32 %v2398, 0.0009765625
          %v2463 = vld [vmem:[#allocation3] sm:$0xff]
          %v2464 = vld [vmem:[#allocation3 + $0x8] sm:$0xff]
          %v2465 = vld [vmem:[#allocation3 + $0x10] sm:$0xff]
          %v2466 = vld [vmem:[#allocation3 + $0x18] sm:$0xff]
          %v2467 = vld [vmem:[#allocation3 + $0x20] sm:$0xff]
          %v2468 = vld [vmem:[#allocation3 + $0x28] sm:$0xff]
          %v2469 = vld [vmem:[#allocation3 + $0x30] sm:$0xff]
          %v2470 = vld [vmem:[#allocation3 + $0x38] sm:$0xff]
          %v2471 = vld [vmem:[#allocation3 + $0x40] sm:$0xff]
          %v2472 = vld [vmem:[#allocation3 + $0x48] sm:$0xff]
          %v2473 = vld [vmem:[#allocation3 + $0x50] sm:$0xff]
          %v2474 = vld [vmem:[#allocation3 + $0x58] sm:$0xff]
          %v2475 = vld [vmem:[#allocation3 + $0x60] sm:$0xff]
          %v2476 = vld [vmem:[#allocation3 + $0x68] sm:$0xff]
          %v2477 = vld [vmem:[#allocation3 + $0x70] sm:$0xff]
          %v2478 = vld [vmem:[#allocation3 + $0x78] sm:$0xff]
          %v2479 = vld [vmem:[#allocation3 + $0x80] sm:$0xff]
          %v2480 = vld [vmem:[#allocation3 + $0x88] sm:$0xff]
          %v2481 = vld [vmem:[#allocation3 + $0x90] sm:$0xff]
          %v2482 = vld [vmem:[#allocation3 + $0x98] sm:$0xff]
          %v2483 = vld [vmem:[#allocation3 + $0xa0] sm:$0xff]
          %v2484 = vld [vmem:[#allocation3 + $0xa8] sm:$0xff]
          %v2485 = vld [vmem:[#allocation3 + $0xb0] sm:$0xff]
          %v2486 = vld [vmem:[#allocation3 + $0xb8] sm:$0xff]
          %v2487 = vld [vmem:[#allocation3 + $0xc0] sm:$0xff]
          %v2488 = vld [vmem:[#allocation3 + $0xc8] sm:$0xff]
          %v2489 = vld [vmem:[#allocation3 + $0xd0] sm:$0xff]
          %v2490 = vld [vmem:[#allocation3 + $0xd8] sm:$0xff]
          %v2491 = vld [vmem:[#allocation3 + $0xe0] sm:$0xff]
          %v2492 = vld [vmem:[#allocation3 + $0xe8] sm:$0xff]
          %v2493 = vld [vmem:[#allocation3 + $0xf0] sm:$0xff]
          %v2494 = vld [vmem:[#allocation3 + $0xf8] sm:$0xff]
          %v2495 = vld [vmem:[#allocation3 + $0x100] sm:$0xff]
          %v2496 = vld [vmem:[#allocation3 + $0x108] sm:$0xff]
          %v2497 = vld [vmem:[#allocation3 + $0x110] sm:$0xff]
          %v2498 = vld [vmem:[#allocation3 + $0x118] sm:$0xff]
          %v2499 = vld [vmem:[#allocation3 + $0x120] sm:$0xff]
          %v2500 = vld [vmem:[#allocation3 + $0x128] sm:$0xff]
          %v2501 = vld [vmem:[#allocation3 + $0x130] sm:$0xff]
          %v2502 = vld [vmem:[#allocation3 + $0x138] sm:$0xff]
          %v2503 = vld [vmem:[#allocation3 + $0x140] sm:$0xff]
          %v2504 = vld [vmem:[#allocation3 + $0x148] sm:$0xff]
          %v2505 = vld [vmem:[#allocation3 + $0x150] sm:$0xff]
          %v2506 = vld [vmem:[#allocation3 + $0x158] sm:$0xff]
          %v2507 = vld [vmem:[#allocation3 + $0x160] sm:$0xff]
          %v2508 = vld [vmem:[#allocation3 + $0x168] sm:$0xff]
          %v2509 = vld [vmem:[#allocation3 + $0x170] sm:$0xff]
          %v2510 = vld [vmem:[#allocation3 + $0x178] sm:$0xff]
          %v2511 = vld [vmem:[#allocation3 + $0x180] sm:$0xff]
          %v2512 = vld [vmem:[#allocation3 + $0x188] sm:$0xff]
          %v2513 = vld [vmem:[#allocation3 + $0x190] sm:$0xff]
          %v2514 = vld [vmem:[#allocation3 + $0x198] sm:$0xff]
          %v2515 = vld [vmem:[#allocation3 + $0x1a0] sm:$0xff]
          %v2516 = vld [vmem:[#allocation3 + $0x1a8] sm:$0xff]
          %v2517 = vld [vmem:[#allocation3 + $0x1b0] sm:$0xff]
          %v2518 = vld [vmem:[#allocation3 + $0x1b8] sm:$0xff]
          %v2519 = vld [vmem:[#allocation3 + $0x1c0] sm:$0xff]
          %v2520 = vld [vmem:[#allocation3 + $0x1c8] sm:$0xff]
          %v2521 = vld [vmem:[#allocation3 + $0x1d0] sm:$0xff]
          %v2522 = vld [vmem:[#allocation3 + $0x1d8] sm:$0xff]
          %v2523 = vld [vmem:[#allocation3 + $0x1e0] sm:$0xff]
          %v2524 = vld [vmem:[#allocation3 + $0x1e8] sm:$0xff]
          %v2525 = vld [vmem:[#allocation3 + $0x1f0] sm:$0xff]
          %v2526 = vld [vmem:[#allocation3 + $0x1f8] sm:$0xff]
          %2527 = vmax.xlane.f32.xlu0 %v2463
          %v2528 = vpop.xlane.xlu0 %2527
          %2529 = vmax.xlane.f32.xlu0 %v2464
          %v2530 = vpop.xlane.xlu0 %2529
          %2531 = vmax.xlane.f32.xlu0 %v2465
          %v2532 = vpop.xlane.xlu0 %2531
          %2533 = vmax.xlane.f32.xlu0 %v2466
          %v2534 = vpop.xlane.xlu0 %2533
          %2535 = vmax.xlane.f32.xlu0 %v2467
          %v2536 = vpop.xlane.xlu0 %2535
          %2537 = vmax.xlane.f32.xlu0 %v2468
          %v2538 = vpop.xlane.xlu0 %2537
          %2539 = vmax.xlane.f32.xlu0 %v2469
          %v2540 = vpop.xlane.xlu0 %2539
          %2541 = vmax.xlane.f32.xlu0 %v2470
          %v2542 = vpop.xlane.xlu0 %2541
          %2543 = vmax.xlane.f32.xlu0 %v2471
          %v2544 = vpop.xlane.xlu0 %2543
          %2545 = vmax.xlane.f32.xlu0 %v2472
          %v2546 = vpop.xlane.xlu0 %2545
          %2547 = vmax.xlane.f32.xlu0 %v2473
          %v2548 = vpop.xlane.xlu0 %2547
          %2549 = vmax.xlane.f32.xlu0 %v2474
          %v2550 = vpop.xlane.xlu0 %2549
          %2551 = vmax.xlane.f32.xlu0 %v2475
          %v2552 = vpop.xlane.xlu0 %2551
          %2553 = vmax.xlane.f32.xlu0 %v2476
          %v2554 = vpop.xlane.xlu0 %2553
          %2555 = vmax.xlane.f32.xlu0 %v2477
          %v2556 = vpop.xlane.xlu0 %2555
          %2557 = vmax.xlane.f32.xlu0 %v2478
          %v2558 = vpop.xlane.xlu0 %2557
          %2559 = vmax.xlane.f32.xlu0 %v2479
          %v2560 = vpop.xlane.xlu0 %2559
          %2561 = vmax.xlane.f32.xlu0 %v2480
          %v2562 = vpop.xlane.xlu0 %2561
          %2563 = vmax.xlane.f32.xlu0 %v2481
          %v2564 = vpop.xlane.xlu0 %2563
          %2565 = vmax.xlane.f32.xlu0 %v2482
          %v2566 = vpop.xlane.xlu0 %2565
          %2567 = vmax.xlane.f32.xlu0 %v2483
          %v2568 = vpop.xlane.xlu0 %2567
          %2569 = vmax.xlane.f32.xlu0 %v2484
          %v2570 = vpop.xlane.xlu0 %2569
          %2571 = vmax.xlane.f32.xlu0 %v2485
          %v2572 = vpop.xlane.xlu0 %2571
          %2573 = vmax.xlane.f32.xlu0 %v2486
          %v2574 = vpop.xlane.xlu0 %2573
          %2575 = vmax.xlane.f32.xlu0 %v2487
          %v2576 = vpop.xlane.xlu0 %2575
          %2577 = vmax.xlane.f32.xlu0 %v2488
          %v2578 = vpop.xlane.xlu0 %2577
          %2579 = vmax.xlane.f32.xlu0 %v2489
          %v2580 = vpop.xlane.xlu0 %2579
          %2581 = vmax.xlane.f32.xlu0 %v2490
          %v2582 = vpop.xlane.xlu0 %2581
          %2583 = vmax.xlane.f32.xlu0 %v2491
          %v2584 = vpop.xlane.xlu0 %2583
          %2585 = vmax.xlane.f32.xlu0 %v2492
          %v2586 = vpop.xlane.xlu0 %2585
          %2587 = vmax.xlane.f32.xlu0 %v2493
          %v2588 = vpop.xlane.xlu0 %2587
          %2589 = vmax.xlane.f32.xlu0 %v2494
          %v2590 = vpop.xlane.xlu0 %2589
          %2591 = vmax.xlane.f32.xlu0 %v2495
          %v2592 = vpop.xlane.xlu0 %2591
          %2593 = vmax.xlane.f32.xlu0 %v2496
          %v2594 = vpop.xlane.xlu0 %2593
          %2595 = vmax.xlane.f32.xlu0 %v2497
          %v2596 = vpop.xlane.xlu0 %2595
          %2597 = vmax.xlane.f32.xlu0 %v2498
          %v2598 = vpop.xlane.xlu0 %2597
          %2599 = vmax.xlane.f32.xlu0 %v2499
          %v2600 = vpop.xlane.xlu0 %2599
          %2601 = vmax.xlane.f32.xlu0 %v2500
          %v2602 = vpop.xlane.xlu0 %2601
          %2603 = vmax.xlane.f32.xlu0 %v2501
          %v2604 = vpop.xlane.xlu0 %2603
          %2605 = vmax.xlane.f32.xlu0 %v2502
          %v2606 = vpop.xlane.xlu0 %2605
          %2607 = vmax.xlane.f32.xlu0 %v2503
          %v2608 = vpop.xlane.xlu0 %2607
          %2609 = vmax.xlane.f32.xlu0 %v2504
          %v2610 = vpop.xlane.xlu0 %2609
          %2611 = vmax.xlane.f32.xlu0 %v2505
          %v2612 = vpop.xlane.xlu0 %2611
          %2613 = vmax.xlane.f32.xlu0 %v2506
          %v2614 = vpop.xlane.xlu0 %2613
          %2615 = vmax.xlane.f32.xlu0 %v2507
          %v2616 = vpop.xlane.xlu0 %2615
          %2617 = vmax.xlane.f32.xlu0 %v2508
          %v2618 = vpop.xlane.xlu0 %2617
          %2619 = vmax.xlane.f32.xlu0 %v2509
          %v2620 = vpop.xlane.xlu0 %2619
          %2621 = vmax.xlane.f32.xlu0 %v2510
          %v2622 = vpop.xlane.xlu0 %2621
          %2623 = vmax.xlane.f32.xlu0 %v2511
          %v2624 = vpop.xlane.xlu0 %2623
          %2625 = vmax.xlane.f32.xlu0 %v2512
          %v2626 = vpop.xlane.xlu0 %2625
          %2627 = vmax.xlane.f32.xlu0 %v2513
          %v2628 = vpop.xlane.xlu0 %2627
          %2629 = vmax.xlane.f32.xlu0 %v2514
          %v2630 = vpop.xlane.xlu0 %2629
          %2631 = vmax.xlane.f32.xlu0 %v2515
          %v2632 = vpop.xlane.xlu0 %2631
          %2633 = vmax.xlane.f32.xlu0 %v2516
          %v2634 = vpop.xlane.xlu0 %2633
          %2635 = vmax.xlane.f32.xlu0 %v2517
          %v2636 = vpop.xlane.xlu0 %2635
          %2637 = vmax.xlane.f32.xlu0 %v2518
          %v2638 = vpop.xlane.xlu0 %2637
          %2639 = vmax.xlane.f32.xlu0 %v2519
          %v2640 = vpop.xlane.xlu0 %2639
          %2641 = vmax.xlane.f32.xlu0 %v2520
          %v2642 = vpop.xlane.xlu0 %2641
          %2643 = vmax.xlane.f32.xlu0 %v2521
          %v2644 = vpop.xlane.xlu0 %2643
          %2645 = vmax.xlane.f32.xlu0 %v2522
          %v2646 = vpop.xlane.xlu0 %2645
          %2647 = vmax.xlane.f32.xlu0 %v2523
          %v2648 = vpop.xlane.xlu0 %2647
          %2649 = vmax.xlane.f32.xlu0 %v2524
          %v2650 = vpop.xlane.xlu0 %2649
          %2651 = vmax.xlane.f32.xlu0 %v2525
          %v2652 = vpop.xlane.xlu0 %2651
          %2653 = vmax.xlane.f32.xlu0 %v2526
          %v2654 = vpop.xlane.xlu0 %2653
          %v2719 = vlaneseq
          %v2720 = vand.u32 %v2719, 127
          %v2721 = vperm.slane %v2399, %v2720
          %v2722 = vadd.s32 %v2720, 4294967288
          %v2723 = vperm.slane %v2400, %v2722
          %vm2724 = vcmask 130112
          %v2725 = vsel %vm2724, %v2723, %v2721
          %v2726 = vadd.s32 %v2720, 4294967280
          %v2727 = vperm.slane %v2401, %v2726
          %vm2728 = vcmask 195712
          %v2729 = vsel %vm2728, %v2727, %v2725
          %v2730 = vadd.s32 %v2720, 4294967272
          %v2731 = vperm.slane %v2402, %v2730
          %vm2732 = vcmask 261312
          %v2733 = vsel %vm2732, %v2731, %v2729
          %v2734 = vadd.s32 %v2720, 4294967264
          %v2735 = vperm.slane %v2403, %v2734
          %vm2736 = vcmask 326912
          %v2737 = vsel %vm2736, %v2735, %v2733
          %v2738 = vadd.s32 %v2720, 4294967256
          %v2739 = vperm.slane %v2404, %v2738
          %vm2740 = vcmask 392512
          %v2741 = vsel %vm2740, %v2739, %v2737
          %v2742 = vadd.s32 %v2720, 4294967248
          %v2743 = vperm.slane %v2405, %v2742
          %vm2744 = vcmask 458112
          %v2745 = vsel %vm2744, %v2743, %v2741
          %v2746 = vadd.s32 %v2720, 4294967240
          %v2747 = vperm.slane %v2406, %v2746
          %vm2748 = vcmask 523712
          %v2749 = vsel %vm2748, %v2747, %v2745
          %v2750 = vadd.s32 %v2720, 4294967232
          %v2751 = vperm.slane %v2407, %v2750
          %vm2752 = vcmask 589312
          %v2753 = vsel %vm2752, %v2751, %v2749
          %v2754 = vadd.s32 %v2720, 4294967224
          %v2755 = vperm.slane %v2408, %v2754
          %vm2756 = vcmask 654912
          %v2757 = vsel %vm2756, %v2755, %v2753
          %v2758 = vadd.s32 %v2720, 4294967216
          %v2759 = vperm.slane %v2409, %v2758
          %vm2760 = vcmask 720512
          %v2761 = vsel %vm2760, %v2759, %v2757
          %v2762 = vadd.s32 %v2720, 4294967208
          %v2763 = vperm.slane %v2410, %v2762
          %vm2764 = vcmask 786112
          %v2765 = vsel %vm2764, %v2763, %v2761
          %v2766 = vadd.s32 %v2720, 4294967200
          %v2767 = vperm.slane %v2411, %v2766
          %vm2768 = vcmask 851712
          %v2769 = vsel %vm2768, %v2767, %v2765
          %v2770 = vadd.s32 %v2720, 4294967192
          %v2771 = vperm.slane %v2412, %v2770
          %vm2772 = vcmask 917312
          %v2773 = vsel %vm2772, %v2771, %v2769
          %v2774 = vadd.s32 %v2720, 4294967184
          %v2775 = vperm.slane %v2413, %v2774
          %vm2776 = vcmask 982912
          %v2777 = vsel %vm2776, %v2775, %v2773
          %v2778 = vadd.s32 %v2720, 4294967176
          %v2779 = vperm.slane %v2414, %v2778
          %vm2780 = vcmask 1048512
          %v2781 = vsel %vm2780, %v2779, %v2777
          %v2782 = vperm.slane %v2415, %v2720
          %v2783 = vperm.slane %v2416, %v2722
          %v2784 = vsel %vm2724, %v2783, %v2782
          %v2785 = vperm.slane %v2417, %v2726
          %v2786 = vsel %vm2728, %v2785, %v2784
          %v2787 = vperm.slane %v2418, %v2730
          %v2788 = vsel %vm2732, %v2787, %v2786
          %v2789 = vperm.slane %v2419, %v2734
          %v2790 = vsel %vm2736, %v2789, %v2788
          %v2791 = vperm.slane %v2420, %v2738
          %v2792 = vsel %vm2740, %v2791, %v2790
          %v2793 = vperm.slane %v2421, %v2742
          %v2794 = vsel %vm2744, %v2793, %v2792
          %v2795 = vperm.slane %v2422, %v2746
          %v2796 = vsel %vm2748, %v2795, %v2794
          %v2797 = vperm.slane %v2423, %v2750
          %v2798 = vsel %vm2752, %v2797, %v2796
          %v2799 = vperm.slane %v2424, %v2754
          %v2800 = vsel %vm2756, %v2799, %v2798
          %v2801 = vperm.slane %v2425, %v2758
          %v2802 = vsel %vm2760, %v2801, %v2800
          %v2803 = vperm.slane %v2426, %v2762
          %v2804 = vsel %vm2764, %v2803, %v2802
          %v2805 = vperm.slane %v2427, %v2766
          %v2806 = vsel %vm2768, %v2805, %v2804
          %v2807 = vperm.slane %v2428, %v2770
          %v2808 = vsel %vm2772, %v2807, %v2806
          %v2809 = vperm.slane %v2429, %v2774
          %v2810 = vsel %vm2776, %v2809, %v2808
          %v2811 = vperm.slane %v2430, %v2778
          %v2812 = vsel %vm2780, %v2811, %v2810
          %v2813 = vperm.slane %v2431, %v2720
          %v2814 = vperm.slane %v2432, %v2722
          %v2815 = vsel %vm2724, %v2814, %v2813
          %v2816 = vperm.slane %v2433, %v2726
          %v2817 = vsel %vm2728, %v2816, %v2815
          %v2818 = vperm.slane %v2434, %v2730
          %v2819 = vsel %vm2732, %v2818, %v2817
          %v2820 = vperm.slane %v2435, %v2734
          %v2821 = vsel %vm2736, %v2820, %v2819
          %v2822 = vperm.slane %v2436, %v2738
          %v2823 = vsel %vm2740, %v2822, %v2821
          %v2824 = vperm.slane %v2437, %v2742
          %v2825 = vsel %vm2744, %v2824, %v2823
          %v2826 = vperm.slane %v2438, %v2746
          %v2827 = vsel %vm2748, %v2826, %v2825
          %v2828 = vperm.slane %v2439, %v2750
          %v2829 = vsel %vm2752, %v2828, %v2827
          %v2830 = vperm.slane %v2440, %v2754
          %v2831 = vsel %vm2756, %v2830, %v2829
          %v2832 = vperm.slane %v2441, %v2758
          %v2833 = vsel %vm2760, %v2832, %v2831
          %v2834 = vperm.slane %v2442, %v2762
          %v2835 = vsel %vm2764, %v2834, %v2833
          %v2836 = vperm.slane %v2443, %v2766
          %v2837 = vsel %vm2768, %v2836, %v2835
          %v2838 = vperm.slane %v2444, %v2770
          %v2839 = vsel %vm2772, %v2838, %v2837
          %v2840 = vperm.slane %v2445, %v2774
          %v2841 = vsel %vm2776, %v2840, %v2839
          %v2842 = vperm.slane %v2446, %v2778
          %v2843 = vsel %vm2780, %v2842, %v2841
          %v2844 = vperm.slane %v2447, %v2720
          %v2845 = vperm.slane %v2448, %v2722
          %v2846 = vsel %vm2724, %v2845, %v2844
          %v2847 = vperm.slane %v2449, %v2726
          %v2848 = vsel %vm2728, %v2847, %v2846
          %v2849 = vperm.slane %v2450, %v2730
          %v2850 = vsel %vm2732, %v2849, %v2848
          %v2851 = vperm.slane %v2451, %v2734
          %v2852 = vsel %vm2736, %v2851, %v2850
          %v2853 = vperm.slane %v2452, %v2738
          %v2854 = vsel %vm2740, %v2853, %v2852
          %v2855 = vperm.slane %v2453, %v2742
          %v2856 = vsel %vm2744, %v2855, %v2854
          %v2857 = vperm.slane %v2454, %v2746
          %v2858 = vsel %vm2748, %v2857, %v2856
          %v2859 = vperm.slane %v2455, %v2750
          %v2860 = vsel %vm2752, %v2859, %v2858
          %v2861 = vperm.slane %v2456, %v2754
          %v2862 = vsel %vm2756, %v2861, %v2860
          %v2863 = vperm.slane %v2457, %v2758
          %v2864 = vsel %vm2760, %v2863, %v2862
          %v2865 = vperm.slane %v2458, %v2762
          %v2866 = vsel %vm2764, %v2865, %v2864
          %v2867 = vperm.slane %v2459, %v2766
          %v2868 = vsel %vm2768, %v2867, %v2866
          %v2869 = vperm.slane %v2460, %v2770
          %v2870 = vsel %vm2772, %v2869, %v2868
          %v2871 = vperm.slane %v2461, %v2774
          %v2872 = vsel %vm2776, %v2871, %v2870
          %v2873 = vperm.slane %v2462, %v2778
          %v2874 = vsel %vm2780, %v2873, %v2872
          %vm2875 = vcmask 1041409
          %v2876 = vsel %vm2875, %v2812, %v2781
          %vm2877 = vcmask 1042434
          %v2878 = vsel %vm2877, %v2843, %v2876
          %vm2879 = vcmask 1043459
          %v2880 = vsel %vm2879, %v2874, %v2878
          %v2946 = vperm.slane %v2528, %v2720
          %v2947 = vperm.slane %v2530, %v2722
          %v2948 = vsel %vm2724, %v2947, %v2946
          %v2949 = vperm.slane %v2532, %v2726
          %v2950 = vsel %vm2728, %v2949, %v2948
          %v2951 = vperm.slane %v2534, %v2730
          %v2952 = vsel %vm2732, %v2951, %v2950
          %v2953 = vperm.slane %v2536, %v2734
          %v2954 = vsel %vm2736, %v2953, %v2952
          %v2955 = vperm.slane %v2538, %v2738
          %v2956 = vsel %vm2740, %v2955, %v2954
          %v2957 = vperm.slane %v2540, %v2742
          %v2958 = vsel %vm2744, %v2957, %v2956
          %v2959 = vperm.slane %v2542, %v2746
          %v2960 = vsel %vm2748, %v2959, %v2958
          %v2961 = vperm.slane %v2544, %v2750
          %v2962 = vsel %vm2752, %v2961, %v2960
          %v2963 = vperm.slane %v2546, %v2754
          %v2964 = vsel %vm2756, %v2963, %v2962
          %v2965 = vperm.slane %v2548, %v2758
          %v2966 = vsel %vm2760, %v2965, %v2964
          %v2967 = vperm.slane %v2550, %v2762
          %v2968 = vsel %vm2764, %v2967, %v2966
          %v2969 = vperm.slane %v2552, %v2766
          %v2970 = vsel %vm2768, %v2969, %v2968
          %v2971 = vperm.slane %v2554, %v2770
          %v2972 = vsel %vm2772, %v2971, %v2970
          %v2973 = vperm.slane %v2556, %v2774
          %v2974 = vsel %vm2776, %v2973, %v2972
          %v2975 = vperm.slane %v2558, %v2778
          %v2976 = vsel %vm2780, %v2975, %v2974
          %v2977 = vperm.slane %v2560, %v2720
          %v2978 = vperm.slane %v2562, %v2722
          %v2979 = vsel %vm2724, %v2978, %v2977
          %v2980 = vperm.slane %v2564, %v2726
          %v2981 = vsel %vm2728, %v2980, %v2979
          %v2982 = vperm.slane %v2566, %v2730
          %v2983 = vsel %vm2732, %v2982, %v2981
          %v2984 = vperm.slane %v2568, %v2734
          %v2985 = vsel %vm2736, %v2984, %v2983
          %v2986 = vperm.slane %v2570, %v2738
          %v2987 = vsel %vm2740, %v2986, %v2985
          %v2988 = vperm.slane %v2572, %v2742
          %v2989 = vsel %vm2744, %v2988, %v2987
          %v2990 = vperm.slane %v2574, %v2746
          %v2991 = vsel %vm2748, %v2990, %v2989
          %v2992 = vperm.slane %v2576, %v2750
          %v2993 = vsel %vm2752, %v2992, %v2991
          %v2994 = vperm.slane %v2578, %v2754
          %v2995 = vsel %vm2756, %v2994, %v2993
          %v2996 = vperm.slane %v2580, %v2758
          %v2997 = vsel %vm2760, %v2996, %v2995
          %v2998 = vperm.slane %v2582, %v2762
          %v2999 = vsel %vm2764, %v2998, %v2997
          %v3000 = vperm.slane %v2584, %v2766
          %v3001 = vsel %vm2768, %v3000, %v2999
          %v3002 = vperm.slane %v2586, %v2770
          %v3003 = vsel %vm2772, %v3002, %v3001
          %v3004 = vperm.slane %v2588, %v2774
          %v3005 = vsel %vm2776, %v3004, %v3003
          %v3006 = vperm.slane %v2590, %v2778
          %v3007 = vsel %vm2780, %v3006, %v3005
          %v3008 = vperm.slane %v2592, %v2720
          %v3009 = vperm.slane %v2594, %v2722
          %v3010 = vsel %vm2724, %v3009, %v3008
          %v3011 = vperm.slane %v2596, %v2726
          %v3012 = vsel %vm2728, %v3011, %v3010
          %v3013 = vperm.slane %v2598, %v2730
          %v3014 = vsel %vm2732, %v3013, %v3012
          %v3015 = vperm.slane %v2600, %v2734
          %v3016 = vsel %vm2736, %v3015, %v3014
          %v3017 = vperm.slane %v2602, %v2738
          %v3018 = vsel %vm2740, %v3017, %v3016
          %v3019 = vperm.slane %v2604, %v2742
          %v3020 = vsel %vm2744, %v3019, %v3018
          %v3021 = vperm.slane %v2606, %v2746
          %v3022 = vsel %vm2748, %v3021, %v3020
          %v3023 = vperm.slane %v2608, %v2750
          %v3024 = vsel %vm2752, %v3023, %v3022
          %v3025 = vperm.slane %v2610, %v2754
          %v3026 = vsel %vm2756, %v3025, %v3024
          %v3027 = vperm.slane %v2612, %v2758
          %v3028 = vsel %vm2760, %v3027, %v3026
          %v3029 = vperm.slane %v2614, %v2762
          %v3030 = vsel %vm2764, %v3029, %v3028
          %v3031 = vperm.slane %v2616, %v2766
          %v3032 = vsel %vm2768, %v3031, %v3030
          %v3033 = vperm.slane %v2618, %v2770
          %v3034 = vsel %vm2772, %v3033, %v3032
          %v3035 = vperm.slane %v2620, %v2774
          %v3036 = vsel %vm2776, %v3035, %v3034
          %v3037 = vperm.slane %v2622, %v2778
          %v3038 = vsel %vm2780, %v3037, %v3036
          %v3039 = vperm.slane %v2624, %v2720
          %v3040 = vperm.slane %v2626, %v2722
          %v3041 = vsel %vm2724, %v3040, %v3039
          %v3042 = vperm.slane %v2628, %v2726
          %v3043 = vsel %vm2728, %v3042, %v3041
          %v3044 = vperm.slane %v2630, %v2730
          %v3045 = vsel %vm2732, %v3044, %v3043
          %v3046 = vperm.slane %v2632, %v2734
          %v3047 = vsel %vm2736, %v3046, %v3045
          %v3048 = vperm.slane %v2634, %v2738
          %v3049 = vsel %vm2740, %v3048, %v3047
          %v3050 = vperm.slane %v2636, %v2742
          %v3051 = vsel %vm2744, %v3050, %v3049
          %v3052 = vperm.slane %v2638, %v2746
          %v3053 = vsel %vm2748, %v3052, %v3051
          %v3054 = vperm.slane %v2640, %v2750
          %v3055 = vsel %vm2752, %v3054, %v3053
          %v3056 = vperm.slane %v2642, %v2754
          %v3057 = vsel %vm2756, %v3056, %v3055
          %v3058 = vperm.slane %v2644, %v2758
          %v3059 = vsel %vm2760, %v3058, %v3057
          %v3060 = vperm.slane %v2646, %v2762
          %v3061 = vsel %vm2764, %v3060, %v3059
          %v3062 = vperm.slane %v2648, %v2766
          %v3063 = vsel %vm2768, %v3062, %v3061
          %v3064 = vperm.slane %v2650, %v2770
          %v3065 = vsel %vm2772, %v3064, %v3063
          %v3066 = vperm.slane %v2652, %v2774
          %v3067 = vsel %vm2776, %v3066, %v3065
          %v3068 = vperm.slane %v2654, %v2778
          %v3069 = vsel %vm2780, %v3068, %v3067
          %vm3070 = vcmask 1045509
          %v3071 = vsel %vm3070, %v3007, %v2976
          %vm3072 = vcmask 1046534
          %v3073 = vsel %vm3072, %v3038, %v3071
          %vm3074 = vcmask 1047559
          %v3075 = vsel %vm3074, %v3069, %v3073
          %vm3077 = vcmask 1043456
          %v3078 = vsel %vm3077, %v2880, %v3075
          %v3079 = vld [vmem:[%s279] sm:$0xff]
          %v3080 = vld [vmem:[%s279 + $0x8] sm:$0xff]
          %v3081 = vld [vmem:[%s279 + $0x10] sm:$0xff]
          %v3082 = vld [vmem:[%s279 + $0x18] sm:$0xff]
          %v3083 = vld [vmem:[%s279 + $0x20] sm:$0xff]
          %v3084 = vld [vmem:[%s279 + $0x28] sm:$0xff]
          %v3085 = vld [vmem:[%s279 + $0x30] sm:$0xff]
          %v3086 = vld [vmem:[%s279 + $0x38] sm:$0xff]
          %v3087 = vld [vmem:[%s279 + $0x40] sm:$0xff]
          %v3088 = vld [vmem:[%s279 + $0x48] sm:$0xff]
          %v3089 = vld [vmem:[%s279 + $0x50] sm:$0xff]
          %v3090 = vld [vmem:[%s279 + $0x58] sm:$0xff]
          %v3091 = vld [vmem:[%s279 + $0x60] sm:$0xff]
          %v3092 = vld [vmem:[%s279 + $0x68] sm:$0xff]
          %v3093 = vld [vmem:[%s279 + $0x70] sm:$0xff]
          %v3094 = vld [vmem:[%s279 + $0x78] sm:$0xff]
          %3095 = vmatpush.msra.mxu0 %v3094
          %3096 = vmatpush.msra.mxu0 %v3093
          %3097 = vmatpush.msra.mxu0 %v3092
          %3098 = vmatpush.msra.mxu0 %v3091
          %3099 = vmatpush.msra.mxu0 %v3090
          %3100 = vmatpush.msra.mxu0 %v3089
          %3101 = vmatpush.msra.mxu0 %v3088
          %3102 = vmatpush.msra.mxu0 %v3087
          %3103 = vmatpush.msra.mxu0 %v3086
          %3104 = vmatpush.msra.mxu0 %v3085
          %3105 = vmatpush.msra.mxu0 %v3084
          %3106 = vmatpush.msra.mxu0 %v3083
          %3107 = vmatpush.msra.mxu0 %v3082
          %3108 = vmatpush.msra.mxu0 %v3081
          %3109 = vmatpush.msra.mxu0 %v3080
          %3110 = vmatpush.msra.mxu0 %v3079
          %3111 = vmatmul.f32.gmra.mxu0 %v3078
          %v3112 = vpop.f32.mrf.mxu0
          %v3113 = vadd.f32 0.0, %v3112
          %3114 = vdwg.mxu0
          %v3115 = vmax.f32 %v3113, 0.0
          %v3116 = vld [vmem:[%s240] sm:$0xff]
          %vm3117 = vcmask 64512
          %v3119 = vsel %vm3117, %v3115, 0
          %3121 = vmatpush.msra.mxu0 0.0
          %3122 = vmatpush.msra.mxu0 0.0
          %3123 = vmatpush.msra.mxu0 0.0
          %3124 = vmatpush.msra.mxu0 0.0
          %3125 = vmatpush.msra.mxu0 0.0
          %3126 = vmatpush.msra.mxu0 0.0
          %3127 = vmatpush.msra.mxu0 0.0
          %3128 = vmatpush.msra.mxu0 0.0
          %3129 = vmatpush.msra.mxu0 0.0
          %3130 = vmatpush.msra.mxu0 0.0
          %3131 = vmatpush.msra.mxu0 0.0
          %3132 = vmatpush.msra.mxu0 0.0
          %3133 = vmatpush.msra.mxu0 0.0
          %3134 = vmatpush.msra.mxu0 0.0
          %3135 = vmatpush.msra.mxu0 0.0
          %3136 = vmatpush.msra.mxu0 %v3116
          %3137 = vmatmul.f32.gmra.mxu0 %v3119
          %v3138 = vpop.f32.mrf.mxu0
          %v3139 = vadd.f32 0.0, %v3138
          %3140 = vdwg.mxu0
          %v3142 = vrot.slane %v3139, 4
          %v3144 = vadd.f32 %v3139, %v3142
          %v3145 = vxor.u32 %v3144, 2147483648
          %v3146 = vmul.f32 %v3145, 1.442695
          %v3147 = vpow.pop %v3146
          %v3148 = vadd.f32 %v3147, 1.0
          %v3149 = vrcp.pop %v3148
          %v3150 = vmul.f32 %v3148, %v3149
          %v3151 = vsub.f32 1.0, %v3150
          %v3152 = vmul.f32 %v3149, %v3151
          %v3153 = vadd.f32 %v3149, %v3152
          %vm3154 = vweird.f32 %v3148
          %vm3155 = vweird.f32 %v3149
          %vm3156 = vmor %vm3154, %vm3155
          %v3157 = vsel %vm3156, %v3149, %v3153
          %v3158 = vand.u32 2147483647, %v3148
          %vm3159 = vcmp.eq.f32.partialorder %v3158, 8.507059e+37
          %v3160 = vand.u32 %v3148, 2147483648
          %v3161 = vor.u32 1.1754944e-38, %v3160
          %v3162 = vsel %vm3159, %v3161, %v3157
          %v3163 = vmul.f32 1.0, %v3162
          %3164 = vst [vmem:[%s273] sm:$0xf] %v3163
        $region48: #{tpu_custom_call.1} parent=31 // pred_fallthru
          _
        %s3165 = sand.u32 %s134, 1
        %s3166 = scalar_lea.sflag [#allocation6], %s3165
        %s3167 = sand.u32 %s134, 1
        %s3168 = smul.addr %s3167, 4
        %s3169 = scalar_lea.vmem [#allocation9], %s3168
        // Predicated region
        $region49: #{tpu_custom_call.1} parent=31 // pred_check
          %p3170 = pneg %p144
        $region50: #{tpu_custom_call.1} parent=31 // pred_check_branch
          %3172 = sbr.rel (%p3170) target = $region52
        $region51: #{tpu_custom_call.1} parent=31 // pred_region
          %3174 = vsyncadd %s3166, 0
          %s3175 = sadd.s32 %s29, %s28
          %s3176 = smul.addr %s3175, 4
          %s3177 = scalar_lea.hbm %s3, %s3176
          %s3179 = sshll.u32 %s3169, 4
          %s3180 = int_to_ptr.vmem [resolvable:$true] %s3179
          %s3181 = sshll.u32 %s3177, 4
          %s3182 = int_to_ptr.hbm [resolvable:$true] %s3181
          %3184 = dma.vmem_to_hbm [thread:$0]  %s3180, 64, %s3182, %s3166
        $region52: #{tpu_custom_call.1} parent=31 // pred_fallthru
          _
      $region32: #{tpu_custom_call.1} parent=5 // pred_fallthru
        _
      %p3185 = scmp.le.s32.totalorder 2, %s18
      // Predicated region
      $region53: #{tpu_custom_call.1} parent=5 // pred_check
        %p3186 = pneg %p3185
      $region54: #{tpu_custom_call.1} parent=5 // pred_check_branch
        %3188 = sbr.rel (%p3186) target = $region56
      $region55: #{tpu_custom_call.1} parent=5 // pred_region
        %s3189 = ssub.s32 %s18, 2
        // Predicated region
        $region57: #{tpu_custom_call.1} parent=55 // pred_check
          %p3190 = pneg %p150
        $region58: #{tpu_custom_call.1} parent=55 // pred_check_branch
          %3192 = sbr.rel (%p3190) target = $region60
        $region59: #{tpu_custom_call.1} parent=55 // pred_region
          %s3193 = sand.u32 %s135, 1
          %s3194 = scalar_lea.sflag [#allocation6], %s3193
          %s3195 = sand.u32 %s135, 1
          %s3196 = smul.addr %s3195, 4
          %s3197 = scalar_lea.vmem [#allocation9], %s3196
          %3199 = dma.done %s3194, 64
        $region60: #{tpu_custom_call.1} parent=55 // pred_fallthru
          _
      $region56: #{tpu_custom_call.1} parent=5 // pred_fallthru
        _
    $region6: #{tpu_custom_call.1} parent=1 // loop_footer
      %s22 = sadd.s32 1, %s18
    $region7: #{tpu_custom_call.1} parent=1 // loop_footer_branch
      %17 = sbr.rel target = $region3
    $region8: #{tpu_custom_call.1} parent=1 // loop_exit
      _
    %3200 = vsyncpa [#allocation5], 1
    %s3201 = scalar_lea.sflag [#allocation5], 1
    %3202 = vsyncpa %s3201, 1
    %3203 = vsyncpa [#allocation8], 1
    %s3204 = scalar_lea.sflag [#allocation8], 1
    %3205 = vsyncpa %s3204, 1
    %3206 = vsyncpa [#allocation6], 1
    %s3207 = scalar_lea.sflag [#allocation6], 1
    %3208 = vsyncpa %s3207, 1

</llo_original>
